<compile_context>
chip_gen: v7x
topology: tpu7x:2x2x1
jax: 0.10.0
libtpu: 0.0.40
codegen_flags: <defaults>
</compile_context>

<pallas_src>
import functools

import jax
import jax.numpy as jnp
from jax.experimental import pallas as pl
from jax.experimental.pallas import tpu as pltpu

KSIZE = 5     # Conv1d kernel size (both conv layers)
OC = 128      # conv output channels (both conv layers)
N_PAD = 128   # fc2 output padded to one full lane width


def _round_up(x, m):
    return (x + m - 1) // m * m


def _fused_forward_kernel(x_ref, w1_ref, b1_ref, w2_ref, b2_ref,
                          w3_ref, b3_ref, w4_ref, b4_ref, o_ref, *, C, L):
    """Whole forward pass for one batch block; everything stays on-chip.

    Layout: rows = batch (sublanes), features = lanes.  Conv activations are
    kept time-major on lanes: h[:, t*128 + c].
    """
    K = KSIZE
    Lout1 = L - K + 1
    Lout2 = Lout1 - K + 1

    x = x_ref[...]       # (Bblk, L*C) bf16, lane index = t*C + c
    w1 = w1_ref[...]     # (K*C, 128) bf16
    b1 = b1_ref[...]     # (1, 128)   f32
    w2 = w2_ref[...]     # (K*128, 128) bf16
    b2 = b2_ref[...]     # (1, 128)   f32

    # conv1 + bias + ReLU: one (Bblk, K*C) @ (K*C, 128) MXU push per output time.
    h1_cols = []
    for t in range(Lout1):
        acc = jnp.dot(x[:, t * C:(t + K) * C], w1,
                      preferred_element_type=jnp.float32)
        h1_cols.append(jnp.maximum(acc + b1, 0.0).astype(jnp.bfloat16))
    h1 = jnp.concatenate(h1_cols, axis=1)            # (Bblk, Lout1*128)

    # conv2 + bias + ReLU: one (Bblk, 640) @ (640, 128) push per output time.
    h2_cols = []
    for t in range(Lout2):
        acc = jnp.dot(h1[:, t * OC:(t + K) * OC], w2,
                      preferred_element_type=jnp.float32)
        h2_cols.append(jnp.maximum(acc + b2, 0.0).astype(jnp.bfloat16))
    h2 = jnp.concatenate(h2_cols, axis=1)            # (Bblk, Lout2*128)

    # fc1 + ReLU: ONE (Bblk, Lout2*128) @ (Lout2*128, 512) matmul.  w3 rows were
    # permuted at pack time so lane order (t*128 + c) reproduces PyTorch's
    # channel-major .view(B, -1) flatten exactly.
    h3 = jnp.dot(h2, w3_ref[...], preferred_element_type=jnp.float32)
    h3 = jnp.maximum(h3 + b3_ref[...], 0.0).astype(jnp.bfloat16)

    # fc2 (output_dim padded to 128 lanes): (Bblk, 512) @ (512, 128).
    y = jnp.dot(h3, w4_ref[...], preferred_element_type=jnp.float32) + b4_ref[...]

    o_ref[...] = y.astype(o_ref.dtype)               # dense (Bblk, 128) store


def init_params(key, input_shape, output_dim):
    """Deterministic synthetic parameters with PyTorch-like shapes/init."""
    C, L = input_shape
    L1 = L - KSIZE + 1
    L2 = L1 - KSIZE + 1
    conv_out_dim = OC * L2  # == int(np.prod(conv(zeros(1,C,L)).shape))
    ks = jax.random.split(key, 8)

    def u(k, shape, fan_in):
        bound = 1.0 / jnp.sqrt(jnp.float32(fan_in))
        return jax.random.uniform(k, shape, jnp.float32, -bound, bound)

    return {
        # Conv1d weights: (out_ch, in_ch, kernel) -- PyTorch convention.
        "conv1_w": u(ks[0], (OC, C, KSIZE), C * KSIZE),
        "conv1_b": u(ks[1], (OC,), C * KSIZE),
        "conv2_w": u(ks[2], (OC, OC, KSIZE), OC * KSIZE),
        "conv2_b": u(ks[3], (OC,), OC * KSIZE),
        # Linear weights stored as (in, out) so forward is x @ W + b.
        "fc1_w": u(ks[4], (conv_out_dim, 512), conv_out_dim),
        "fc1_b": u(ks[5], (512,), conv_out_dim),
        "fc2_w": u(ks[6], (512, output_dim), 512),
        "fc2_b": u(ks[7], (output_dim,), 512),
    }


def pack_params(params, output_dim):
    """One-time conversion of PyTorch-layout params to the kernel's layout."""
    oc1, C, K = params["conv1_w"].shape          # (128, C, 5)
    oc2 = params["conv2_w"].shape[0]             # 128
    fc1_w = params["fc1_w"]                      # (oc2*Lout2, 512); row = c*Lout2 + t
    lout2 = fc1_w.shape[0] // oc2
    hidden = fc1_w.shape[1]
    # Permute fc1 rows to the kernel's lane order: w3[t*128 + c, :] = fc1_w[c*Lout2 + t, :]
    w3 = fc1_w.reshape(oc2, lout2, hidden).transpose(1, 0, 2).reshape(lout2 * oc2, hidden)
    # Pad fc2 to a full 128-lane output.
    w4 = jnp.zeros((hidden, N_PAD), jnp.float32).at[:, :output_dim].set(params["fc2_w"])
    b4 = jnp.zeros((1, N_PAD), jnp.float32).at[:, :output_dim].set(params["fc2_b"])
    return {
        # Conv weights packed so patch column order is (k-major, channel-minor).
        "w1": params["conv1_w"].transpose(2, 1, 0).reshape(K * C, oc1).astype(jnp.bfloat16),
        "b1": params["conv1_b"].reshape(1, -1).astype(jnp.float32),     # (1, 128)
        "w2": params["conv2_w"].transpose(2, 1, 0).reshape(K * oc1, oc2).astype(jnp.bfloat16),
        "b2": params["conv2_b"].reshape(1, -1).astype(jnp.float32),     # (1, 128)
        "w3": w3.astype(jnp.bfloat16),                                  # (Lout2*128, 512)
        "b3": params["fc1_b"].reshape(1, -1).astype(jnp.float32),       # (1, 512)
        "w4": w4.astype(jnp.bfloat16),                                  # (512, 128)
        "b4": b4,                                                       # (1, 128)
    }


def _choose_batch_block(B):
    """Batch block (multiple of 8, capped at 128) and padded batch size."""
    b8 = _round_up(B, 8)
    blk = min(128, b8)
    # Prefer >=2 grid steps so ("parallel",) can shard across v7x's 2 TensorCores.
    if b8 // blk < 2 and b8 >= 16:
        blk = _round_up(b8 // 2, 8)
    return blk, _round_up(B, blk)


@functools.partial(jax.jit, static_argnames=("input_shape", "output_dim"))
def conv_1d_forward(packed, x, *, input_shape, output_dim):
    """x: (B, C, L) float32 -> (B, output_dim) float32."""
    C, L = input_shape
    B = x.shape[0]
    Bblk, B_pad = _choose_batch_block(B)
    grid = (B_pad // Bblk,)

    # Channels-last, flattened to (B, L*C) lanes (lane index = t*C + c), cast to
    # bf16 for the MXU, and batch-padded to a multiple of the block size.  This
    # is one small fused XLA op; fold into the kernel only if B*L*C gets large.
    xl = x.transpose(0, 2, 1).reshape(B, L * C).astype(jnp.bfloat16)
    if B_pad != B:
        xl = jnp.pad(xl, ((0, B_pad - B), (0, 0)))

    def full2d(a):
        # Grid-invariant weight/bias block (constant index_map).
        return pl.BlockSpec(a.shape, lambda b: (0, 0))

    kernel = functools.partial(_fused_forward_kernel, C=C, L=L)
    out_pad = pl.pallas_call(
        kernel,
        out_shape=jax.ShapeDtypeStruct((B_pad, N_PAD), jnp.float32),
        grid=grid,
        in_specs=[
            pl.BlockSpec((Bblk, L * C), lambda b: (b, 0)),
            full2d(packed["w1"]), full2d(packed["b1"]),
            full2d(packed["w2"]), full2d(packed["b2"]),
            full2d(packed["w3"]), full2d(packed["b3"]),
            full2d(packed["w4"]), full2d(packed["b4"]),
        ],
        out_specs=pl.BlockSpec((Bblk, N_PAD), lambda b: (b, 0)),
        compiler_params=pltpu.CompilerParams(
            dimension_semantics=("parallel",),
            vmem_limit_bytes=32 * 1024 * 1024,
        ),
    )(xl, packed["w1"], packed["b1"], packed["w2"], packed["b2"],
      packed["w3"], packed["b3"], packed["w4"], packed["b4"])
    return out_pad[:B, :output_dim]


def _reference_forward(params, x):
    """Pure-JAX f32 reference with exact PyTorch semantics (for validation)."""
    dn1 = jax.lax.conv_dimension_numbers(x.shape, params["conv1_w"].shape,
                                         ("NCH", "OIH", "NCH"))
    h = jax.lax.conv_general_dilated(x, params["conv1_w"], (1,), "VALID",
                                     dimension_numbers=dn1)
    h = jax.nn.relu(h + params["conv1_b"][None, :, None])
    dn2 = jax.lax.conv_dimension_numbers(h.shape, params["conv2_w"].shape,
                                         ("NCH", "OIH", "NCH"))
    h = jax.lax.conv_general_dilated(h, params["conv2_w"], (1,), "VALID",
                                     dimension_numbers=dn2)
    h = jax.nn.relu(h + params["conv2_b"][None, :, None])
    flat = h.reshape(x.shape[0], -1)               # PyTorch .view(B, -1)
    h = jax.nn.relu(flat @ params["fc1_w"] + params["fc1_b"])
    return h @ params["fc2_w"] + params["fc2_b"]


if __name__ == "__main__":
    input_shape = (4, 16)   # (channels, length)
    output_dim = 10
    batch = 2

    key = jax.random.PRNGKey(0)
    k_params, k_x = jax.random.split(key)
    params = init_params(k_params, input_shape, output_dim)
    packed = pack_params(params, output_dim)
    x = jax.random.normal(k_x, (batch,) + input_shape, dtype=jnp.float32)

    out = conv_1d_forward(packed, x, input_shape=input_shape, output_dim=output_dim)
    jax.block_until_ready(out)
    assert out.shape == (batch, output_dim), out.shape

    ref = _reference_forward(params, x)
    err = float(jnp.max(jnp.abs(out - ref)))
    assert err < 3e-2, f"max abs error vs f32 reference too large: {err}"
    print("KERNEL_OK")
</pallas_src>

<mosaic_0001>
module attributes {stable_mosaic.version = 11 : i64} {
  func.func @_fused_forward_kernel(%arg0: i32, %arg1: memref<8x64xbf16, #tpu.memory_space<vmem>>, %arg2: memref<20x128xbf16, #tpu.memory_space<vmem>>, %arg3: memref<1x128xf32, #tpu.memory_space<vmem>>, %arg4: memref<640x128xbf16, #tpu.memory_space<vmem>>, %arg5: memref<1x128xf32, #tpu.memory_space<vmem>>, %arg6: memref<1024x512xbf16, #tpu.memory_space<vmem>>, %arg7: memref<1x512xf32, #tpu.memory_space<vmem>>, %arg8: memref<512x128xbf16, #tpu.memory_space<vmem>>, %arg9: memref<1x128xf32, #tpu.memory_space<vmem>>, %arg10: memref<8x128xf32, #tpu.memory_space<vmem>>) attributes {dimension_semantics = [#tpu.dimension_semantics<parallel>], iteration_bounds = array<i64: 1>, scalar_prefetch = 0 : i64, scratch_operands = 0 : i64, tpu.core_type = #tpu.core_type<tc>, window_params = [{transform_indices = @transform_0, window_bounds = array<i64: 8, 64>}, {pipeline_mode = #tpu.pipeline_mode<synchronous>, transform_indices = @transform_1, window_bounds = array<i64: 20, 128>}, {pipeline_mode = #tpu.pipeline_mode<synchronous>, transform_indices = @transform_2, window_bounds = array<i64: 1, 128>}, {pipeline_mode = #tpu.pipeline_mode<synchronous>, transform_indices = @transform_3, window_bounds = array<i64: 640, 128>}, {pipeline_mode = #tpu.pipeline_mode<synchronous>, transform_indices = @transform_4, window_bounds = array<i64: 1, 128>}, {pipeline_mode = #tpu.pipeline_mode<synchronous>, transform_indices = @transform_5, window_bounds = array<i64: 1024, 512>}, {pipeline_mode = #tpu.pipeline_mode<synchronous>, transform_indices = @transform_6, window_bounds = array<i64: 1, 512>}, {pipeline_mode = #tpu.pipeline_mode<synchronous>, transform_indices = @transform_7, window_bounds = array<i64: 512, 128>}, {pipeline_mode = #tpu.pipeline_mode<synchronous>, transform_indices = @transform_8, window_bounds = array<i64: 1, 128>}, {transform_indices = @transform_9, window_bounds = array<i64: 8, 128>}]} {
    %c0 = arith.constant 0 : index
    %c0_0 = arith.constant 0 : index
    %0 = vector.load %arg1[%c0, %c0_0] : memref<8x64xbf16, #tpu.memory_space<vmem>>, vector<8x64xbf16>
    %c0_1 = arith.constant 0 : index
    %c0_2 = arith.constant 0 : index
    %1 = vector.load %arg2[%c0_1, %c0_2] : memref<20x128xbf16, #tpu.memory_space<vmem>>, vector<20x128xbf16>
    %c0_3 = arith.constant 0 : index
    %c0_4 = arith.constant 0 : index
    %2 = vector.load %arg3[%c0_3, %c0_4] : memref<1x128xf32, #tpu.memory_space<vmem>>, vector<1x128xf32>
    %c0_5 = arith.constant 0 : index
    %c0_6 = arith.constant 0 : index
    %3 = vector.load %arg4[%c0_5, %c0_6] : memref<640x128xbf16, #tpu.memory_space<vmem>>, vector<640x128xbf16>
    %c0_7 = arith.constant 0 : index
    %c0_8 = arith.constant 0 : index
    %4 = vector.load %arg5[%c0_7, %c0_8] : memref<1x128xf32, #tpu.memory_space<vmem>>, vector<1x128xf32>
    %5 = vector.extract_strided_slice %0 {offsets = [0, 0], sizes = [8, 20], strides = [1, 1]} : vector<8x64xbf16> to vector<8x20xbf16>
    %cst = arith.constant dense<0.000000e+00> : vector<8x128xf32>
    %6 = tpu.matmul %5, %1, %cst {dimension_numbers = #tpu.dot_dimension_numbers<[1], [0], [0], [1], [0, 0, 1, 1], [], []>} : vector<8x20xbf16>, vector<20x128xbf16>, vector<8x128xf32> -> vector<8x128xf32>
    %7 = vector.broadcast %2 : vector<1x128xf32> to vector<8x128xf32>
    %8 = arith.addf %6, %7 : vector<8x128xf32>
    %cst_9 = arith.constant 0.000000e+00 : f32
    %9 = vector.broadcast %cst_9 : f32 to vector<8x128xf32>
    %10 = arith.maximumf %8, %9 : vector<8x128xf32>
    %11 = arith.truncf %10 : vector<8x128xf32> to vector<8x128xbf16>
    %12 = vector.extract_strided_slice %0 {offsets = [0, 4], sizes = [8, 20], strides = [1, 1]} : vector<8x64xbf16> to vector<8x20xbf16>
    %cst_10 = arith.constant dense<0.000000e+00> : vector<8x128xf32>
    %13 = tpu.matmul %12, %1, %cst_10 {dimension_numbers = #tpu.dot_dimension_numbers<[1], [0], [0], [1], [0, 0, 1, 1], [], []>} : vector<8x20xbf16>, vector<20x128xbf16>, vector<8x128xf32> -> vector<8x128xf32>
    %14 = vector.broadcast %2 : vector<1x128xf32> to vector<8x128xf32>
    %15 = arith.addf %13, %14 : vector<8x128xf32>
    %cst_11 = arith.constant 0.000000e+00 : f32
    %16 = vector.broadcast %cst_11 : f32 to vector<8x128xf32>
    %17 = arith.maximumf %15, %16 : vector<8x128xf32>
    %18 = arith.truncf %17 : vector<8x128xf32> to vector<8x128xbf16>
    %19 = vector.extract_strided_slice %0 {offsets = [0, 8], sizes = [8, 20], strides = [1, 1]} : vector<8x64xbf16> to vector<8x20xbf16>
    %cst_12 = arith.constant dense<0.000000e+00> : vector<8x128xf32>
    %20 = tpu.matmul %19, %1, %cst_12 {dimension_numbers = #tpu.dot_dimension_numbers<[1], [0], [0], [1], [0, 0, 1, 1], [], []>} : vector<8x20xbf16>, vector<20x128xbf16>, vector<8x128xf32> -> vector<8x128xf32>
    %21 = vector.broadcast %2 : vector<1x128xf32> to vector<8x128xf32>
    %22 = arith.addf %20, %21 : vector<8x128xf32>
    %cst_13 = arith.constant 0.000000e+00 : f32
    %23 = vector.broadcast %cst_13 : f32 to vector<8x128xf32>
    %24 = arith.maximumf %22, %23 : vector<8x128xf32>
    %25 = arith.truncf %24 : vector<8x128xf32> to vector<8x128xbf16>
    %26 = vector.extract_strided_slice %0 {offsets = [0, 12], sizes = [8, 20], strides = [1, 1]} : vector<8x64xbf16> to vector<8x20xbf16>
    %cst_14 = arith.constant dense<0.000000e+00> : vector<8x128xf32>
    %27 = tpu.matmul %26, %1, %cst_14 {dimension_numbers = #tpu.dot_dimension_numbers<[1], [0], [0], [1], [0, 0, 1, 1], [], []>} : vector<8x20xbf16>, vector<20x128xbf16>, vector<8x128xf32> -> vector<8x128xf32>
    %28 = vector.broadcast %2 : vector<1x128xf32> to vector<8x128xf32>
    %29 = arith.addf %27, %28 : vector<8x128xf32>
    %cst_15 = arith.constant 0.000000e+00 : f32
    %30 = vector.broadcast %cst_15 : f32 to vector<8x128xf32>
    %31 = arith.maximumf %29, %30 : vector<8x128xf32>
    %32 = arith.truncf %31 : vector<8x128xf32> to vector<8x128xbf16>
    %33 = vector.extract_strided_slice %0 {offsets = [0, 16], sizes = [8, 20], strides = [1, 1]} : vector<8x64xbf16> to vector<8x20xbf16>
    %cst_16 = arith.constant dense<0.000000e+00> : vector<8x128xf32>
    %34 = tpu.matmul %33, %1, %cst_16 {dimension_numbers = #tpu.dot_dimension_numbers<[1], [0], [0], [1], [0, 0, 1, 1], [], []>} : vector<8x20xbf16>, vector<20x128xbf16>, vector<8x128xf32> -> vector<8x128xf32>
    %35 = vector.broadcast %2 : vector<1x128xf32> to vector<8x128xf32>
    %36 = arith.addf %34, %35 : vector<8x128xf32>
    %cst_17 = arith.constant 0.000000e+00 : f32
    %37 = vector.broadcast %cst_17 : f32 to vector<8x128xf32>
    %38 = arith.maximumf %36, %37 : vector<8x128xf32>
    %39 = arith.truncf %38 : vector<8x128xf32> to vector<8x128xbf16>
    %40 = vector.extract_strided_slice %0 {offsets = [0, 20], sizes = [8, 20], strides = [1, 1]} : vector<8x64xbf16> to vector<8x20xbf16>
    %cst_18 = arith.constant dense<0.000000e+00> : vector<8x128xf32>
    %41 = tpu.matmul %40, %1, %cst_18 {dimension_numbers = #tpu.dot_dimension_numbers<[1], [0], [0], [1], [0, 0, 1, 1], [], []>} : vector<8x20xbf16>, vector<20x128xbf16>, vector<8x128xf32> -> vector<8x128xf32>
    %42 = vector.broadcast %2 : vector<1x128xf32> to vector<8x128xf32>
    %43 = arith.addf %41, %42 : vector<8x128xf32>
    %cst_19 = arith.constant 0.000000e+00 : f32
    %44 = vector.broadcast %cst_19 : f32 to vector<8x128xf32>
    %45 = arith.maximumf %43, %44 : vector<8x128xf32>
    %46 = arith.truncf %45 : vector<8x128xf32> to vector<8x128xbf16>
    %47 = vector.extract_strided_slice %0 {offsets = [0, 24], sizes = [8, 20], strides = [1, 1]} : vector<8x64xbf16> to vector<8x20xbf16>
    %cst_20 = arith.constant dense<0.000000e+00> : vector<8x128xf32>
    %48 = tpu.matmul %47, %1, %cst_20 {dimension_numbers = #tpu.dot_dimension_numbers<[1], [0], [0], [1], [0, 0, 1, 1], [], []>} : vector<8x20xbf16>, vector<20x128xbf16>, vector<8x128xf32> -> vector<8x128xf32>
    %49 = vector.broadcast %2 : vector<1x128xf32> to vector<8x128xf32>
    %50 = arith.addf %48, %49 : vector<8x128xf32>
    %cst_21 = arith.constant 0.000000e+00 : f32
    %51 = vector.broadcast %cst_21 : f32 to vector<8x128xf32>
    %52 = arith.maximumf %50, %51 : vector<8x128xf32>
    %53 = arith.truncf %52 : vector<8x128xf32> to vector<8x128xbf16>
    %54 = vector.extract_strided_slice %0 {offsets = [0, 28], sizes = [8, 20], strides = [1, 1]} : vector<8x64xbf16> to vector<8x20xbf16>
    %cst_22 = arith.constant dense<0.000000e+00> : vector<8x128xf32>
    %55 = tpu.matmul %54, %1, %cst_22 {dimension_numbers = #tpu.dot_dimension_numbers<[1], [0], [0], [1], [0, 0, 1, 1], [], []>} : vector<8x20xbf16>, vector<20x128xbf16>, vector<8x128xf32> -> vector<8x128xf32>
    %56 = vector.broadcast %2 : vector<1x128xf32> to vector<8x128xf32>
    %57 = arith.addf %55, %56 : vector<8x128xf32>
    %cst_23 = arith.constant 0.000000e+00 : f32
    %58 = vector.broadcast %cst_23 : f32 to vector<8x128xf32>
    %59 = arith.maximumf %57, %58 : vector<8x128xf32>
    %60 = arith.truncf %59 : vector<8x128xf32> to vector<8x128xbf16>
    %61 = vector.extract_strided_slice %0 {offsets = [0, 32], sizes = [8, 20], strides = [1, 1]} : vector<8x64xbf16> to vector<8x20xbf16>
    %cst_24 = arith.constant dense<0.000000e+00> : vector<8x128xf32>
    %62 = tpu.matmul %61, %1, %cst_24 {dimension_numbers = #tpu.dot_dimension_numbers<[1], [0], [0], [1], [0, 0, 1, 1], [], []>} : vector<8x20xbf16>, vector<20x128xbf16>, vector<8x128xf32> -> vector<8x128xf32>
    %63 = vector.broadcast %2 : vector<1x128xf32> to vector<8x128xf32>
    %64 = arith.addf %62, %63 : vector<8x128xf32>
    %cst_25 = arith.constant 0.000000e+00 : f32
    %65 = vector.broadcast %cst_25 : f32 to vector<8x128xf32>
    %66 = arith.maximumf %64, %65 : vector<8x128xf32>
    %67 = arith.truncf %66 : vector<8x128xf32> to vector<8x128xbf16>
    %68 = vector.extract_strided_slice %0 {offsets = [0, 36], sizes = [8, 20], strides = [1, 1]} : vector<8x64xbf16> to vector<8x20xbf16>
    %cst_26 = arith.constant dense<0.000000e+00> : vector<8x128xf32>
    %69 = tpu.matmul %68, %1, %cst_26 {dimension_numbers = #tpu.dot_dimension_numbers<[1], [0], [0], [1], [0, 0, 1, 1], [], []>} : vector<8x20xbf16>, vector<20x128xbf16>, vector<8x128xf32> -> vector<8x128xf32>
    %70 = vector.broadcast %2 : vector<1x128xf32> to vector<8x128xf32>
    %71 = arith.addf %69, %70 : vector<8x128xf32>
    %cst_27 = arith.constant 0.000000e+00 : f32
    %72 = vector.broadcast %cst_27 : f32 to vector<8x128xf32>
    %73 = arith.maximumf %71, %72 : vector<8x128xf32>
    %74 = arith.truncf %73 : vector<8x128xf32> to vector<8x128xbf16>
    %75 = vector.extract_strided_slice %0 {offsets = [0, 40], sizes = [8, 20], strides = [1, 1]} : vector<8x64xbf16> to vector<8x20xbf16>
    %cst_28 = arith.constant dense<0.000000e+00> : vector<8x128xf32>
    %76 = tpu.matmul %75, %1, %cst_28 {dimension_numbers = #tpu.dot_dimension_numbers<[1], [0], [0], [1], [0, 0, 1, 1], [], []>} : vector<8x20xbf16>, vector<20x128xbf16>, vector<8x128xf32> -> vector<8x128xf32>
    %77 = vector.broadcast %2 : vector<1x128xf32> to vector<8x128xf32>
    %78 = arith.addf %76, %77 : vector<8x128xf32>
    %cst_29 = arith.constant 0.000000e+00 : f32
    %79 = vector.broadcast %cst_29 : f32 to vector<8x128xf32>
    %80 = arith.maximumf %78, %79 : vector<8x128xf32>
    %81 = arith.truncf %80 : vector<8x128xf32> to vector<8x128xbf16>
    %82 = vector.extract_strided_slice %0 {offsets = [0, 44], sizes = [8, 20], strides = [1, 1]} : vector<8x64xbf16> to vector<8x20xbf16>
    %cst_30 = arith.constant dense<0.000000e+00> : vector<8x128xf32>
    %83 = tpu.matmul %82, %1, %cst_30 {dimension_numbers = #tpu.dot_dimension_numbers<[1], [0], [0], [1], [0, 0, 1, 1], [], []>} : vector<8x20xbf16>, vector<20x128xbf16>, vector<8x128xf32> -> vector<8x128xf32>
    %84 = vector.broadcast %2 : vector<1x128xf32> to vector<8x128xf32>
    %85 = arith.addf %83, %84 : vector<8x128xf32>
    %cst_31 = arith.constant 0.000000e+00 : f32
    %86 = vector.broadcast %cst_31 : f32 to vector<8x128xf32>
    %87 = arith.maximumf %85, %86 : vector<8x128xf32>
    %88 = arith.truncf %87 : vector<8x128xf32> to vector<8x128xbf16>
    %89 = tpu.concatenate %11, %18, %25, %32, %39, %46, %53, %60, %67, %74, %81, %88 in 1 : vector<8x128xbf16>, vector<8x128xbf16>, vector<8x128xbf16>, vector<8x128xbf16>, vector<8x128xbf16>, vector<8x128xbf16>, vector<8x128xbf16>, vector<8x128xbf16>, vector<8x128xbf16>, vector<8x128xbf16>, vector<8x128xbf16>, vector<8x128xbf16> -> vector<8x1536xbf16>
    %90 = vector.extract_strided_slice %89 {offsets = [0, 0], sizes = [8, 640], strides = [1, 1]} : vector<8x1536xbf16> to vector<8x640xbf16>
    %cst_32 = arith.constant dense<0.000000e+00> : vector<8x128xf32>
    %91 = tpu.matmul %90, %3, %cst_32 {dimension_numbers = #tpu.dot_dimension_numbers<[1], [0], [0], [1], [0, 0, 1, 1], [], []>} : vector<8x640xbf16>, vector<640x128xbf16>, vector<8x128xf32> -> vector<8x128xf32>
    %92 = vector.broadcast %4 : vector<1x128xf32> to vector<8x128xf32>
    %93 = arith.addf %91, %92 : vector<8x128xf32>
    %cst_33 = arith.constant 0.000000e+00 : f32
    %94 = vector.broadcast %cst_33 : f32 to vector<8x128xf32>
    %95 = arith.maximumf %93, %94 : vector<8x128xf32>
    %96 = arith.truncf %95 : vector<8x128xf32> to vector<8x128xbf16>
    %97 = vector.extract_strided_slice %89 {offsets = [0, 128], sizes = [8, 640], strides = [1, 1]} : vector<8x1536xbf16> to vector<8x640xbf16>
    %cst_34 = arith.constant dense<0.000000e+00> : vector<8x128xf32>
    %98 = tpu.matmul %97, %3, %cst_34 {dimension_numbers = #tpu.dot_dimension_numbers<[1], [0], [0], [1], [0, 0, 1, 1], [], []>} : vector<8x640xbf16>, vector<640x128xbf16>, vector<8x128xf32> -> vector<8x128xf32>
    %99 = vector.broadcast %4 : vector<1x128xf32> to vector<8x128xf32>
    %100 = arith.addf %98, %99 : vector<8x128xf32>
    %cst_35 = arith.constant 0.000000e+00 : f32
    %101 = vector.broadcast %cst_35 : f32 to vector<8x128xf32>
    %102 = arith.maximumf %100, %101 : vector<8x128xf32>
    %103 = arith.truncf %102 : vector<8x128xf32> to vector<8x128xbf16>
    %104 = vector.extract_strided_slice %89 {offsets = [0, 256], sizes = [8, 640], strides = [1, 1]} : vector<8x1536xbf16> to vector<8x640xbf16>
    %cst_36 = arith.constant dense<0.000000e+00> : vector<8x128xf32>
    %105 = tpu.matmul %104, %3, %cst_36 {dimension_numbers = #tpu.dot_dimension_numbers<[1], [0], [0], [1], [0, 0, 1, 1], [], []>} : vector<8x640xbf16>, vector<640x128xbf16>, vector<8x128xf32> -> vector<8x128xf32>
    %106 = vector.broadcast %4 : vector<1x128xf32> to vector<8x128xf32>
    %107 = arith.addf %105, %106 : vector<8x128xf32>
    %cst_37 = arith.constant 0.000000e+00 : f32
    %108 = vector.broadcast %cst_37 : f32 to vector<8x128xf32>
    %109 = arith.maximumf %107, %108 : vector<8x128xf32>
    %110 = arith.truncf %109 : vector<8x128xf32> to vector<8x128xbf16>
    %111 = vector.extract_strided_slice %89 {offsets = [0, 384], sizes = [8, 640], strides = [1, 1]} : vector<8x1536xbf16> to vector<8x640xbf16>
    %cst_38 = arith.constant dense<0.000000e+00> : vector<8x128xf32>
    %112 = tpu.matmul %111, %3, %cst_38 {dimension_numbers = #tpu.dot_dimension_numbers<[1], [0], [0], [1], [0, 0, 1, 1], [], []>} : vector<8x640xbf16>, vector<640x128xbf16>, vector<8x128xf32> -> vector<8x128xf32>
    %113 = vector.broadcast %4 : vector<1x128xf32> to vector<8x128xf32>
    %114 = arith.addf %112, %113 : vector<8x128xf32>
    %cst_39 = arith.constant 0.000000e+00 : f32
    %115 = vector.broadcast %cst_39 : f32 to vector<8x128xf32>
    %116 = arith.maximumf %114, %115 : vector<8x128xf32>
    %117 = arith.truncf %116 : vector<8x128xf32> to vector<8x128xbf16>
    %118 = vector.extract_strided_slice %89 {offsets = [0, 512], sizes = [8, 640], strides = [1, 1]} : vector<8x1536xbf16> to vector<8x640xbf16>
    %cst_40 = arith.constant dense<0.000000e+00> : vector<8x128xf32>
    %119 = tpu.matmul %118, %3, %cst_40 {dimension_numbers = #tpu.dot_dimension_numbers<[1], [0], [0], [1], [0, 0, 1, 1], [], []>} : vector<8x640xbf16>, vector<640x128xbf16>, vector<8x128xf32> -> vector<8x128xf32>
    %120 = vector.broadcast %4 : vector<1x128xf32> to vector<8x128xf32>
    %121 = arith.addf %119, %120 : vector<8x128xf32>
    %cst_41 = arith.constant 0.000000e+00 : f32
    %122 = vector.broadcast %cst_41 : f32 to vector<8x128xf32>
    %123 = arith.maximumf %121, %122 : vector<8x128xf32>
    %124 = arith.truncf %123 : vector<8x128xf32> to vector<8x128xbf16>
    %125 = vector.extract_strided_slice %89 {offsets = [0, 640], sizes = [8, 640], strides = [1, 1]} : vector<8x1536xbf16> to vector<8x640xbf16>
    %cst_42 = arith.constant dense<0.000000e+00> : vector<8x128xf32>
    %126 = tpu.matmul %125, %3, %cst_42 {dimension_numbers = #tpu.dot_dimension_numbers<[1], [0], [0], [1], [0, 0, 1, 1], [], []>} : vector<8x640xbf16>, vector<640x128xbf16>, vector<8x128xf32> -> vector<8x128xf32>
    %127 = vector.broadcast %4 : vector<1x128xf32> to vector<8x128xf32>
    %128 = arith.addf %126, %127 : vector<8x128xf32>
    %cst_43 = arith.constant 0.000000e+00 : f32
    %129 = vector.broadcast %cst_43 : f32 to vector<8x128xf32>
    %130 = arith.maximumf %128, %129 : vector<8x128xf32>
    %131 = arith.truncf %130 : vector<8x128xf32> to vector<8x128xbf16>
    %132 = vector.extract_strided_slice %89 {offsets = [0, 768], sizes = [8, 640], strides = [1, 1]} : vector<8x1536xbf16> to vector<8x640xbf16>
    %cst_44 = arith.constant dense<0.000000e+00> : vector<8x128xf32>
    %133 = tpu.matmul %132, %3, %cst_44 {dimension_numbers = #tpu.dot_dimension_numbers<[1], [0], [0], [1], [0, 0, 1, 1], [], []>} : vector<8x640xbf16>, vector<640x128xbf16>, vector<8x128xf32> -> vector<8x128xf32>
    %134 = vector.broadcast %4 : vector<1x128xf32> to vector<8x128xf32>
    %135 = arith.addf %133, %134 : vector<8x128xf32>
    %cst_45 = arith.constant 0.000000e+00 : f32
    %136 = vector.broadcast %cst_45 : f32 to vector<8x128xf32>
    %137 = arith.maximumf %135, %136 : vector<8x128xf32>
    %138 = arith.truncf %137 : vector<8x128xf32> to vector<8x128xbf16>
    %139 = vector.extract_strided_slice %89 {offsets = [0, 896], sizes = [8, 640], strides = [1, 1]} : vector<8x1536xbf16> to vector<8x640xbf16>
    %cst_46 = arith.constant dense<0.000000e+00> : vector<8x128xf32>
    %140 = tpu.matmul %139, %3, %cst_46 {dimension_numbers = #tpu.dot_dimension_numbers<[1], [0], [0], [1], [0, 0, 1, 1], [], []>} : vector<8x640xbf16>, vector<640x128xbf16>, vector<8x128xf32> -> vector<8x128xf32>
    %141 = vector.broadcast %4 : vector<1x128xf32> to vector<8x128xf32>
    %142 = arith.addf %140, %141 : vector<8x128xf32>
    %cst_47 = arith.constant 0.000000e+00 : f32
    %143 = vector.broadcast %cst_47 : f32 to vector<8x128xf32>
    %144 = arith.maximumf %142, %143 : vector<8x128xf32>
    %145 = arith.truncf %144 : vector<8x128xf32> to vector<8x128xbf16>
    %146 = tpu.concatenate %96, %103, %110, %117, %124, %131, %138, %145 in 1 : vector<8x128xbf16>, vector<8x128xbf16>, vector<8x128xbf16>, vector<8x128xbf16>, vector<8x128xbf16>, vector<8x128xbf16>, vector<8x128xbf16>, vector<8x128xbf16> -> vector<8x1024xbf16>
    %c0_48 = arith.constant 0 : index
    %c0_49 = arith.constant 0 : index
    %147 = vector.load %arg6[%c0_48, %c0_49] : memref<1024x512xbf16, #tpu.memory_space<vmem>>, vector<1024x512xbf16>
    %cst_50 = arith.constant dense<0.000000e+00> : vector<8x512xf32>
    %148 = tpu.matmul %146, %147, %cst_50 {dimension_numbers = #tpu.dot_dimension_numbers<[1], [0], [0], [1], [0, 0, 1, 1], [], []>} : vector<8x1024xbf16>, vector<1024x512xbf16>, vector<8x512xf32> -> vector<8x512xf32>
    %c0_51 = arith.constant 0 : index
    %c0_52 = arith.constant 0 : index
    %149 = vector.load %arg7[%c0_51, %c0_52] : memref<1x512xf32, #tpu.memory_space<vmem>>, vector<1x512xf32>
    %150 = vector.broadcast %149 : vector<1x512xf32> to vector<8x512xf32>
    %151 = arith.addf %148, %150 : vector<8x512xf32>
    %cst_53 = arith.constant 0.000000e+00 : f32
    %152 = vector.broadcast %cst_53 : f32 to vector<8x512xf32>
    %153 = arith.maximumf %151, %152 : vector<8x512xf32>
    %154 = arith.truncf %153 : vector<8x512xf32> to vector<8x512xbf16>
    %c0_54 = arith.constant 0 : index
    %c0_55 = arith.constant 0 : index
    %155 = vector.load %arg8[%c0_54, %c0_55] : memref<512x128xbf16, #tpu.memory_space<vmem>>, vector<512x128xbf16>
    %cst_56 = arith.constant dense<0.000000e+00> : vector<8x128xf32>
    %156 = tpu.matmul %154, %155, %cst_56 {dimension_numbers = #tpu.dot_dimension_numbers<[1], [0], [0], [1], [0, 0, 1, 1], [], []>} : vector<8x512xbf16>, vector<512x128xbf16>, vector<8x128xf32> -> vector<8x128xf32>
    %c0_57 = arith.constant 0 : index
    %c0_58 = arith.constant 0 : index
    %157 = vector.load %arg9[%c0_57, %c0_58] : memref<1x128xf32, #tpu.memory_space<vmem>>, vector<1x128xf32>
    %158 = vector.broadcast %157 : vector<1x128xf32> to vector<8x128xf32>
    %159 = arith.addf %156, %158 : vector<8x128xf32>
    %c0_59 = arith.constant 0 : index
    %c0_60 = arith.constant 0 : index
    %160 = vector.load %arg10[%c0_59, %c0_60] : memref<8x128xf32, #tpu.memory_space<vmem>>, vector<8x128xf32>
    tpu.vector_store %arg10[%c0_59, %c0_60], %159 {strides = array<i32>} : memref<8x128xf32, #tpu.memory_space<vmem>>, vector<8x128xf32>,
    return
  }
  func.func @transform_0(%arg0: i32) -> (i32, i32) {
    %c0_i32 = arith.constant 0 : i32
    %c0_i32_0 = arith.constant 0 : i32
    return %arg0, %c0_i32 : i32, i32
  }
  func.func @transform_1(%arg0: i32) -> (i32, i32) {
    %c0_i32 = arith.constant 0 : i32
    %c0_i32_0 = arith.constant 0 : i32
    %c0_i32_1 = arith.constant 0 : i32
    return %c0_i32, %c0_i32_0 : i32, i32
  }
  func.func @transform_2(%arg0: i32) -> (i32, i32) {
    %c0_i32 = arith.constant 0 : i32
    %c0_i32_0 = arith.constant 0 : i32
    %c0_i32_1 = arith.constant 0 : i32
    return %c0_i32, %c0_i32_0 : i32, i32
  }
  func.func @transform_3(%arg0: i32) -> (i32, i32) {
    %c0_i32 = arith.constant 0 : i32
    %c0_i32_0 = arith.constant 0 : i32
    %c0_i32_1 = arith.constant 0 : i32
    return %c0_i32, %c0_i32_0 : i32, i32
  }
  func.func @transform_4(%arg0: i32) -> (i32, i32) {
    %c0_i32 = arith.constant 0 : i32
    %c0_i32_0 = arith.constant 0 : i32
    %c0_i32_1 = arith.constant 0 : i32
    return %c0_i32, %c0_i32_0 : i32, i32
  }
  func.func @transform_5(%arg0: i32) -> (i32, i32) {
    %c0_i32 = arith.constant 0 : i32
    %c0_i32_0 = arith.constant 0 : i32
    %c0_i32_1 = arith.constant 0 : i32
    return %c0_i32, %c0_i32_0 : i32, i32
  }
  func.func @transform_6(%arg0: i32) -> (i32, i32) {
    %c0_i32 = arith.constant 0 : i32
    %c0_i32_0 = arith.constant 0 : i32
    %c0_i32_1 = arith.constant 0 : i32
    return %c0_i32, %c0_i32_0 : i32, i32
  }
  func.func @transform_7(%arg0: i32) -> (i32, i32) {
    %c0_i32 = arith.constant 0 : i32
    %c0_i32_0 = arith.constant 0 : i32
    %c0_i32_1 = arith.constant 0 : i32
    return %c0_i32, %c0_i32_0 : i32, i32
  }
  func.func @transform_8(%arg0: i32) -> (i32, i32) {
    %c0_i32 = arith.constant 0 : i32
    %c0_i32_0 = arith.constant 0 : i32
    %c0_i32_1 = arith.constant 0 : i32
    return %c0_i32, %c0_i32_0 : i32, i32
  }
  func.func @transform_9(%arg0: i32) -> (i32, i32) {
    %c0_i32 = arith.constant 0 : i32
    %c0_i32_0 = arith.constant 0 : i32
    return %arg0, %c0_i32 : i32, i32
  }
}

</mosaic_0001>

<llo_original>
// kernel: conv_1d_forward.1
$region0: #{conv_1d_forward.1}
  #allocation0 [shape = 'u32[]', space=smem, size = 0x4, offset = 0x4, fixed_abs, tag = 'smem constant byte address 0x4 - core index']
  #allocation1 [shape = 'u32[144,128]{1,0:T(1,128)}', space=vmem, size = 0x12000, scoped, tag = 'internal scratch']
  %s0 = inlined_call_operand.vmem [shape: bf16[8,64], index: 0, kind: input, shape index: {}]
  %s1 = inlined_call_operand.vmem [shape: bf16[20,128], index: 1, kind: input, shape index: {}]
  %s2 = inlined_call_operand.vmem [shape: f32[1,128], index: 2, kind: input, shape index: {}]
  %s3 = inlined_call_operand.hbm [shape: bf16[640,128], index: 3, kind: input, shape index: {}]
  %s4 = inlined_call_operand.vmem [shape: f32[1,128], index: 4, kind: input, shape index: {}]
  %s5 = inlined_call_operand.hbm [shape: bf16[1024,512], index: 5, kind: input, shape index: {}]
  %s6 = inlined_call_operand.vmem [shape: f32[1,512], index: 6, kind: input, shape index: {}]
  %s7 = inlined_call_operand.hbm [shape: bf16[512,128], index: 7, kind: input, shape index: {}]
  %s8 = inlined_call_operand.vmem [shape: f32[1,128], index: 8, kind: input, shape index: {}]
  %s9 = inlined_call_operand.vmem [shape: f32[8,128], index: 9, kind: output, shape index: {}]
  %s10 = sld [smem:[#allocation0]]
  $region58: #{conv_1d_forward.1} parent=0
    _
  %s12 = ssub.s32 1, %s10
  %s13 = scalar_select 0, %s12, %s10
  $region1: #{conv_1d_forward.1} parent=0
    #allocation2 [shape = 'u8[163840]{0}', space=vmem, size = 0x28000, scoped, tag = 'input window, operand 3, single buffered']
    #allocation3 [shape = 's32[1]{0}', space=sflag, size = 0x4, scoped, tag = 'scoped memory for conv_1d_forward.1']
    #allocation4 [shape = 'u8[1048576]{0}', space=vmem, size = 0x100000, scoped, tag = 'input window, operand 5, single buffered']
    #allocation5 [shape = 's32[1]{0}', space=sflag, size = 0x4, scoped, tag = 'scoped memory for conv_1d_forward.1']
    #allocation6 [shape = 'u8[131072]{0}', space=vmem, size = 0x20000, scoped, tag = 'input window, operand 7, single buffered']
    %14 = vsyncpa [#allocation3], 0
    %15 = vsyncpa [#allocation5], 0
    // Predicated region
    $region2: #{conv_1d_forward.1} parent=1 // pred_check
      _
    $region3: #{conv_1d_forward.1} parent=1 // pred_check_branch
      %17 = sbr.rel (0) target = $region5
    $region4: #{conv_1d_forward.1} parent=1 // pred_region
      _
    $region5: #{conv_1d_forward.1} parent=1 // pred_fallthru
      _
    // Predicated region
    $region6: #{conv_1d_forward.1} parent=1 // pred_check
      _
    $region7: #{conv_1d_forward.1} parent=1 // pred_check_branch
      %19 = sbr.rel (0) target = $region9
    $region8: #{conv_1d_forward.1} parent=1 // pred_region
      _
    $region9: #{conv_1d_forward.1} parent=1 // pred_fallthru
      _
    // Predicated region
    $region10: #{conv_1d_forward.1} parent=1 // pred_check
      _
    $region11: #{conv_1d_forward.1} parent=1 // pred_check_branch
      %21 = sbr.rel (0) target = $region13
    $region12: #{conv_1d_forward.1} parent=1 // pred_region
      _
    $region13: #{conv_1d_forward.1} parent=1 // pred_fallthru
      _
    // Predicated region
    $region14: #{conv_1d_forward.1} parent=1 // pred_check
      _
    $region15: #{conv_1d_forward.1} parent=1 // pred_check_branch
      %23 = sbr.rel (0) target = $region17
    $region16: #{conv_1d_forward.1} parent=1 // pred_region
      %s25 = ssub.s32 5120, 5120
      %26 = vsyncadd [#allocation3], %s25
      %s27 = sshll.u32 [#allocation2], 4
      %s28 = int_to_ptr.vmem [resolvable:$true] %s27
      %33 = dma.hbm_to_vmem [thread:$0]  %s3, 5120, %s28, [#allocation3], 64, 64, 4
    $region17: #{conv_1d_forward.1} parent=1 // pred_fallthru
      _
    // Predicated region
    $region18: #{conv_1d_forward.1} parent=1 // pred_check
      _
    $region19: #{conv_1d_forward.1} parent=1 // pred_check_branch
      %35 = sbr.rel (0) target = $region21
    $region20: #{conv_1d_forward.1} parent=1 // pred_region
      _
    $region21: #{conv_1d_forward.1} parent=1 // pred_fallthru
      _
    // Predicated region
    $region22: #{conv_1d_forward.1} parent=1 // pred_check
      _
    $region23: #{conv_1d_forward.1} parent=1 // pred_check_branch
      %37 = sbr.rel (0) target = $region25
    $region24: #{conv_1d_forward.1} parent=1 // pred_region
      %s39 = ssub.s32 32768, 32768
      %40 = vsyncadd [#allocation5], %s39
      %s41 = sshll.u32 [#allocation4], 4
      %s42 = int_to_ptr.vmem [resolvable:$true] %s41
      %47 = dma.hbm_to_vmem [thread:$0]  %s5, 32768, %s42, [#allocation5], 256, 256, 16
    $region25: #{conv_1d_forward.1} parent=1 // pred_fallthru
      _
    // Predicated region
    $region26: #{conv_1d_forward.1} parent=1 // pred_check
      _
    $region27: #{conv_1d_forward.1} parent=1 // pred_check_branch
      %49 = sbr.rel (0) target = $region29
    $region28: #{conv_1d_forward.1} parent=1 // pred_region
      _
    $region29: #{conv_1d_forward.1} parent=1 // pred_fallthru
      _
    // Predicated region
    $region30: #{conv_1d_forward.1} parent=1 // pred_check
      _
    $region31: #{conv_1d_forward.1} parent=1 // pred_check_branch
      %51 = sbr.rel (0) target = $region33
    $region32: #{conv_1d_forward.1} parent=1 // pred_region
      %s53 = ssub.s32 4096, 4096
      %54 = vsyncadd [#allocation5], %s53
      %s55 = sshll.u32 [#allocation6], 4
      %s56 = int_to_ptr.vmem [resolvable:$true] %s55
      %61 = dma.hbm_to_vmem [thread:$0]  %s7, 4096, %s56, [#allocation5], 64, 64, 4
    $region33: #{conv_1d_forward.1} parent=1 // pred_fallthru
      _
    // Predicated region
    $region34: #{conv_1d_forward.1} parent=1 // pred_check
      _
    $region35: #{conv_1d_forward.1} parent=1 // pred_check_branch
      %63 = sbr.rel (0) target = $region37
    $region36: #{conv_1d_forward.1} parent=1 // pred_region
      _
    $region37: #{conv_1d_forward.1} parent=1 // pred_fallthru
      _
    // Predicated region
    $region38: #{conv_1d_forward.1} parent=1 // pred_check
      _
    $region39: #{conv_1d_forward.1} parent=1 // pred_check_branch
      %65 = sbr.rel (0) target = $region41
    $region40: #{conv_1d_forward.1} parent=1 // pred_region
      %66 = dma.done [#allocation3], 5120
    $region41: #{conv_1d_forward.1} parent=1 // pred_fallthru
      _
    // Predicated region
    $region42: #{conv_1d_forward.1} parent=1 // pred_check
      _
    $region43: #{conv_1d_forward.1} parent=1 // pred_check_branch
      %68 = sbr.rel (0) target = $region45
    $region44: #{conv_1d_forward.1} parent=1 // pred_region
      %69 = dma.done [#allocation5], 32768
    $region45: #{conv_1d_forward.1} parent=1 // pred_fallthru
      _
    // Predicated region
    $region46: #{conv_1d_forward.1} parent=1 // pred_check
      _
    $region47: #{conv_1d_forward.1} parent=1 // pred_check_branch
      %71 = sbr.rel (0) target = $region49
    $region48: #{conv_1d_forward.1} parent=1 // pred_region
      %72 = dma.done [#allocation5], 4096
    $region49: #{conv_1d_forward.1} parent=1 // pred_fallthru
      _
    %v74 = vld [vmem:[%s0] sm:$0xf]
    %v75 = vld [vmem:[%s1] sm:$0xf]
    %v76 = vld [vmem:[%s1 + $0x4] sm:$0xf]
    %v77 = vld [vmem:[%s1 + $0x8] sm:$0x3]
    %v78 = vld [vmem:[%s2] sm:$0x1]
    %v79 = vld [vmem:[#allocation2] sm:$0xf]
    %v80 = vld [vmem:[#allocation2 + $0x4] sm:$0xf]
    %v81 = vld [vmem:[#allocation2 + $0x8] sm:$0xf]
    %v82 = vld [vmem:[#allocation2 + $0xc] sm:$0xf]
    %v83 = vld [vmem:[#allocation2 + $0x10] sm:$0xf]
    %v84 = vld [vmem:[#allocation2 + $0x14] sm:$0xf]
    %v85 = vld [vmem:[#allocation2 + $0x18] sm:$0xf]
    %v86 = vld [vmem:[#allocation2 + $0x1c] sm:$0xf]
    %v87 = vld [vmem:[#allocation2 + $0x20] sm:$0xf]
    %v88 = vld [vmem:[#allocation2 + $0x24] sm:$0xf]
    %v89 = vld [vmem:[#allocation2 + $0x28] sm:$0xf]
    %v90 = vld [vmem:[#allocation2 + $0x2c] sm:$0xf]
    %v91 = vld [vmem:[#allocation2 + $0x30] sm:$0xf]
    %v92 = vld [vmem:[#allocation2 + $0x34] sm:$0xf]
    %v93 = vld [vmem:[#allocation2 + $0x38] sm:$0xf]
    %v94 = vld [vmem:[#allocation2 + $0x3c] sm:$0xf]
    %v95 = vld [vmem:[#allocation2 + $0x40] sm:$0xf]
    %v96 = vld [vmem:[#allocation2 + $0x44] sm:$0xf]
    %v97 = vld [vmem:[#allocation2 + $0x48] sm:$0xf]
    %v98 = vld [vmem:[#allocation2 + $0x4c] sm:$0xf]
    %v99 = vld [vmem:[#allocation2 + $0x50] sm:$0xf]
    %v100 = vld [vmem:[#allocation2 + $0x54] sm:$0xf]
    %v101 = vld [vmem:[#allocation2 + $0x58] sm:$0xf]
    %v102 = vld [vmem:[#allocation2 + $0x5c] sm:$0xf]
    %v103 = vld [vmem:[#allocation2 + $0x60] sm:$0xf]
    %v104 = vld [vmem:[#allocation2 + $0x64] sm:$0xf]
    %v105 = vld [vmem:[#allocation2 + $0x68] sm:$0xf]
    %v106 = vld [vmem:[#allocation2 + $0x6c] sm:$0xf]
    %v107 = vld [vmem:[#allocation2 + $0x70] sm:$0xf]
    %v108 = vld [vmem:[#allocation2 + $0x74] sm:$0xf]
    %v109 = vld [vmem:[#allocation2 + $0x78] sm:$0xf]
    %v110 = vld [vmem:[#allocation2 + $0x7c] sm:$0xf]
    %v111 = vld [vmem:[#allocation2 + $0x80] sm:$0xf]
    %v112 = vld [vmem:[#allocation2 + $0x84] sm:$0xf]
    %v113 = vld [vmem:[#allocation2 + $0x88] sm:$0xf]
    %v114 = vld [vmem:[#allocation2 + $0x8c] sm:$0xf]
    %v115 = vld [vmem:[#allocation2 + $0x90] sm:$0xf]
    %v116 = vld [vmem:[#allocation2 + $0x94] sm:$0xf]
    %v117 = vld [vmem:[#allocation2 + $0x98] sm:$0xf]
    %v118 = vld [vmem:[#allocation2 + $0x9c] sm:$0xf]
    %v119 = vld [vmem:[#allocation2 + $0xa0] sm:$0xf]
    %v120 = vld [vmem:[#allocation2 + $0xa4] sm:$0xf]
    %v121 = vld [vmem:[#allocation2 + $0xa8] sm:$0xf]
    %v122 = vld [vmem:[#allocation2 + $0xac] sm:$0xf]
    %v123 = vld [vmem:[#allocation2 + $0xb0] sm:$0xf]
    %v124 = vld [vmem:[#allocation2 + $0xb4] sm:$0xf]
    %v125 = vld [vmem:[#allocation2 + $0xb8] sm:$0xf]
    %v126 = vld [vmem:[#allocation2 + $0xbc] sm:$0xf]
    %v127 = vld [vmem:[#allocation2 + $0xc0] sm:$0xf]
    %v128 = vld [vmem:[#allocation2 + $0xc4] sm:$0xf]
    %v129 = vld [vmem:[#allocation2 + $0xc8] sm:$0xf]
    %v130 = vld [vmem:[#allocation2 + $0xcc] sm:$0xf]
    %v131 = vld [vmem:[#allocation2 + $0xd0] sm:$0xf]
    %v132 = vld [vmem:[#allocation2 + $0xd4] sm:$0xf]
    %v133 = vld [vmem:[#allocation2 + $0xd8] sm:$0xf]
    %v134 = vld [vmem:[#allocation2 + $0xdc] sm:$0xf]
    %v135 = vld [vmem:[#allocation2 + $0xe0] sm:$0xf]
    %v136 = vld [vmem:[#allocation2 + $0xe4] sm:$0xf]
    %v137 = vld [vmem:[#allocation2 + $0xe8] sm:$0xf]
    %v138 = vld [vmem:[#allocation2 + $0xec] sm:$0xf]
    %v139 = vld [vmem:[#allocation2 + $0xf0] sm:$0xf]
    %v140 = vld [vmem:[#allocation2 + $0xf4] sm:$0xf]
    %v141 = vld [vmem:[#allocation2 + $0xf8] sm:$0xf]
    %v142 = vld [vmem:[#allocation2 + $0xfc] sm:$0xf]
    %v143 = vld [vmem:[#allocation2 + $0x100] sm:$0xf]
    %v144 = vld [vmem:[#allocation2 + $0x104] sm:$0xf]
    %v145 = vld [vmem:[#allocation2 + $0x108] sm:$0xf]
    %v146 = vld [vmem:[#allocation2 + $0x10c] sm:$0xf]
    %v147 = vld [vmem:[#allocation2 + $0x110] sm:$0xf]
    %v148 = vld [vmem:[#allocation2 + $0x114] sm:$0xf]
    %v149 = vld [vmem:[#allocation2 + $0x118] sm:$0xf]
    %v150 = vld [vmem:[#allocation2 + $0x11c] sm:$0xf]
    %v151 = vld [vmem:[#allocation2 + $0x120] sm:$0xf]
    %v152 = vld [vmem:[#allocation2 + $0x124] sm:$0xf]
    %v153 = vld [vmem:[#allocation2 + $0x128] sm:$0xf]
    %v154 = vld [vmem:[#allocation2 + $0x12c] sm:$0xf]
    %v155 = vld [vmem:[#allocation2 + $0x130] sm:$0xf]
    %v156 = vld [vmem:[#allocation2 + $0x134] sm:$0xf]
    %v157 = vld [vmem:[#allocation2 + $0x138] sm:$0xf]
    %v158 = vld [vmem:[#allocation2 + $0x13c] sm:$0xf]
    %v159 = vld [vmem:[%s4] sm:$0x1]
    %v161 = vlaneseq
    %v162 = vshrl.u32 %v161, 7
    %v163 = vsub.s32 0, %v162
    %v164 = vrot.slane %v78, %v163
    %v169 = vunpack.c.l.b16 %v75
    %v170 = vunpack.c.l.b16 %v76
    %v171 = vunpack.c.l.b16 %v77
    %v172 = vpack.c.b16 %v170, %v169
    %v173 = vpack.c.b16 %v171, %v171
    %vm175 = vcmask 162816
    %v177 = vsel %vm175, %v74, 0
    %vm179 = vcmask 1041408
    %v181 = vsel %vm179, %v173, 0
    %183 = vmatprep.subr.bf16.mxu0 0
    %184 = vmatpush1.bf16.msra.mxu0 %v172
    %185 = vmatprep.subr.bf16.mxu0 0
    %186 = vmatpush1.bf16.msra.mxu0 %v181
    %187 = vmatprep.subr.bf16.mxu0 0
    %188 = vmatpush1.bf16.msra.mxu0 0
    %189 = vmatprep.subr.bf16.mxu0 0
    %190 = vmatpush1.bf16.msra.mxu0 0
    %191 = vmatprep.subr.bf16.mxu0 0
    %192 = vmatpush1.bf16.msra.mxu0 0
    %193 = vmatprep.subr.bf16.mxu0 0
    %194 = vmatpush1.bf16.msra.mxu0 0
    %195 = vmatprep.subr.bf16.mxu0 0
    %196 = vmatpush1.bf16.msra.mxu0 0
    %197 = vmatprep.subr.bf16.mxu0 0
    %198 = vmatpush1.bf16.msra.mxu0 0
    %199 = vmatprep.subr.bf16.mxu0 0
    %200 = vmatpush1.bf16.msra.mxu0 0
    %201 = vmatprep.subr.bf16.mxu0 0
    %202 = vmatpush1.bf16.msra.mxu0 0
    %203 = vmatprep.subr.bf16.mxu0 0
    %204 = vmatpush1.bf16.msra.mxu0 0
    %205 = vmatprep.subr.bf16.mxu0 0
    %206 = vmatpush1.bf16.msra.mxu0 0
    %207 = vmatprep.subr.bf16.mxu0 0
    %208 = vmatpush1.bf16.msra.mxu0 0
    %209 = vmatprep.subr.bf16.mxu0 0
    %210 = vmatpush1.bf16.msra.mxu0 0
    %211 = vmatprep.subr.bf16.mxu0 0
    %212 = vmatpush1.bf16.msra.mxu0 0
    %213 = vmatprep.subr.bf16.mxu0 0
    %214 = vmatpush1.bf16.msra.mxu0 0
    %215 = vmatprep.mubr.bf16.mxu0 0
    %216 = vmatmul.mubr.bf16.gmra.mrb[0].mxu0 %v177
    %v217 = vpop.f32.mrb[0].mxu0
    %v218 = vadd.f32 %v164, %v217
    %v219 = vpop.f32.mrb[0].mxu0
    %v220 = vpop.f32.mrb[0].mxu0
    %v221 = vpop.f32.mrb[0].mxu0
    %222 = vdwg.mxu0
    %v223 = vmax.f32 %v218, 0.0
    %v224 = vpack.c.bf16 %v223, %v223
    %v226 = vunpack.c.l.b16 %v74
    %v227 = vpack.c.b16 %v226, %v226
    %228 = vrot.lane.b32.xlu0 %v227, 124
    %v229 = vpop.permute.xlu0 %228
    %v231 = vsel %vm175, %v229, 0
    %233 = vmatprep.subr.bf16.mxu0 0
    %234 = vmatpush1.bf16.msra.mxu0 %v172
    %235 = vmatprep.subr.bf16.mxu0 0
    %236 = vmatpush1.bf16.msra.mxu0 %v181
    %237 = vmatprep.subr.bf16.mxu0 0
    %238 = vmatpush1.bf16.msra.mxu0 0
    %239 = vmatprep.subr.bf16.mxu0 0
    %240 = vmatpush1.bf16.msra.mxu0 0
    %241 = vmatprep.subr.bf16.mxu0 0
    %242 = vmatpush1.bf16.msra.mxu0 0
    %243 = vmatprep.subr.bf16.mxu0 0
    %244 = vmatpush1.bf16.msra.mxu0 0
    %245 = vmatprep.subr.bf16.mxu0 0
    %246 = vmatpush1.bf16.msra.mxu0 0
    %247 = vmatprep.subr.bf16.mxu0 0
    %248 = vmatpush1.bf16.msra.mxu0 0
    %249 = vmatprep.subr.bf16.mxu0 0
    %250 = vmatpush1.bf16.msra.mxu0 0
    %251 = vmatprep.subr.bf16.mxu0 0
    %252 = vmatpush1.bf16.msra.mxu0 0
    %253 = vmatprep.subr.bf16.mxu0 0
    %254 = vmatpush1.bf16.msra.mxu0 0
    %255 = vmatprep.subr.bf16.mxu0 0
    %256 = vmatpush1.bf16.msra.mxu0 0
    %257 = vmatprep.subr.bf16.mxu0 0
    %258 = vmatpush1.bf16.msra.mxu0 0
    %259 = vmatprep.subr.bf16.mxu0 0
    %260 = vmatpush1.bf16.msra.mxu0 0
    %261 = vmatprep.subr.bf16.mxu0 0
    %262 = vmatpush1.bf16.msra.mxu0 0
    %263 = vmatprep.subr.bf16.mxu0 0
    %264 = vmatpush1.bf16.msra.mxu0 0
    %265 = vmatprep.mubr.bf16.mxu0 0
    %266 = vmatmul.mubr.bf16.gmra.mrb[0].mxu0 %v231
    %v267 = vpop.f32.mrb[0].mxu0
    %v268 = vadd.f32 %v164, %v267
    %v269 = vpop.f32.mrb[0].mxu0
    %v270 = vpop.f32.mrb[0].mxu0
    %v271 = vpop.f32.mrb[0].mxu0
    %272 = vdwg.mxu0
    %v273 = vmax.f32 %v268, 0.0
    %v274 = vpack.c.bf16 %v273, %v273
    %275 = vrot.lane.b32.xlu0 %v227, 120
    %v276 = vpop.permute.xlu0 %275
    %v278 = vsel %vm175, %v276, 0
    %280 = vmatprep.subr.bf16.mxu0 0
    %281 = vmatpush1.bf16.msra.mxu0 %v172
    %282 = vmatprep.subr.bf16.mxu0 0
    %283 = vmatpush1.bf16.msra.mxu0 %v181
    %284 = vmatprep.subr.bf16.mxu0 0
    %285 = vmatpush1.bf16.msra.mxu0 0
    %286 = vmatprep.subr.bf16.mxu0 0
    %287 = vmatpush1.bf16.msra.mxu0 0
    %288 = vmatprep.subr.bf16.mxu0 0
    %289 = vmatpush1.bf16.msra.mxu0 0
    %290 = vmatprep.subr.bf16.mxu0 0
    %291 = vmatpush1.bf16.msra.mxu0 0
    %292 = vmatprep.subr.bf16.mxu0 0
    %293 = vmatpush1.bf16.msra.mxu0 0
    %294 = vmatprep.subr.bf16.mxu0 0
    %295 = vmatpush1.bf16.msra.mxu0 0
    %296 = vmatprep.subr.bf16.mxu0 0
    %297 = vmatpush1.bf16.msra.mxu0 0
    %298 = vmatprep.subr.bf16.mxu0 0
    %299 = vmatpush1.bf16.msra.mxu0 0
    %300 = vmatprep.subr.bf16.mxu0 0
    %301 = vmatpush1.bf16.msra.mxu0 0
    %302 = vmatprep.subr.bf16.mxu0 0
    %303 = vmatpush1.bf16.msra.mxu0 0
    %304 = vmatprep.subr.bf16.mxu0 0
    %305 = vmatpush1.bf16.msra.mxu0 0
    %306 = vmatprep.subr.bf16.mxu0 0
    %307 = vmatpush1.bf16.msra.mxu0 0
    %308 = vmatprep.subr.bf16.mxu0 0
    %309 = vmatpush1.bf16.msra.mxu0 0
    %310 = vmatprep.subr.bf16.mxu0 0
    %311 = vmatpush1.bf16.msra.mxu0 0
    %312 = vmatprep.mubr.bf16.mxu0 0
    %313 = vmatmul.mubr.bf16.gmra.mrb[0].mxu0 %v278
    %v314 = vpop.f32.mrb[0].mxu0
    %v315 = vadd.f32 %v164, %v314
    %v316 = vpop.f32.mrb[0].mxu0
    %v317 = vpop.f32.mrb[0].mxu0
    %v318 = vpop.f32.mrb[0].mxu0
    %319 = vdwg.mxu0
    %v320 = vmax.f32 %v315, 0.0
    %v321 = vpack.c.bf16 %v320, %v320
    %322 = vrot.lane.b32.xlu0 %v227, 116
    %v323 = vpop.permute.xlu0 %322
    %v325 = vsel %vm175, %v323, 0
    %327 = vmatprep.subr.bf16.mxu0 0
    %328 = vmatpush1.bf16.msra.mxu0 %v172
    %329 = vmatprep.subr.bf16.mxu0 0
    %330 = vmatpush1.bf16.msra.mxu0 %v181
    %331 = vmatprep.subr.bf16.mxu0 0
    %332 = vmatpush1.bf16.msra.mxu0 0
    %333 = vmatprep.subr.bf16.mxu0 0
    %334 = vmatpush1.bf16.msra.mxu0 0
    %335 = vmatprep.subr.bf16.mxu0 0
    %336 = vmatpush1.bf16.msra.mxu0 0
    %337 = vmatprep.subr.bf16.mxu0 0
    %338 = vmatpush1.bf16.msra.mxu0 0
    %339 = vmatprep.subr.bf16.mxu0 0
    %340 = vmatpush1.bf16.msra.mxu0 0
    %341 = vmatprep.subr.bf16.mxu0 0
    %342 = vmatpush1.bf16.msra.mxu0 0
    %343 = vmatprep.subr.bf16.mxu0 0
    %344 = vmatpush1.bf16.msra.mxu0 0
    %345 = vmatprep.subr.bf16.mxu0 0
    %346 = vmatpush1.bf16.msra.mxu0 0
    %347 = vmatprep.subr.bf16.mxu0 0
    %348 = vmatpush1.bf16.msra.mxu0 0
    %349 = vmatprep.subr.bf16.mxu0 0
    %350 = vmatpush1.bf16.msra.mxu0 0
    %351 = vmatprep.subr.bf16.mxu0 0
    %352 = vmatpush1.bf16.msra.mxu0 0
    %353 = vmatprep.subr.bf16.mxu0 0
    %354 = vmatpush1.bf16.msra.mxu0 0
    %355 = vmatprep.subr.bf16.mxu0 0
    %356 = vmatpush1.bf16.msra.mxu0 0
    %357 = vmatprep.subr.bf16.mxu0 0
    %358 = vmatpush1.bf16.msra.mxu0 0
    %359 = vmatprep.mubr.bf16.mxu0 0
    %360 = vmatmul.mubr.bf16.gmra.mrb[0].mxu0 %v325
    %v361 = vpop.f32.mrb[0].mxu0
    %v362 = vadd.f32 %v164, %v361
    %v363 = vpop.f32.mrb[0].mxu0
    %v364 = vpop.f32.mrb[0].mxu0
    %v365 = vpop.f32.mrb[0].mxu0
    %366 = vdwg.mxu0
    %v367 = vmax.f32 %v362, 0.0
    %v368 = vpack.c.bf16 %v367, %v367
    %369 = vrot.lane.b32.xlu0 %v227, 112
    %v370 = vpop.permute.xlu0 %369
    %v372 = vsel %vm175, %v370, 0
    %374 = vmatprep.subr.bf16.mxu0 0
    %375 = vmatpush1.bf16.msra.mxu0 %v172
    %376 = vmatprep.subr.bf16.mxu0 0
    %377 = vmatpush1.bf16.msra.mxu0 %v181
    %378 = vmatprep.subr.bf16.mxu0 0
    %379 = vmatpush1.bf16.msra.mxu0 0
    %380 = vmatprep.subr.bf16.mxu0 0
    %381 = vmatpush1.bf16.msra.mxu0 0
    %382 = vmatprep.subr.bf16.mxu0 0
    %383 = vmatpush1.bf16.msra.mxu0 0
    %384 = vmatprep.subr.bf16.mxu0 0
    %385 = vmatpush1.bf16.msra.mxu0 0
    %386 = vmatprep.subr.bf16.mxu0 0
    %387 = vmatpush1.bf16.msra.mxu0 0
    %388 = vmatprep.subr.bf16.mxu0 0
    %389 = vmatpush1.bf16.msra.mxu0 0
    %390 = vmatprep.subr.bf16.mxu0 0
    %391 = vmatpush1.bf16.msra.mxu0 0
    %392 = vmatprep.subr.bf16.mxu0 0
    %393 = vmatpush1.bf16.msra.mxu0 0
    %394 = vmatprep.subr.bf16.mxu0 0
    %395 = vmatpush1.bf16.msra.mxu0 0
    %396 = vmatprep.subr.bf16.mxu0 0
    %397 = vmatpush1.bf16.msra.mxu0 0
    %398 = vmatprep.subr.bf16.mxu0 0
    %399 = vmatpush1.bf16.msra.mxu0 0
    %400 = vmatprep.subr.bf16.mxu0 0
    %401 = vmatpush1.bf16.msra.mxu0 0
    %402 = vmatprep.subr.bf16.mxu0 0
    %403 = vmatpush1.bf16.msra.mxu0 0
    %404 = vmatprep.subr.bf16.mxu0 0
    %405 = vmatpush1.bf16.msra.mxu0 0
    %406 = vmatprep.mubr.bf16.mxu0 0
    %407 = vmatmul.mubr.bf16.gmra.mrb[0].mxu0 %v372
    %v408 = vpop.f32.mrb[0].mxu0
    %v409 = vadd.f32 %v164, %v408
    %v410 = vpop.f32.mrb[0].mxu0
    %v411 = vpop.f32.mrb[0].mxu0
    %v412 = vpop.f32.mrb[0].mxu0
    %413 = vdwg.mxu0
    %v414 = vmax.f32 %v409, 0.0
    %v415 = vpack.c.bf16 %v414, %v414
    %416 = vrot.lane.b32.xlu0 %v227, 108
    %v417 = vpop.permute.xlu0 %416
    %v419 = vsel %vm175, %v417, 0
    %421 = vmatprep.subr.bf16.mxu0 0
    %422 = vmatpush1.bf16.msra.mxu0 %v172
    %423 = vmatprep.subr.bf16.mxu0 0
    %424 = vmatpush1.bf16.msra.mxu0 %v181
    %425 = vmatprep.subr.bf16.mxu0 0
    %426 = vmatpush1.bf16.msra.mxu0 0
    %427 = vmatprep.subr.bf16.mxu0 0
    %428 = vmatpush1.bf16.msra.mxu0 0
    %429 = vmatprep.subr.bf16.mxu0 0
    %430 = vmatpush1.bf16.msra.mxu0 0
    %431 = vmatprep.subr.bf16.mxu0 0
    %432 = vmatpush1.bf16.msra.mxu0 0
    %433 = vmatprep.subr.bf16.mxu0 0
    %434 = vmatpush1.bf16.msra.mxu0 0
    %435 = vmatprep.subr.bf16.mxu0 0
    %436 = vmatpush1.bf16.msra.mxu0 0
    %437 = vmatprep.subr.bf16.mxu0 0
    %438 = vmatpush1.bf16.msra.mxu0 0
    %439 = vmatprep.subr.bf16.mxu0 0
    %440 = vmatpush1.bf16.msra.mxu0 0
    %441 = vmatprep.subr.bf16.mxu0 0
    %442 = vmatpush1.bf16.msra.mxu0 0
    %443 = vmatprep.subr.bf16.mxu0 0
    %444 = vmatpush1.bf16.msra.mxu0 0
    %445 = vmatprep.subr.bf16.mxu0 0
    %446 = vmatpush1.bf16.msra.mxu0 0
    %447 = vmatprep.subr.bf16.mxu0 0
    %448 = vmatpush1.bf16.msra.mxu0 0
    %449 = vmatprep.subr.bf16.mxu0 0
    %450 = vmatpush1.bf16.msra.mxu0 0
    %451 = vmatprep.subr.bf16.mxu0 0
    %452 = vmatpush1.bf16.msra.mxu0 0
    %453 = vmatprep.mubr.bf16.mxu0 0
    %454 = vmatmul.mubr.bf16.gmra.mrb[0].mxu0 %v419
    %v455 = vpop.f32.mrb[0].mxu0
    %v456 = vadd.f32 %v164, %v455
    %v457 = vpop.f32.mrb[0].mxu0
    %v458 = vpop.f32.mrb[0].mxu0
    %v459 = vpop.f32.mrb[0].mxu0
    %460 = vdwg.mxu0
    %v461 = vmax.f32 %v456, 0.0
    %v462 = vpack.c.bf16 %v461, %v461
    %463 = vrot.lane.b32.xlu0 %v227, 104
    %v464 = vpop.permute.xlu0 %463
    %v466 = vsel %vm175, %v464, 0
    %468 = vmatprep.subr.bf16.mxu0 0
    %469 = vmatpush1.bf16.msra.mxu0 %v172
    %470 = vmatprep.subr.bf16.mxu0 0
    %471 = vmatpush1.bf16.msra.mxu0 %v181
    %472 = vmatprep.subr.bf16.mxu0 0
    %473 = vmatpush1.bf16.msra.mxu0 0
    %474 = vmatprep.subr.bf16.mxu0 0
    %475 = vmatpush1.bf16.msra.mxu0 0
    %476 = vmatprep.subr.bf16.mxu0 0
    %477 = vmatpush1.bf16.msra.mxu0 0
    %478 = vmatprep.subr.bf16.mxu0 0
    %479 = vmatpush1.bf16.msra.mxu0 0
    %480 = vmatprep.subr.bf16.mxu0 0
    %481 = vmatpush1.bf16.msra.mxu0 0
    %482 = vmatprep.subr.bf16.mxu0 0
    %483 = vmatpush1.bf16.msra.mxu0 0
    %484 = vmatprep.subr.bf16.mxu0 0
    %485 = vmatpush1.bf16.msra.mxu0 0
    %486 = vmatprep.subr.bf16.mxu0 0
    %487 = vmatpush1.bf16.msra.mxu0 0
    %488 = vmatprep.subr.bf16.mxu0 0
    %489 = vmatpush1.bf16.msra.mxu0 0
    %490 = vmatprep.subr.bf16.mxu0 0
    %491 = vmatpush1.bf16.msra.mxu0 0
    %492 = vmatprep.subr.bf16.mxu0 0
    %493 = vmatpush1.bf16.msra.mxu0 0
    %494 = vmatprep.subr.bf16.mxu0 0
    %495 = vmatpush1.bf16.msra.mxu0 0
    %496 = vmatprep.subr.bf16.mxu0 0
    %497 = vmatpush1.bf16.msra.mxu0 0
    %498 = vmatprep.subr.bf16.mxu0 0
    %499 = vmatpush1.bf16.msra.mxu0 0
    %500 = vmatprep.mubr.bf16.mxu0 0
    %501 = vmatmul.mubr.bf16.gmra.mrb[0].mxu0 %v466
    %v502 = vpop.f32.mrb[0].mxu0
    %v503 = vadd.f32 %v164, %v502
    %v504 = vpop.f32.mrb[0].mxu0
    %v505 = vpop.f32.mrb[0].mxu0
    %v506 = vpop.f32.mrb[0].mxu0
    %507 = vdwg.mxu0
    %v508 = vmax.f32 %v503, 0.0
    %v509 = vpack.c.bf16 %v508, %v508
    %510 = vrot.lane.b32.xlu0 %v227, 100
    %v511 = vpop.permute.xlu0 %510
    %v513 = vsel %vm175, %v511, 0
    %515 = vmatprep.subr.bf16.mxu0 0
    %516 = vmatpush1.bf16.msra.mxu0 %v172
    %517 = vmatprep.subr.bf16.mxu0 0
    %518 = vmatpush1.bf16.msra.mxu0 %v181
    %519 = vmatprep.subr.bf16.mxu0 0
    %520 = vmatpush1.bf16.msra.mxu0 0
    %521 = vmatprep.subr.bf16.mxu0 0
    %522 = vmatpush1.bf16.msra.mxu0 0
    %523 = vmatprep.subr.bf16.mxu0 0
    %524 = vmatpush1.bf16.msra.mxu0 0
    %525 = vmatprep.subr.bf16.mxu0 0
    %526 = vmatpush1.bf16.msra.mxu0 0
    %527 = vmatprep.subr.bf16.mxu0 0
    %528 = vmatpush1.bf16.msra.mxu0 0
    %529 = vmatprep.subr.bf16.mxu0 0
    %530 = vmatpush1.bf16.msra.mxu0 0
    %531 = vmatprep.subr.bf16.mxu0 0
    %532 = vmatpush1.bf16.msra.mxu0 0
    %533 = vmatprep.subr.bf16.mxu0 0
    %534 = vmatpush1.bf16.msra.mxu0 0
    %535 = vmatprep.subr.bf16.mxu0 0
    %536 = vmatpush1.bf16.msra.mxu0 0
    %537 = vmatprep.subr.bf16.mxu0 0
    %538 = vmatpush1.bf16.msra.mxu0 0
    %539 = vmatprep.subr.bf16.mxu0 0
    %540 = vmatpush1.bf16.msra.mxu0 0
    %541 = vmatprep.subr.bf16.mxu0 0
    %542 = vmatpush1.bf16.msra.mxu0 0
    %543 = vmatprep.subr.bf16.mxu0 0
    %544 = vmatpush1.bf16.msra.mxu0 0
    %545 = vmatprep.subr.bf16.mxu0 0
    %546 = vmatpush1.bf16.msra.mxu0 0
    %547 = vmatprep.mubr.bf16.mxu0 0
    %548 = vmatmul.mubr.bf16.gmra.mrb[0].mxu0 %v513
    %v549 = vpop.f32.mrb[0].mxu0
    %v550 = vadd.f32 %v164, %v549
    %v551 = vpop.f32.mrb[0].mxu0
    %v552 = vpop.f32.mrb[0].mxu0
    %v553 = vpop.f32.mrb[0].mxu0
    %554 = vdwg.mxu0
    %v555 = vmax.f32 %v550, 0.0
    %v556 = vpack.c.bf16 %v555, %v555
    %557 = vrot.lane.b32.xlu0 %v227, 96
    %v558 = vpop.permute.xlu0 %557
    %v560 = vsel %vm175, %v558, 0
    %562 = vmatprep.subr.bf16.mxu0 0
    %563 = vmatpush1.bf16.msra.mxu0 %v172
    %564 = vmatprep.subr.bf16.mxu0 0
    %565 = vmatpush1.bf16.msra.mxu0 %v181
    %566 = vmatprep.subr.bf16.mxu0 0
    %567 = vmatpush1.bf16.msra.mxu0 0
    %568 = vmatprep.subr.bf16.mxu0 0
    %569 = vmatpush1.bf16.msra.mxu0 0
    %570 = vmatprep.subr.bf16.mxu0 0
    %571 = vmatpush1.bf16.msra.mxu0 0
    %572 = vmatprep.subr.bf16.mxu0 0
    %573 = vmatpush1.bf16.msra.mxu0 0
    %574 = vmatprep.subr.bf16.mxu0 0
    %575 = vmatpush1.bf16.msra.mxu0 0
    %576 = vmatprep.subr.bf16.mxu0 0
    %577 = vmatpush1.bf16.msra.mxu0 0
    %578 = vmatprep.subr.bf16.mxu0 0
    %579 = vmatpush1.bf16.msra.mxu0 0
    %580 = vmatprep.subr.bf16.mxu0 0
    %581 = vmatpush1.bf16.msra.mxu0 0
    %582 = vmatprep.subr.bf16.mxu0 0
    %583 = vmatpush1.bf16.msra.mxu0 0
    %584 = vmatprep.subr.bf16.mxu0 0
    %585 = vmatpush1.bf16.msra.mxu0 0
    %586 = vmatprep.subr.bf16.mxu0 0
    %587 = vmatpush1.bf16.msra.mxu0 0
    %588 = vmatprep.subr.bf16.mxu0 0
    %589 = vmatpush1.bf16.msra.mxu0 0
    %590 = vmatprep.subr.bf16.mxu0 0
    %591 = vmatpush1.bf16.msra.mxu0 0
    %592 = vmatprep.subr.bf16.mxu0 0
    %593 = vmatpush1.bf16.msra.mxu0 0
    %594 = vmatprep.mubr.bf16.mxu0 0
    %595 = vmatmul.mubr.bf16.gmra.mrb[0].mxu0 %v560
    %v596 = vpop.f32.mrb[0].mxu0
    %v597 = vadd.f32 %v164, %v596
    %v598 = vpop.f32.mrb[0].mxu0
    %v599 = vpop.f32.mrb[0].mxu0
    %v600 = vpop.f32.mrb[0].mxu0
    %601 = vdwg.mxu0
    %v602 = vmax.f32 %v597, 0.0
    %v603 = vpack.c.bf16 %v602, %v602
    %604 = vrot.lane.b32.xlu0 %v227, 92
    %v605 = vpop.permute.xlu0 %604
    %v607 = vsel %vm175, %v605, 0
    %609 = vmatprep.subr.bf16.mxu0 0
    %610 = vmatpush1.bf16.msra.mxu0 %v172
    %611 = vmatprep.subr.bf16.mxu0 0
    %612 = vmatpush1.bf16.msra.mxu0 %v181
    %613 = vmatprep.subr.bf16.mxu0 0
    %614 = vmatpush1.bf16.msra.mxu0 0
    %615 = vmatprep.subr.bf16.mxu0 0
    %616 = vmatpush1.bf16.msra.mxu0 0
    %617 = vmatprep.subr.bf16.mxu0 0
    %618 = vmatpush1.bf16.msra.mxu0 0
    %619 = vmatprep.subr.bf16.mxu0 0
    %620 = vmatpush1.bf16.msra.mxu0 0
    %621 = vmatprep.subr.bf16.mxu0 0
    %622 = vmatpush1.bf16.msra.mxu0 0
    %623 = vmatprep.subr.bf16.mxu0 0
    %624 = vmatpush1.bf16.msra.mxu0 0
    %625 = vmatprep.subr.bf16.mxu0 0
    %626 = vmatpush1.bf16.msra.mxu0 0
    %627 = vmatprep.subr.bf16.mxu0 0
    %628 = vmatpush1.bf16.msra.mxu0 0
    %629 = vmatprep.subr.bf16.mxu0 0
    %630 = vmatpush1.bf16.msra.mxu0 0
    %631 = vmatprep.subr.bf16.mxu0 0
    %632 = vmatpush1.bf16.msra.mxu0 0
    %633 = vmatprep.subr.bf16.mxu0 0
    %634 = vmatpush1.bf16.msra.mxu0 0
    %635 = vmatprep.subr.bf16.mxu0 0
    %636 = vmatpush1.bf16.msra.mxu0 0
    %637 = vmatprep.subr.bf16.mxu0 0
    %638 = vmatpush1.bf16.msra.mxu0 0
    %639 = vmatprep.subr.bf16.mxu0 0
    %640 = vmatpush1.bf16.msra.mxu0 0
    %641 = vmatprep.mubr.bf16.mxu0 0
    %642 = vmatmul.mubr.bf16.gmra.mrb[0].mxu0 %v607
    %v643 = vpop.f32.mrb[0].mxu0
    %v644 = vadd.f32 %v164, %v643
    %v645 = vpop.f32.mrb[0].mxu0
    %v646 = vpop.f32.mrb[0].mxu0
    %v647 = vpop.f32.mrb[0].mxu0
    %648 = vdwg.mxu0
    %v649 = vmax.f32 %v644, 0.0
    %v650 = vpack.c.bf16 %v649, %v649
    %651 = vrot.lane.b32.xlu0 %v227, 88
    %v652 = vpop.permute.xlu0 %651
    %v654 = vsel %vm175, %v652, 0
    %656 = vmatprep.subr.bf16.mxu0 0
    %657 = vmatpush1.bf16.msra.mxu0 %v172
    %658 = vmatprep.subr.bf16.mxu0 0
    %659 = vmatpush1.bf16.msra.mxu0 %v181
    %660 = vmatprep.subr.bf16.mxu0 0
    %661 = vmatpush1.bf16.msra.mxu0 0
    %662 = vmatprep.subr.bf16.mxu0 0
    %663 = vmatpush1.bf16.msra.mxu0 0
    %664 = vmatprep.subr.bf16.mxu0 0
    %665 = vmatpush1.bf16.msra.mxu0 0
    %666 = vmatprep.subr.bf16.mxu0 0
    %667 = vmatpush1.bf16.msra.mxu0 0
    %668 = vmatprep.subr.bf16.mxu0 0
    %669 = vmatpush1.bf16.msra.mxu0 0
    %670 = vmatprep.subr.bf16.mxu0 0
    %671 = vmatpush1.bf16.msra.mxu0 0
    %672 = vmatprep.subr.bf16.mxu0 0
    %673 = vmatpush1.bf16.msra.mxu0 0
    %674 = vmatprep.subr.bf16.mxu0 0
    %675 = vmatpush1.bf16.msra.mxu0 0
    %676 = vmatprep.subr.bf16.mxu0 0
    %677 = vmatpush1.bf16.msra.mxu0 0
    %678 = vmatprep.subr.bf16.mxu0 0
    %679 = vmatpush1.bf16.msra.mxu0 0
    %680 = vmatprep.subr.bf16.mxu0 0
    %681 = vmatpush1.bf16.msra.mxu0 0
    %682 = vmatprep.subr.bf16.mxu0 0
    %683 = vmatpush1.bf16.msra.mxu0 0
    %684 = vmatprep.subr.bf16.mxu0 0
    %685 = vmatpush1.bf16.msra.mxu0 0
    %686 = vmatprep.subr.bf16.mxu0 0
    %687 = vmatpush1.bf16.msra.mxu0 0
    %688 = vmatprep.mubr.bf16.mxu0 0
    %689 = vmatmul.mubr.bf16.gmra.mrb[0].mxu0 %v654
    %v690 = vpop.f32.mrb[0].mxu0
    %v691 = vadd.f32 %v164, %v690
    %v692 = vpop.f32.mrb[0].mxu0
    %v693 = vpop.f32.mrb[0].mxu0
    %v694 = vpop.f32.mrb[0].mxu0
    %695 = vdwg.mxu0
    %v696 = vmax.f32 %v691, 0.0
    %v697 = vpack.c.bf16 %v696, %v696
    %698 = vrot.lane.b32.xlu0 %v227, 84
    %v699 = vpop.permute.xlu0 %698
    %v701 = vsel %vm175, %v699, 0
    %703 = vmatprep.subr.bf16.mxu0 0
    %704 = vmatpush1.bf16.msra.mxu0 %v172
    %705 = vmatprep.subr.bf16.mxu0 0
    %706 = vmatpush1.bf16.msra.mxu0 %v181
    %707 = vmatprep.subr.bf16.mxu0 0
    %708 = vmatpush1.bf16.msra.mxu0 0
    %709 = vmatprep.subr.bf16.mxu0 0
    %710 = vmatpush1.bf16.msra.mxu0 0
    %711 = vmatprep.subr.bf16.mxu0 0
    %712 = vmatpush1.bf16.msra.mxu0 0
    %713 = vmatprep.subr.bf16.mxu0 0
    %714 = vmatpush1.bf16.msra.mxu0 0
    %715 = vmatprep.subr.bf16.mxu0 0
    %716 = vmatpush1.bf16.msra.mxu0 0
    %717 = vmatprep.subr.bf16.mxu0 0
    %718 = vmatpush1.bf16.msra.mxu0 0
    %719 = vmatprep.subr.bf16.mxu0 0
    %720 = vmatpush1.bf16.msra.mxu0 0
    %721 = vmatprep.subr.bf16.mxu0 0
    %722 = vmatpush1.bf16.msra.mxu0 0
    %723 = vmatprep.subr.bf16.mxu0 0
    %724 = vmatpush1.bf16.msra.mxu0 0
    %725 = vmatprep.subr.bf16.mxu0 0
    %726 = vmatpush1.bf16.msra.mxu0 0
    %727 = vmatprep.subr.bf16.mxu0 0
    %728 = vmatpush1.bf16.msra.mxu0 0
    %729 = vmatprep.subr.bf16.mxu0 0
    %730 = vmatpush1.bf16.msra.mxu0 0
    %731 = vmatprep.subr.bf16.mxu0 0
    %732 = vmatpush1.bf16.msra.mxu0 0
    %733 = vmatprep.subr.bf16.mxu0 0
    %734 = vmatpush1.bf16.msra.mxu0 0
    %735 = vmatprep.mubr.bf16.mxu0 0
    %736 = vmatmul.mubr.bf16.gmra.mrb[0].mxu0 %v701
    %v737 = vpop.f32.mrb[0].mxu0
    %v738 = vadd.f32 %v164, %v737
    %v739 = vpop.f32.mrb[0].mxu0
    %v740 = vpop.f32.mrb[0].mxu0
    %v741 = vpop.f32.mrb[0].mxu0
    %742 = vdwg.mxu0
    %v743 = vmax.f32 %v738, 0.0
    %v744 = vpack.c.bf16 %v743, %v743
    %v746 = vlaneseq
    %v747 = vshrl.u32 %v746, 7
    %v748 = vsub.s32 0, %v747
    %v749 = vrot.slane %v159, %v748
    %v831 = vunpack.c.l.b16 %v79
    %v832 = vunpack.c.l.b16 %v80
    %v833 = vunpack.c.l.b16 %v81
    %v834 = vunpack.c.l.b16 %v82
    %v835 = vunpack.c.l.b16 %v83
    %v836 = vunpack.c.l.b16 %v84
    %v837 = vunpack.c.l.b16 %v85
    %v838 = vunpack.c.l.b16 %v86
    %v839 = vunpack.c.l.b16 %v87
    %v840 = vunpack.c.l.b16 %v88
    %v841 = vunpack.c.l.b16 %v89
    %v842 = vunpack.c.l.b16 %v90
    %v843 = vunpack.c.l.b16 %v91
    %v844 = vunpack.c.l.b16 %v92
    %v845 = vunpack.c.l.b16 %v93
    %v846 = vunpack.c.l.b16 %v94
    %v847 = vunpack.c.l.b16 %v95
    %v848 = vunpack.c.l.b16 %v96
    %v849 = vunpack.c.l.b16 %v97
    %v850 = vunpack.c.l.b16 %v98
    %v851 = vunpack.c.l.b16 %v99
    %v852 = vunpack.c.l.b16 %v100
    %v853 = vunpack.c.l.b16 %v101
    %v854 = vunpack.c.l.b16 %v102
    %v855 = vunpack.c.l.b16 %v103
    %v856 = vunpack.c.l.b16 %v104
    %v857 = vunpack.c.l.b16 %v105
    %v858 = vunpack.c.l.b16 %v106
    %v859 = vunpack.c.l.b16 %v107
    %v860 = vunpack.c.l.b16 %v108
    %v861 = vunpack.c.l.b16 %v109
    %v862 = vunpack.c.l.b16 %v110
    %v863 = vunpack.c.l.b16 %v111
    %v864 = vunpack.c.l.b16 %v112
    %v865 = vunpack.c.l.b16 %v113
    %v866 = vunpack.c.l.b16 %v114
    %v867 = vunpack.c.l.b16 %v115
    %v868 = vunpack.c.l.b16 %v116
    %v869 = vunpack.c.l.b16 %v117
    %v870 = vunpack.c.l.b16 %v118
    %v871 = vunpack.c.l.b16 %v119
    %v872 = vunpack.c.l.b16 %v120
    %v873 = vunpack.c.l.b16 %v121
    %v874 = vunpack.c.l.b16 %v122
    %v875 = vunpack.c.l.b16 %v123
    %v876 = vunpack.c.l.b16 %v124
    %v877 = vunpack.c.l.b16 %v125
    %v878 = vunpack.c.l.b16 %v126
    %v879 = vunpack.c.l.b16 %v127
    %v880 = vunpack.c.l.b16 %v128
    %v881 = vunpack.c.l.b16 %v129
    %v882 = vunpack.c.l.b16 %v130
    %v883 = vunpack.c.l.b16 %v131
    %v884 = vunpack.c.l.b16 %v132
    %v885 = vunpack.c.l.b16 %v133
    %v886 = vunpack.c.l.b16 %v134
    %v887 = vunpack.c.l.b16 %v135
    %v888 = vunpack.c.l.b16 %v136
    %v889 = vunpack.c.l.b16 %v137
    %v890 = vunpack.c.l.b16 %v138
    %v891 = vunpack.c.l.b16 %v139
    %v892 = vunpack.c.l.b16 %v140
    %v893 = vunpack.c.l.b16 %v141
    %v894 = vunpack.c.l.b16 %v142
    %v895 = vunpack.c.l.b16 %v143
    %v896 = vunpack.c.l.b16 %v144
    %v897 = vunpack.c.l.b16 %v145
    %v898 = vunpack.c.l.b16 %v146
    %v899 = vunpack.c.l.b16 %v147
    %v900 = vunpack.c.l.b16 %v148
    %v901 = vunpack.c.l.b16 %v149
    %v902 = vunpack.c.l.b16 %v150
    %v903 = vunpack.c.l.b16 %v151
    %v904 = vunpack.c.l.b16 %v152
    %v905 = vunpack.c.l.b16 %v153
    %v906 = vunpack.c.l.b16 %v154
    %v907 = vunpack.c.l.b16 %v155
    %v908 = vunpack.c.l.b16 %v156
    %v909 = vunpack.c.l.b16 %v157
    %v910 = vunpack.c.l.b16 %v158
    %v911 = vpack.c.b16 %v832, %v831
    %v912 = vpack.c.b16 %v834, %v833
    %v913 = vpack.c.b16 %v836, %v835
    %v914 = vpack.c.b16 %v838, %v837
    %v915 = vpack.c.b16 %v840, %v839
    %v916 = vpack.c.b16 %v842, %v841
    %v917 = vpack.c.b16 %v844, %v843
    %v918 = vpack.c.b16 %v846, %v845
    %v919 = vpack.c.b16 %v848, %v847
    %v920 = vpack.c.b16 %v850, %v849
    %v921 = vpack.c.b16 %v852, %v851
    %v922 = vpack.c.b16 %v854, %v853
    %v923 = vpack.c.b16 %v856, %v855
    %v924 = vpack.c.b16 %v858, %v857
    %v925 = vpack.c.b16 %v860, %v859
    %v926 = vpack.c.b16 %v862, %v861
    %v927 = vpack.c.b16 %v864, %v863
    %v928 = vpack.c.b16 %v866, %v865
    %v929 = vpack.c.b16 %v868, %v867
    %v930 = vpack.c.b16 %v870, %v869
    %v931 = vpack.c.b16 %v872, %v871
    %v932 = vpack.c.b16 %v874, %v873
    %v933 = vpack.c.b16 %v876, %v875
    %v934 = vpack.c.b16 %v878, %v877
    %v935 = vpack.c.b16 %v880, %v879
    %v936 = vpack.c.b16 %v882, %v881
    %v937 = vpack.c.b16 %v884, %v883
    %v938 = vpack.c.b16 %v886, %v885
    %v939 = vpack.c.b16 %v888, %v887
    %v940 = vpack.c.b16 %v890, %v889
    %v941 = vpack.c.b16 %v892, %v891
    %v942 = vpack.c.b16 %v894, %v893
    %v943 = vpack.c.b16 %v896, %v895
    %v944 = vpack.c.b16 %v898, %v897
    %v945 = vpack.c.b16 %v900, %v899
    %v946 = vpack.c.b16 %v902, %v901
    %v947 = vpack.c.b16 %v904, %v903
    %v948 = vpack.c.b16 %v906, %v905
    %v949 = vpack.c.b16 %v908, %v907
    %v950 = vpack.c.b16 %v910, %v909
    %991 = vmatprep.subr.bf16.mxu0 0
    %992 = vmatpush1.bf16.msra.mxu0 %v911
    %993 = vmatprep.subr.bf16.mxu0 0
    %994 = vmatpush1.bf16.msra.mxu0 %v912
    %995 = vmatprep.subr.bf16.mxu0 0
    %996 = vmatpush1.bf16.msra.mxu0 %v913
    %997 = vmatprep.subr.bf16.mxu0 0
    %998 = vmatpush1.bf16.msra.mxu0 %v914
    %999 = vmatprep.subr.bf16.mxu0 0
    %1000 = vmatpush1.bf16.msra.mxu0 %v915
    %1001 = vmatprep.subr.bf16.mxu0 0
    %1002 = vmatpush1.bf16.msra.mxu0 %v916
    %1003 = vmatprep.subr.bf16.mxu0 0
    %1004 = vmatpush1.bf16.msra.mxu0 %v917
    %1005 = vmatprep.subr.bf16.mxu0 0
    %1006 = vmatpush1.bf16.msra.mxu0 %v918
    %1007 = vmatprep.subr.bf16.mxu0 0
    %1008 = vmatpush1.bf16.msra.mxu0 %v919
    %1009 = vmatprep.subr.bf16.mxu0 0
    %1010 = vmatpush1.bf16.msra.mxu0 %v920
    %1011 = vmatprep.subr.bf16.mxu0 0
    %1012 = vmatpush1.bf16.msra.mxu0 %v921
    %1013 = vmatprep.subr.bf16.mxu0 0
    %1014 = vmatpush1.bf16.msra.mxu0 %v922
    %1015 = vmatprep.subr.bf16.mxu0 0
    %1016 = vmatpush1.bf16.msra.mxu0 %v923
    %1017 = vmatprep.subr.bf16.mxu0 0
    %1018 = vmatpush1.bf16.msra.mxu0 %v924
    %1019 = vmatprep.subr.bf16.mxu0 0
    %1020 = vmatpush1.bf16.msra.mxu0 %v925
    %1021 = vmatprep.subr.bf16.mxu0 0
    %1022 = vmatpush1.bf16.msra.mxu0 %v926
    %1023 = vmatprep.mubr.bf16.mxu0 %v274
    %1024 = vmatmul.mubr.bf16.gmra.mrb[0].mxu0 %v224
    %v1025 = vpop.f32.mrb[0].mxu0
    %v1026 = vadd.f32 %v749, %v1025
    %v1027 = vpop.f32.mrb[0].mxu0
    %v1028 = vpop.f32.mrb[0].mxu0
    %v1029 = vpop.f32.mrb[0].mxu0
    %1030 = vdwg.mxu0
    %1031 = vmatprep.subr.bf16.mxu0 0
    %1032 = vmatpush1.bf16.msra.mxu0 %v927
    %1033 = vmatprep.subr.bf16.mxu0 0
    %1034 = vmatpush1.bf16.msra.mxu0 %v928
    %1035 = vmatprep.subr.bf16.mxu0 0
    %1036 = vmatpush1.bf16.msra.mxu0 %v929
    %1037 = vmatprep.subr.bf16.mxu0 0
    %1038 = vmatpush1.bf16.msra.mxu0 %v930
    %1039 = vmatprep.subr.bf16.mxu0 0
    %1040 = vmatpush1.bf16.msra.mxu0 %v931
    %1041 = vmatprep.subr.bf16.mxu0 0
    %1042 = vmatpush1.bf16.msra.mxu0 %v932
    %1043 = vmatprep.subr.bf16.mxu0 0
    %1044 = vmatpush1.bf16.msra.mxu0 %v933
    %1045 = vmatprep.subr.bf16.mxu0 0
    %1046 = vmatpush1.bf16.msra.mxu0 %v934
    %1047 = vmatprep.subr.bf16.mxu0 0
    %1048 = vmatpush1.bf16.msra.mxu0 %v935
    %1049 = vmatprep.subr.bf16.mxu0 0
    %1050 = vmatpush1.bf16.msra.mxu0 %v936
    %1051 = vmatprep.subr.bf16.mxu0 0
    %1052 = vmatpush1.bf16.msra.mxu0 %v937
    %1053 = vmatprep.subr.bf16.mxu0 0
    %1054 = vmatpush1.bf16.msra.mxu0 %v938
    %1055 = vmatprep.subr.bf16.mxu0 0
    %1056 = vmatpush1.bf16.msra.mxu0 %v939
    %1057 = vmatprep.subr.bf16.mxu0 0
    %1058 = vmatpush1.bf16.msra.mxu0 %v940
    %1059 = vmatprep.subr.bf16.mxu0 0
    %1060 = vmatpush1.bf16.msra.mxu0 %v941
    %1061 = vmatprep.subr.bf16.mxu0 0
    %1062 = vmatpush1.bf16.msra.mxu0 %v942
    %1063 = vmatprep.mubr.bf16.mxu0 %v368
    %1064 = vmatmul.mubr.bf16.gmra.mrb[0].mxu0 %v321
    %v1065 = vpop.f32.mrb[0].mxu0
    %v1066 = vadd.f32 %v1026, %v1065
    %v1067 = vpop.f32.mrb[0].mxu0
    %v1068 = vpop.f32.mrb[0].mxu0
    %v1069 = vpop.f32.mrb[0].mxu0
    %1070 = vdwg.mxu0
    %1071 = vmatprep.subr.bf16.mxu0 0
    %1072 = vmatpush1.bf16.msra.mxu0 %v943
    %1073 = vmatprep.subr.bf16.mxu0 0
    %1074 = vmatpush1.bf16.msra.mxu0 %v944
    %1075 = vmatprep.subr.bf16.mxu0 0
    %1076 = vmatpush1.bf16.msra.mxu0 %v945
    %1077 = vmatprep.subr.bf16.mxu0 0
    %1078 = vmatpush1.bf16.msra.mxu0 %v946
    %1079 = vmatprep.subr.bf16.mxu0 0
    %1080 = vmatpush1.bf16.msra.mxu0 %v947
    %1081 = vmatprep.subr.bf16.mxu0 0
    %1082 = vmatpush1.bf16.msra.mxu0 %v948
    %1083 = vmatprep.subr.bf16.mxu0 0
    %1084 = vmatpush1.bf16.msra.mxu0 %v949
    %1085 = vmatprep.subr.bf16.mxu0 0
    %1086 = vmatpush1.bf16.msra.mxu0 %v950
    %1087 = vmatprep.subr.bf16.mxu0 0
    %1088 = vmatpush1.bf16.msra.mxu0 0
    %1089 = vmatprep.subr.bf16.mxu0 0
    %1090 = vmatpush1.bf16.msra.mxu0 0
    %1091 = vmatprep.subr.bf16.mxu0 0
    %1092 = vmatpush1.bf16.msra.mxu0 0
    %1093 = vmatprep.subr.bf16.mxu0 0
    %1094 = vmatpush1.bf16.msra.mxu0 0
    %1095 = vmatprep.subr.bf16.mxu0 0
    %1096 = vmatpush1.bf16.msra.mxu0 0
    %1097 = vmatprep.subr.bf16.mxu0 0
    %1098 = vmatpush1.bf16.msra.mxu0 0
    %1099 = vmatprep.subr.bf16.mxu0 0
    %1100 = vmatpush1.bf16.msra.mxu0 0
    %1101 = vmatprep.subr.bf16.mxu0 0
    %1102 = vmatpush1.bf16.msra.mxu0 0
    %1103 = vmatprep.mubr.bf16.mxu0 0
    %1104 = vmatmul.mubr.bf16.gmra.mrb[0].mxu0 %v415
    %v1105 = vpop.f32.mrb[0].mxu0
    %v1106 = vadd.f32 %v1066, %v1105
    %v1107 = vpop.f32.mrb[0].mxu0
    %v1108 = vpop.f32.mrb[0].mxu0
    %v1109 = vpop.f32.mrb[0].mxu0
    %1110 = vdwg.mxu0
    %v1111 = vmax.f32 %v1106, 0.0
    %v1112 = vpack.c.bf16 %v1111, %v1111
    %1113 = vmatprep.subr.bf16.mxu0 0
    %1114 = vmatpush1.bf16.msra.mxu0 %v911
    %1115 = vmatprep.subr.bf16.mxu0 0
    %1116 = vmatpush1.bf16.msra.mxu0 %v912
    %1117 = vmatprep.subr.bf16.mxu0 0
    %1118 = vmatpush1.bf16.msra.mxu0 %v913
    %1119 = vmatprep.subr.bf16.mxu0 0
    %1120 = vmatpush1.bf16.msra.mxu0 %v914
    %1121 = vmatprep.subr.bf16.mxu0 0
    %1122 = vmatpush1.bf16.msra.mxu0 %v915
    %1123 = vmatprep.subr.bf16.mxu0 0
    %1124 = vmatpush1.bf16.msra.mxu0 %v916
    %1125 = vmatprep.subr.bf16.mxu0 0
    %1126 = vmatpush1.bf16.msra.mxu0 %v917
    %1127 = vmatprep.subr.bf16.mxu0 0
    %1128 = vmatpush1.bf16.msra.mxu0 %v918
    %1129 = vmatprep.subr.bf16.mxu0 0
    %1130 = vmatpush1.bf16.msra.mxu0 %v919
    %1131 = vmatprep.subr.bf16.mxu0 0
    %1132 = vmatpush1.bf16.msra.mxu0 %v920
    %1133 = vmatprep.subr.bf16.mxu0 0
    %1134 = vmatpush1.bf16.msra.mxu0 %v921
    %1135 = vmatprep.subr.bf16.mxu0 0
    %1136 = vmatpush1.bf16.msra.mxu0 %v922
    %1137 = vmatprep.subr.bf16.mxu0 0
    %1138 = vmatpush1.bf16.msra.mxu0 %v923
    %1139 = vmatprep.subr.bf16.mxu0 0
    %1140 = vmatpush1.bf16.msra.mxu0 %v924
    %1141 = vmatprep.subr.bf16.mxu0 0
    %1142 = vmatpush1.bf16.msra.mxu0 %v925
    %1143 = vmatprep.subr.bf16.mxu0 0
    %1144 = vmatpush1.bf16.msra.mxu0 %v926
    %1145 = vmatprep.mubr.bf16.mxu0 %v321
    %1146 = vmatmul.mubr.bf16.gmra.mrb[0].mxu0 %v274
    %v1147 = vpop.f32.mrb[0].mxu0
    %v1148 = vadd.f32 %v749, %v1147
    %v1149 = vpop.f32.mrb[0].mxu0
    %v1150 = vpop.f32.mrb[0].mxu0
    %v1151 = vpop.f32.mrb[0].mxu0
    %1152 = vdwg.mxu0
    %1153 = vmatprep.subr.bf16.mxu0 0
    %1154 = vmatpush1.bf16.msra.mxu0 %v927
    %1155 = vmatprep.subr.bf16.mxu0 0
    %1156 = vmatpush1.bf16.msra.mxu0 %v928
    %1157 = vmatprep.subr.bf16.mxu0 0
    %1158 = vmatpush1.bf16.msra.mxu0 %v929
    %1159 = vmatprep.subr.bf16.mxu0 0
    %1160 = vmatpush1.bf16.msra.mxu0 %v930
    %1161 = vmatprep.subr.bf16.mxu0 0
    %1162 = vmatpush1.bf16.msra.mxu0 %v931
    %1163 = vmatprep.subr.bf16.mxu0 0
    %1164 = vmatpush1.bf16.msra.mxu0 %v932
    %1165 = vmatprep.subr.bf16.mxu0 0
    %1166 = vmatpush1.bf16.msra.mxu0 %v933
    %1167 = vmatprep.subr.bf16.mxu0 0
    %1168 = vmatpush1.bf16.msra.mxu0 %v934
    %1169 = vmatprep.subr.bf16.mxu0 0
    %1170 = vmatpush1.bf16.msra.mxu0 %v935
    %1171 = vmatprep.subr.bf16.mxu0 0
    %1172 = vmatpush1.bf16.msra.mxu0 %v936
    %1173 = vmatprep.subr.bf16.mxu0 0
    %1174 = vmatpush1.bf16.msra.mxu0 %v937
    %1175 = vmatprep.subr.bf16.mxu0 0
    %1176 = vmatpush1.bf16.msra.mxu0 %v938
    %1177 = vmatprep.subr.bf16.mxu0 0
    %1178 = vmatpush1.bf16.msra.mxu0 %v939
    %1179 = vmatprep.subr.bf16.mxu0 0
    %1180 = vmatpush1.bf16.msra.mxu0 %v940
    %1181 = vmatprep.subr.bf16.mxu0 0
    %1182 = vmatpush1.bf16.msra.mxu0 %v941
    %1183 = vmatprep.subr.bf16.mxu0 0
    %1184 = vmatpush1.bf16.msra.mxu0 %v942
    %1185 = vmatprep.mubr.bf16.mxu0 %v415
    %1186 = vmatmul.mubr.bf16.gmra.mrb[0].mxu0 %v368
    %v1187 = vpop.f32.mrb[0].mxu0
    %v1188 = vadd.f32 %v1148, %v1187
    %v1189 = vpop.f32.mrb[0].mxu0
    %v1190 = vpop.f32.mrb[0].mxu0
    %v1191 = vpop.f32.mrb[0].mxu0
    %1192 = vdwg.mxu0
    %1193 = vmatprep.subr.bf16.mxu0 0
    %1194 = vmatpush1.bf16.msra.mxu0 %v943
    %1195 = vmatprep.subr.bf16.mxu0 0
    %1196 = vmatpush1.bf16.msra.mxu0 %v944
    %1197 = vmatprep.subr.bf16.mxu0 0
    %1198 = vmatpush1.bf16.msra.mxu0 %v945
    %1199 = vmatprep.subr.bf16.mxu0 0
    %1200 = vmatpush1.bf16.msra.mxu0 %v946
    %1201 = vmatprep.subr.bf16.mxu0 0
    %1202 = vmatpush1.bf16.msra.mxu0 %v947
    %1203 = vmatprep.subr.bf16.mxu0 0
    %1204 = vmatpush1.bf16.msra.mxu0 %v948
    %1205 = vmatprep.subr.bf16.mxu0 0
    %1206 = vmatpush1.bf16.msra.mxu0 %v949
    %1207 = vmatprep.subr.bf16.mxu0 0
    %1208 = vmatpush1.bf16.msra.mxu0 %v950
    %1209 = vmatprep.subr.bf16.mxu0 0
    %1210 = vmatpush1.bf16.msra.mxu0 0
    %1211 = vmatprep.subr.bf16.mxu0 0
    %1212 = vmatpush1.bf16.msra.mxu0 0
    %1213 = vmatprep.subr.bf16.mxu0 0
    %1214 = vmatpush1.bf16.msra.mxu0 0
    %1215 = vmatprep.subr.bf16.mxu0 0
    %1216 = vmatpush1.bf16.msra.mxu0 0
    %1217 = vmatprep.subr.bf16.mxu0 0
    %1218 = vmatpush1.bf16.msra.mxu0 0
    %1219 = vmatprep.subr.bf16.mxu0 0
    %1220 = vmatpush1.bf16.msra.mxu0 0
    %1221 = vmatprep.subr.bf16.mxu0 0
    %1222 = vmatpush1.bf16.msra.mxu0 0
    %1223 = vmatprep.subr.bf16.mxu0 0
    %1224 = vmatpush1.bf16.msra.mxu0 0
    %1225 = vmatprep.mubr.bf16.mxu0 0
    %1226 = vmatmul.mubr.bf16.gmra.mrb[0].mxu0 %v462
    %v1227 = vpop.f32.mrb[0].mxu0
    %v1228 = vadd.f32 %v1188, %v1227
    %v1229 = vpop.f32.mrb[0].mxu0
    %v1230 = vpop.f32.mrb[0].mxu0
    %v1231 = vpop.f32.mrb[0].mxu0
    %1232 = vdwg.mxu0
    %v1233 = vmax.f32 %v1228, 0.0
    %v1234 = vpack.c.bf16 %v1233, %v1233
    %1235 = vmatprep.subr.bf16.mxu0 0
    %1236 = vmatpush1.bf16.msra.mxu0 %v911
    %1237 = vmatprep.subr.bf16.mxu0 0
    %1238 = vmatpush1.bf16.msra.mxu0 %v912
    %1239 = vmatprep.subr.bf16.mxu0 0
    %1240 = vmatpush1.bf16.msra.mxu0 %v913
    %1241 = vmatprep.subr.bf16.mxu0 0
    %1242 = vmatpush1.bf16.msra.mxu0 %v914
    %1243 = vmatprep.subr.bf16.mxu0 0
    %1244 = vmatpush1.bf16.msra.mxu0 %v915
    %1245 = vmatprep.subr.bf16.mxu0 0
    %1246 = vmatpush1.bf16.msra.mxu0 %v916
    %1247 = vmatprep.subr.bf16.mxu0 0
    %1248 = vmatpush1.bf16.msra.mxu0 %v917
    %1249 = vmatprep.subr.bf16.mxu0 0
    %1250 = vmatpush1.bf16.msra.mxu0 %v918
    %1251 = vmatprep.subr.bf16.mxu0 0
    %1252 = vmatpush1.bf16.msra.mxu0 %v919
    %1253 = vmatprep.subr.bf16.mxu0 0
    %1254 = vmatpush1.bf16.msra.mxu0 %v920
    %1255 = vmatprep.subr.bf16.mxu0 0
    %1256 = vmatpush1.bf16.msra.mxu0 %v921
    %1257 = vmatprep.subr.bf16.mxu0 0
    %1258 = vmatpush1.bf16.msra.mxu0 %v922
    %1259 = vmatprep.subr.bf16.mxu0 0
    %1260 = vmatpush1.bf16.msra.mxu0 %v923
    %1261 = vmatprep.subr.bf16.mxu0 0
    %1262 = vmatpush1.bf16.msra.mxu0 %v924
    %1263 = vmatprep.subr.bf16.mxu0 0
    %1264 = vmatpush1.bf16.msra.mxu0 %v925
    %1265 = vmatprep.subr.bf16.mxu0 0
    %1266 = vmatpush1.bf16.msra.mxu0 %v926
    %1267 = vmatprep.mubr.bf16.mxu0 %v368
    %1268 = vmatmul.mubr.bf16.gmra.mrb[0].mxu0 %v321
    %v1269 = vpop.f32.mrb[0].mxu0
    %v1270 = vadd.f32 %v749, %v1269
    %v1271 = vpop.f32.mrb[0].mxu0
    %v1272 = vpop.f32.mrb[0].mxu0
    %v1273 = vpop.f32.mrb[0].mxu0
    %1274 = vdwg.mxu0
    %1275 = vmatprep.subr.bf16.mxu0 0
    %1276 = vmatpush1.bf16.msra.mxu0 %v927
    %1277 = vmatprep.subr.bf16.mxu0 0
    %1278 = vmatpush1.bf16.msra.mxu0 %v928
    %1279 = vmatprep.subr.bf16.mxu0 0
    %1280 = vmatpush1.bf16.msra.mxu0 %v929
    %1281 = vmatprep.subr.bf16.mxu0 0
    %1282 = vmatpush1.bf16.msra.mxu0 %v930
    %1283 = vmatprep.subr.bf16.mxu0 0
    %1284 = vmatpush1.bf16.msra.mxu0 %v931
    %1285 = vmatprep.subr.bf16.mxu0 0
    %1286 = vmatpush1.bf16.msra.mxu0 %v932
    %1287 = vmatprep.subr.bf16.mxu0 0
    %1288 = vmatpush1.bf16.msra.mxu0 %v933
    %1289 = vmatprep.subr.bf16.mxu0 0
    %1290 = vmatpush1.bf16.msra.mxu0 %v934
    %1291 = vmatprep.subr.bf16.mxu0 0
    %1292 = vmatpush1.bf16.msra.mxu0 %v935
    %1293 = vmatprep.subr.bf16.mxu0 0
    %1294 = vmatpush1.bf16.msra.mxu0 %v936
    %1295 = vmatprep.subr.bf16.mxu0 0
    %1296 = vmatpush1.bf16.msra.mxu0 %v937
    %1297 = vmatprep.subr.bf16.mxu0 0
    %1298 = vmatpush1.bf16.msra.mxu0 %v938
    %1299 = vmatprep.subr.bf16.mxu0 0
    %1300 = vmatpush1.bf16.msra.mxu0 %v939
    %1301 = vmatprep.subr.bf16.mxu0 0
    %1302 = vmatpush1.bf16.msra.mxu0 %v940
    %1303 = vmatprep.subr.bf16.mxu0 0
    %1304 = vmatpush1.bf16.msra.mxu0 %v941
    %1305 = vmatprep.subr.bf16.mxu0 0
    %1306 = vmatpush1.bf16.msra.mxu0 %v942
    %1307 = vmatprep.mubr.bf16.mxu0 %v462
    %1308 = vmatmul.mubr.bf16.gmra.mrb[0].mxu0 %v415
    %v1309 = vpop.f32.mrb[0].mxu0
    %v1310 = vadd.f32 %v1270, %v1309
    %v1311 = vpop.f32.mrb[0].mxu0
    %v1312 = vpop.f32.mrb[0].mxu0
    %v1313 = vpop.f32.mrb[0].mxu0
    %1314 = vdwg.mxu0
    %1315 = vmatprep.subr.bf16.mxu0 0
    %1316 = vmatpush1.bf16.msra.mxu0 %v943
    %1317 = vmatprep.subr.bf16.mxu0 0
    %1318 = vmatpush1.bf16.msra.mxu0 %v944
    %1319 = vmatprep.subr.bf16.mxu0 0
    %1320 = vmatpush1.bf16.msra.mxu0 %v945
    %1321 = vmatprep.subr.bf16.mxu0 0
    %1322 = vmatpush1.bf16.msra.mxu0 %v946
    %1323 = vmatprep.subr.bf16.mxu0 0
    %1324 = vmatpush1.bf16.msra.mxu0 %v947
    %1325 = vmatprep.subr.bf16.mxu0 0
    %1326 = vmatpush1.bf16.msra.mxu0 %v948
    %1327 = vmatprep.subr.bf16.mxu0 0
    %1328 = vmatpush1.bf16.msra.mxu0 %v949
    %1329 = vmatprep.subr.bf16.mxu0 0
    %1330 = vmatpush1.bf16.msra.mxu0 %v950
    %1331 = vmatprep.subr.bf16.mxu0 0
    %1332 = vmatpush1.bf16.msra.mxu0 0
    %1333 = vmatprep.subr.bf16.mxu0 0
    %1334 = vmatpush1.bf16.msra.mxu0 0
    %1335 = vmatprep.subr.bf16.mxu0 0
    %1336 = vmatpush1.bf16.msra.mxu0 0
    %1337 = vmatprep.subr.bf16.mxu0 0
    %1338 = vmatpush1.bf16.msra.mxu0 0
    %1339 = vmatprep.subr.bf16.mxu0 0
    %1340 = vmatpush1.bf16.msra.mxu0 0
    %1341 = vmatprep.subr.bf16.mxu0 0
    %1342 = vmatpush1.bf16.msra.mxu0 0
    %1343 = vmatprep.subr.bf16.mxu0 0
    %1344 = vmatpush1.bf16.msra.mxu0 0
    %1345 = vmatprep.subr.bf16.mxu0 0
    %1346 = vmatpush1.bf16.msra.mxu0 0
    %1347 = vmatprep.mubr.bf16.mxu0 0
    %1348 = vmatmul.mubr.bf16.gmra.mrb[0].mxu0 %v509
    %v1349 = vpop.f32.mrb[0].mxu0
    %v1350 = vadd.f32 %v1310, %v1349
    %v1351 = vpop.f32.mrb[0].mxu0
    %v1352 = vpop.f32.mrb[0].mxu0
    %v1353 = vpop.f32.mrb[0].mxu0
    %1354 = vdwg.mxu0
    %v1355 = vmax.f32 %v1350, 0.0
    %v1356 = vpack.c.bf16 %v1355, %v1355
    %1357 = vmatprep.subr.bf16.mxu0 0
    %1358 = vmatpush1.bf16.msra.mxu0 %v911
    %1359 = vmatprep.subr.bf16.mxu0 0
    %1360 = vmatpush1.bf16.msra.mxu0 %v912
    %1361 = vmatprep.subr.bf16.mxu0 0
    %1362 = vmatpush1.bf16.msra.mxu0 %v913
    %1363 = vmatprep.subr.bf16.mxu0 0
    %1364 = vmatpush1.bf16.msra.mxu0 %v914
    %1365 = vmatprep.subr.bf16.mxu0 0
    %1366 = vmatpush1.bf16.msra.mxu0 %v915
    %1367 = vmatprep.subr.bf16.mxu0 0
    %1368 = vmatpush1.bf16.msra.mxu0 %v916
    %1369 = vmatprep.subr.bf16.mxu0 0
    %1370 = vmatpush1.bf16.msra.mxu0 %v917
    %1371 = vmatprep.subr.bf16.mxu0 0
    %1372 = vmatpush1.bf16.msra.mxu0 %v918
    %1373 = vmatprep.subr.bf16.mxu0 0
    %1374 = vmatpush1.bf16.msra.mxu0 %v919
    %1375 = vmatprep.subr.bf16.mxu0 0
    %1376 = vmatpush1.bf16.msra.mxu0 %v920
    %1377 = vmatprep.subr.bf16.mxu0 0
    %1378 = vmatpush1.bf16.msra.mxu0 %v921
    %1379 = vmatprep.subr.bf16.mxu0 0
    %1380 = vmatpush1.bf16.msra.mxu0 %v922
    %1381 = vmatprep.subr.bf16.mxu0 0
    %1382 = vmatpush1.bf16.msra.mxu0 %v923
    %1383 = vmatprep.subr.bf16.mxu0 0
    %1384 = vmatpush1.bf16.msra.mxu0 %v924
    %1385 = vmatprep.subr.bf16.mxu0 0
    %1386 = vmatpush1.bf16.msra.mxu0 %v925
    %1387 = vmatprep.subr.bf16.mxu0 0
    %1388 = vmatpush1.bf16.msra.mxu0 %v926
    %1389 = vmatprep.mubr.bf16.mxu0 %v415
    %1390 = vmatmul.mubr.bf16.gmra.mrb[0].mxu0 %v368
    %v1391 = vpop.f32.mrb[0].mxu0
    %v1392 = vadd.f32 %v749, %v1391
    %v1393 = vpop.f32.mrb[0].mxu0
    %v1394 = vpop.f32.mrb[0].mxu0
    %v1395 = vpop.f32.mrb[0].mxu0
    %1396 = vdwg.mxu0
    %1397 = vmatprep.subr.bf16.mxu0 0
    %1398 = vmatpush1.bf16.msra.mxu0 %v927
    %1399 = vmatprep.subr.bf16.mxu0 0
    %1400 = vmatpush1.bf16.msra.mxu0 %v928
    %1401 = vmatprep.subr.bf16.mxu0 0
    %1402 = vmatpush1.bf16.msra.mxu0 %v929
    %1403 = vmatprep.subr.bf16.mxu0 0
    %1404 = vmatpush1.bf16.msra.mxu0 %v930
    %1405 = vmatprep.subr.bf16.mxu0 0
    %1406 = vmatpush1.bf16.msra.mxu0 %v931
    %1407 = vmatprep.subr.bf16.mxu0 0
    %1408 = vmatpush1.bf16.msra.mxu0 %v932
    %1409 = vmatprep.subr.bf16.mxu0 0
    %1410 = vmatpush1.bf16.msra.mxu0 %v933
    %1411 = vmatprep.subr.bf16.mxu0 0
    %1412 = vmatpush1.bf16.msra.mxu0 %v934
    %1413 = vmatprep.subr.bf16.mxu0 0
    %1414 = vmatpush1.bf16.msra.mxu0 %v935
    %1415 = vmatprep.subr.bf16.mxu0 0
    %1416 = vmatpush1.bf16.msra.mxu0 %v936
    %1417 = vmatprep.subr.bf16.mxu0 0
    %1418 = vmatpush1.bf16.msra.mxu0 %v937
    %1419 = vmatprep.subr.bf16.mxu0 0
    %1420 = vmatpush1.bf16.msra.mxu0 %v938
    %1421 = vmatprep.subr.bf16.mxu0 0
    %1422 = vmatpush1.bf16.msra.mxu0 %v939
    %1423 = vmatprep.subr.bf16.mxu0 0
    %1424 = vmatpush1.bf16.msra.mxu0 %v940
    %1425 = vmatprep.subr.bf16.mxu0 0
    %1426 = vmatpush1.bf16.msra.mxu0 %v941
    %1427 = vmatprep.subr.bf16.mxu0 0
    %1428 = vmatpush1.bf16.msra.mxu0 %v942
    %1429 = vmatprep.mubr.bf16.mxu0 %v509
    %1430 = vmatmul.mubr.bf16.gmra.mrb[0].mxu0 %v462
    %v1431 = vpop.f32.mrb[0].mxu0
    %v1432 = vadd.f32 %v1392, %v1431
    %v1433 = vpop.f32.mrb[0].mxu0
    %v1434 = vpop.f32.mrb[0].mxu0
    %v1435 = vpop.f32.mrb[0].mxu0
    %1436 = vdwg.mxu0
    %1437 = vmatprep.subr.bf16.mxu0 0
    %1438 = vmatpush1.bf16.msra.mxu0 %v943
    %1439 = vmatprep.subr.bf16.mxu0 0
    %1440 = vmatpush1.bf16.msra.mxu0 %v944
    %1441 = vmatprep.subr.bf16.mxu0 0
    %1442 = vmatpush1.bf16.msra.mxu0 %v945
    %1443 = vmatprep.subr.bf16.mxu0 0
    %1444 = vmatpush1.bf16.msra.mxu0 %v946
    %1445 = vmatprep.subr.bf16.mxu0 0
    %1446 = vmatpush1.bf16.msra.mxu0 %v947
    %1447 = vmatprep.subr.bf16.mxu0 0
    %1448 = vmatpush1.bf16.msra.mxu0 %v948
    %1449 = vmatprep.subr.bf16.mxu0 0
    %1450 = vmatpush1.bf16.msra.mxu0 %v949
    %1451 = vmatprep.subr.bf16.mxu0 0
    %1452 = vmatpush1.bf16.msra.mxu0 %v950
    %1453 = vmatprep.subr.bf16.mxu0 0
    %1454 = vmatpush1.bf16.msra.mxu0 0
    %1455 = vmatprep.subr.bf16.mxu0 0
    %1456 = vmatpush1.bf16.msra.mxu0 0
    %1457 = vmatprep.subr.bf16.mxu0 0
    %1458 = vmatpush1.bf16.msra.mxu0 0
    %1459 = vmatprep.subr.bf16.mxu0 0
    %1460 = vmatpush1.bf16.msra.mxu0 0
    %1461 = vmatprep.subr.bf16.mxu0 0
    %1462 = vmatpush1.bf16.msra.mxu0 0
    %1463 = vmatprep.subr.bf16.mxu0 0
    %1464 = vmatpush1.bf16.msra.mxu0 0
    %1465 = vmatprep.subr.bf16.mxu0 0
    %1466 = vmatpush1.bf16.msra.mxu0 0
    %1467 = vmatprep.subr.bf16.mxu0 0
    %1468 = vmatpush1.bf16.msra.mxu0 0
    %1469 = vmatprep.mubr.bf16.mxu0 0
    %1470 = vmatmul.mubr.bf16.gmra.mrb[0].mxu0 %v556
    %v1471 = vpop.f32.mrb[0].mxu0
    %v1472 = vadd.f32 %v1432, %v1471
    %v1473 = vpop.f32.mrb[0].mxu0
    %v1474 = vpop.f32.mrb[0].mxu0
    %v1475 = vpop.f32.mrb[0].mxu0
    %1476 = vdwg.mxu0
    %v1477 = vmax.f32 %v1472, 0.0
    %v1478 = vpack.c.bf16 %v1477, %v1477
    %1479 = vmatprep.subr.bf16.mxu0 0
    %1480 = vmatpush1.bf16.msra.mxu0 %v911
    %1481 = vmatprep.subr.bf16.mxu0 0
    %1482 = vmatpush1.bf16.msra.mxu0 %v912
    %1483 = vmatprep.subr.bf16.mxu0 0
    %1484 = vmatpush1.bf16.msra.mxu0 %v913
    %1485 = vmatprep.subr.bf16.mxu0 0
    %1486 = vmatpush1.bf16.msra.mxu0 %v914
    %1487 = vmatprep.subr.bf16.mxu0 0
    %1488 = vmatpush1.bf16.msra.mxu0 %v915
    %1489 = vmatprep.subr.bf16.mxu0 0
    %1490 = vmatpush1.bf16.msra.mxu0 %v916
    %1491 = vmatprep.subr.bf16.mxu0 0
    %1492 = vmatpush1.bf16.msra.mxu0 %v917
    %1493 = vmatprep.subr.bf16.mxu0 0
    %1494 = vmatpush1.bf16.msra.mxu0 %v918
    %1495 = vmatprep.subr.bf16.mxu0 0
    %1496 = vmatpush1.bf16.msra.mxu0 %v919
    %1497 = vmatprep.subr.bf16.mxu0 0
    %1498 = vmatpush1.bf16.msra.mxu0 %v920
    %1499 = vmatprep.subr.bf16.mxu0 0
    %1500 = vmatpush1.bf16.msra.mxu0 %v921
    %1501 = vmatprep.subr.bf16.mxu0 0
    %1502 = vmatpush1.bf16.msra.mxu0 %v922
    %1503 = vmatprep.subr.bf16.mxu0 0
    %1504 = vmatpush1.bf16.msra.mxu0 %v923
    %1505 = vmatprep.subr.bf16.mxu0 0
    %1506 = vmatpush1.bf16.msra.mxu0 %v924
    %1507 = vmatprep.subr.bf16.mxu0 0
    %1508 = vmatpush1.bf16.msra.mxu0 %v925
    %1509 = vmatprep.subr.bf16.mxu0 0
    %1510 = vmatpush1.bf16.msra.mxu0 %v926
    %1511 = vmatprep.mubr.bf16.mxu0 %v462
    %1512 = vmatmul.mubr.bf16.gmra.mrb[0].mxu0 %v415
    %v1513 = vpop.f32.mrb[0].mxu0
    %v1514 = vadd.f32 %v749, %v1513
    %v1515 = vpop.f32.mrb[0].mxu0
    %v1516 = vpop.f32.mrb[0].mxu0
    %v1517 = vpop.f32.mrb[0].mxu0
    %1518 = vdwg.mxu0
    %1519 = vmatprep.subr.bf16.mxu0 0
    %1520 = vmatpush1.bf16.msra.mxu0 %v927
    %1521 = vmatprep.subr.bf16.mxu0 0
    %1522 = vmatpush1.bf16.msra.mxu0 %v928
    %1523 = vmatprep.subr.bf16.mxu0 0
    %1524 = vmatpush1.bf16.msra.mxu0 %v929
    %1525 = vmatprep.subr.bf16.mxu0 0
    %1526 = vmatpush1.bf16.msra.mxu0 %v930
    %1527 = vmatprep.subr.bf16.mxu0 0
    %1528 = vmatpush1.bf16.msra.mxu0 %v931
    %1529 = vmatprep.subr.bf16.mxu0 0
    %1530 = vmatpush1.bf16.msra.mxu0 %v932
    %1531 = vmatprep.subr.bf16.mxu0 0
    %1532 = vmatpush1.bf16.msra.mxu0 %v933
    %1533 = vmatprep.subr.bf16.mxu0 0
    %1534 = vmatpush1.bf16.msra.mxu0 %v934
    %1535 = vmatprep.subr.bf16.mxu0 0
    %1536 = vmatpush1.bf16.msra.mxu0 %v935
    %1537 = vmatprep.subr.bf16.mxu0 0
    %1538 = vmatpush1.bf16.msra.mxu0 %v936
    %1539 = vmatprep.subr.bf16.mxu0 0
    %1540 = vmatpush1.bf16.msra.mxu0 %v937
    %1541 = vmatprep.subr.bf16.mxu0 0
    %1542 = vmatpush1.bf16.msra.mxu0 %v938
    %1543 = vmatprep.subr.bf16.mxu0 0
    %1544 = vmatpush1.bf16.msra.mxu0 %v939
    %1545 = vmatprep.subr.bf16.mxu0 0
    %1546 = vmatpush1.bf16.msra.mxu0 %v940
    %1547 = vmatprep.subr.bf16.mxu0 0
    %1548 = vmatpush1.bf16.msra.mxu0 %v941
    %1549 = vmatprep.subr.bf16.mxu0 0
    %1550 = vmatpush1.bf16.msra.mxu0 %v942
    %1551 = vmatprep.mubr.bf16.mxu0 %v556
    %1552 = vmatmul.mubr.bf16.gmra.mrb[0].mxu0 %v509
    %v1553 = vpop.f32.mrb[0].mxu0
    %v1554 = vadd.f32 %v1514, %v1553
    %v1555 = vpop.f32.mrb[0].mxu0
    %v1556 = vpop.f32.mrb[0].mxu0
    %v1557 = vpop.f32.mrb[0].mxu0
    %1558 = vdwg.mxu0
    %1559 = vmatprep.subr.bf16.mxu0 0
    %1560 = vmatpush1.bf16.msra.mxu0 %v943
    %1561 = vmatprep.subr.bf16.mxu0 0
    %1562 = vmatpush1.bf16.msra.mxu0 %v944
    %1563 = vmatprep.subr.bf16.mxu0 0
    %1564 = vmatpush1.bf16.msra.mxu0 %v945
    %1565 = vmatprep.subr.bf16.mxu0 0
    %1566 = vmatpush1.bf16.msra.mxu0 %v946
    %1567 = vmatprep.subr.bf16.mxu0 0
    %1568 = vmatpush1.bf16.msra.mxu0 %v947
    %1569 = vmatprep.subr.bf16.mxu0 0
    %1570 = vmatpush1.bf16.msra.mxu0 %v948
    %1571 = vmatprep.subr.bf16.mxu0 0
    %1572 = vmatpush1.bf16.msra.mxu0 %v949
    %1573 = vmatprep.subr.bf16.mxu0 0
    %1574 = vmatpush1.bf16.msra.mxu0 %v950
    %1575 = vmatprep.subr.bf16.mxu0 0
    %1576 = vmatpush1.bf16.msra.mxu0 0
    %1577 = vmatprep.subr.bf16.mxu0 0
    %1578 = vmatpush1.bf16.msra.mxu0 0
    %1579 = vmatprep.subr.bf16.mxu0 0
    %1580 = vmatpush1.bf16.msra.mxu0 0
    %1581 = vmatprep.subr.bf16.mxu0 0
    %1582 = vmatpush1.bf16.msra.mxu0 0
    %1583 = vmatprep.subr.bf16.mxu0 0
    %1584 = vmatpush1.bf16.msra.mxu0 0
    %1585 = vmatprep.subr.bf16.mxu0 0
    %1586 = vmatpush1.bf16.msra.mxu0 0
    %1587 = vmatprep.subr.bf16.mxu0 0
    %1588 = vmatpush1.bf16.msra.mxu0 0
    %1589 = vmatprep.subr.bf16.mxu0 0
    %1590 = vmatpush1.bf16.msra.mxu0 0
    %1591 = vmatprep.mubr.bf16.mxu0 0
    %1592 = vmatmul.mubr.bf16.gmra.mrb[0].mxu0 %v603
    %v1593 = vpop.f32.mrb[0].mxu0
    %v1594 = vadd.f32 %v1554, %v1593
    %v1595 = vpop.f32.mrb[0].mxu0
    %v1596 = vpop.f32.mrb[0].mxu0
    %v1597 = vpop.f32.mrb[0].mxu0
    %1598 = vdwg.mxu0
    %v1599 = vmax.f32 %v1594, 0.0
    %v1600 = vpack.c.bf16 %v1599, %v1599
    %1601 = vmatprep.subr.bf16.mxu0 0
    %1602 = vmatpush1.bf16.msra.mxu0 %v911
    %1603 = vmatprep.subr.bf16.mxu0 0
    %1604 = vmatpush1.bf16.msra.mxu0 %v912
    %1605 = vmatprep.subr.bf16.mxu0 0
    %1606 = vmatpush1.bf16.msra.mxu0 %v913
    %1607 = vmatprep.subr.bf16.mxu0 0
    %1608 = vmatpush1.bf16.msra.mxu0 %v914
    %1609 = vmatprep.subr.bf16.mxu0 0
    %1610 = vmatpush1.bf16.msra.mxu0 %v915
    %1611 = vmatprep.subr.bf16.mxu0 0
    %1612 = vmatpush1.bf16.msra.mxu0 %v916
    %1613 = vmatprep.subr.bf16.mxu0 0
    %1614 = vmatpush1.bf16.msra.mxu0 %v917
    %1615 = vmatprep.subr.bf16.mxu0 0
    %1616 = vmatpush1.bf16.msra.mxu0 %v918
    %1617 = vmatprep.subr.bf16.mxu0 0
    %1618 = vmatpush1.bf16.msra.mxu0 %v919
    %1619 = vmatprep.subr.bf16.mxu0 0
    %1620 = vmatpush1.bf16.msra.mxu0 %v920
    %1621 = vmatprep.subr.bf16.mxu0 0
    %1622 = vmatpush1.bf16.msra.mxu0 %v921
    %1623 = vmatprep.subr.bf16.mxu0 0
    %1624 = vmatpush1.bf16.msra.mxu0 %v922
    %1625 = vmatprep.subr.bf16.mxu0 0
    %1626 = vmatpush1.bf16.msra.mxu0 %v923
    %1627 = vmatprep.subr.bf16.mxu0 0
    %1628 = vmatpush1.bf16.msra.mxu0 %v924
    %1629 = vmatprep.subr.bf16.mxu0 0
    %1630 = vmatpush1.bf16.msra.mxu0 %v925
    %1631 = vmatprep.subr.bf16.mxu0 0
    %1632 = vmatpush1.bf16.msra.mxu0 %v926
    %1633 = vmatprep.mubr.bf16.mxu0 %v509
    %1634 = vmatmul.mubr.bf16.gmra.mrb[0].mxu0 %v462
    %v1635 = vpop.f32.mrb[0].mxu0
    %v1636 = vadd.f32 %v749, %v1635
    %v1637 = vpop.f32.mrb[0].mxu0
    %v1638 = vpop.f32.mrb[0].mxu0
    %v1639 = vpop.f32.mrb[0].mxu0
    %1640 = vdwg.mxu0
    %1641 = vmatprep.subr.bf16.mxu0 0
    %1642 = vmatpush1.bf16.msra.mxu0 %v927
    %1643 = vmatprep.subr.bf16.mxu0 0
    %1644 = vmatpush1.bf16.msra.mxu0 %v928
    %1645 = vmatprep.subr.bf16.mxu0 0
    %1646 = vmatpush1.bf16.msra.mxu0 %v929
    %1647 = vmatprep.subr.bf16.mxu0 0
    %1648 = vmatpush1.bf16.msra.mxu0 %v930
    %1649 = vmatprep.subr.bf16.mxu0 0
    %1650 = vmatpush1.bf16.msra.mxu0 %v931
    %1651 = vmatprep.subr.bf16.mxu0 0
    %1652 = vmatpush1.bf16.msra.mxu0 %v932
    %1653 = vmatprep.subr.bf16.mxu0 0
    %1654 = vmatpush1.bf16.msra.mxu0 %v933
    %1655 = vmatprep.subr.bf16.mxu0 0
    %1656 = vmatpush1.bf16.msra.mxu0 %v934
    %1657 = vmatprep.subr.bf16.mxu0 0
    %1658 = vmatpush1.bf16.msra.mxu0 %v935
    %1659 = vmatprep.subr.bf16.mxu0 0
    %1660 = vmatpush1.bf16.msra.mxu0 %v936
    %1661 = vmatprep.subr.bf16.mxu0 0
    %1662 = vmatpush1.bf16.msra.mxu0 %v937
    %1663 = vmatprep.subr.bf16.mxu0 0
    %1664 = vmatpush1.bf16.msra.mxu0 %v938
    %1665 = vmatprep.subr.bf16.mxu0 0
    %1666 = vmatpush1.bf16.msra.mxu0 %v939
    %1667 = vmatprep.subr.bf16.mxu0 0
    %1668 = vmatpush1.bf16.msra.mxu0 %v940
    %1669 = vmatprep.subr.bf16.mxu0 0
    %1670 = vmatpush1.bf16.msra.mxu0 %v941
    %1671 = vmatprep.subr.bf16.mxu0 0
    %1672 = vmatpush1.bf16.msra.mxu0 %v942
    %1673 = vmatprep.mubr.bf16.mxu0 %v603
    %1674 = vmatmul.mubr.bf16.gmra.mrb[0].mxu0 %v556
    %v1675 = vpop.f32.mrb[0].mxu0
    %v1676 = vadd.f32 %v1636, %v1675
    %v1677 = vpop.f32.mrb[0].mxu0
    %v1678 = vpop.f32.mrb[0].mxu0
    %v1679 = vpop.f32.mrb[0].mxu0
    %1680 = vdwg.mxu0
    %1681 = vmatprep.subr.bf16.mxu0 0
    %1682 = vmatpush1.bf16.msra.mxu0 %v943
    %1683 = vmatprep.subr.bf16.mxu0 0
    %1684 = vmatpush1.bf16.msra.mxu0 %v944
    %1685 = vmatprep.subr.bf16.mxu0 0
    %1686 = vmatpush1.bf16.msra.mxu0 %v945
    %1687 = vmatprep.subr.bf16.mxu0 0
    %1688 = vmatpush1.bf16.msra.mxu0 %v946
    %1689 = vmatprep.subr.bf16.mxu0 0
    %1690 = vmatpush1.bf16.msra.mxu0 %v947
    %1691 = vmatprep.subr.bf16.mxu0 0
    %1692 = vmatpush1.bf16.msra.mxu0 %v948
    %1693 = vmatprep.subr.bf16.mxu0 0
    %1694 = vmatpush1.bf16.msra.mxu0 %v949
    %1695 = vmatprep.subr.bf16.mxu0 0
    %1696 = vmatpush1.bf16.msra.mxu0 %v950
    %1697 = vmatprep.subr.bf16.mxu0 0
    %1698 = vmatpush1.bf16.msra.mxu0 0
    %1699 = vmatprep.subr.bf16.mxu0 0
    %1700 = vmatpush1.bf16.msra.mxu0 0
    %1701 = vmatprep.subr.bf16.mxu0 0
    %1702 = vmatpush1.bf16.msra.mxu0 0
    %1703 = vmatprep.subr.bf16.mxu0 0
    %1704 = vmatpush1.bf16.msra.mxu0 0
    %1705 = vmatprep.subr.bf16.mxu0 0
    %1706 = vmatpush1.bf16.msra.mxu0 0
    %1707 = vmatprep.subr.bf16.mxu0 0
    %1708 = vmatpush1.bf16.msra.mxu0 0
    %1709 = vmatprep.subr.bf16.mxu0 0
    %1710 = vmatpush1.bf16.msra.mxu0 0
    %1711 = vmatprep.subr.bf16.mxu0 0
    %1712 = vmatpush1.bf16.msra.mxu0 0
    %1713 = vmatprep.mubr.bf16.mxu0 0
    %1714 = vmatmul.mubr.bf16.gmra.mrb[0].mxu0 %v650
    %v1715 = vpop.f32.mrb[0].mxu0
    %v1716 = vadd.f32 %v1676, %v1715
    %v1717 = vpop.f32.mrb[0].mxu0
    %v1718 = vpop.f32.mrb[0].mxu0
    %v1719 = vpop.f32.mrb[0].mxu0
    %1720 = vdwg.mxu0
    %v1721 = vmax.f32 %v1716, 0.0
    %v1722 = vpack.c.bf16 %v1721, %v1721
    %1723 = vmatprep.subr.bf16.mxu0 0
    %1724 = vmatpush1.bf16.msra.mxu0 %v911
    %1725 = vmatprep.subr.bf16.mxu0 0
    %1726 = vmatpush1.bf16.msra.mxu0 %v912
    %1727 = vmatprep.subr.bf16.mxu0 0
    %1728 = vmatpush1.bf16.msra.mxu0 %v913
    %1729 = vmatprep.subr.bf16.mxu0 0
    %1730 = vmatpush1.bf16.msra.mxu0 %v914
    %1731 = vmatprep.subr.bf16.mxu0 0
    %1732 = vmatpush1.bf16.msra.mxu0 %v915
    %1733 = vmatprep.subr.bf16.mxu0 0
    %1734 = vmatpush1.bf16.msra.mxu0 %v916
    %1735 = vmatprep.subr.bf16.mxu0 0
    %1736 = vmatpush1.bf16.msra.mxu0 %v917
    %1737 = vmatprep.subr.bf16.mxu0 0
    %1738 = vmatpush1.bf16.msra.mxu0 %v918
    %1739 = vmatprep.subr.bf16.mxu0 0
    %1740 = vmatpush1.bf16.msra.mxu0 %v919
    %1741 = vmatprep.subr.bf16.mxu0 0
    %1742 = vmatpush1.bf16.msra.mxu0 %v920
    %1743 = vmatprep.subr.bf16.mxu0 0
    %1744 = vmatpush1.bf16.msra.mxu0 %v921
    %1745 = vmatprep.subr.bf16.mxu0 0
    %1746 = vmatpush1.bf16.msra.mxu0 %v922
    %1747 = vmatprep.subr.bf16.mxu0 0
    %1748 = vmatpush1.bf16.msra.mxu0 %v923
    %1749 = vmatprep.subr.bf16.mxu0 0
    %1750 = vmatpush1.bf16.msra.mxu0 %v924
    %1751 = vmatprep.subr.bf16.mxu0 0
    %1752 = vmatpush1.bf16.msra.mxu0 %v925
    %1753 = vmatprep.subr.bf16.mxu0 0
    %1754 = vmatpush1.bf16.msra.mxu0 %v926
    %1755 = vmatprep.mubr.bf16.mxu0 %v556
    %1756 = vmatmul.mubr.bf16.gmra.mrb[0].mxu0 %v509
    %v1757 = vpop.f32.mrb[0].mxu0
    %v1758 = vadd.f32 %v749, %v1757
    %v1759 = vpop.f32.mrb[0].mxu0
    %v1760 = vpop.f32.mrb[0].mxu0
    %v1761 = vpop.f32.mrb[0].mxu0
    %1762 = vdwg.mxu0
    %1763 = vmatprep.subr.bf16.mxu0 0
    %1764 = vmatpush1.bf16.msra.mxu0 %v927
    %1765 = vmatprep.subr.bf16.mxu0 0
    %1766 = vmatpush1.bf16.msra.mxu0 %v928
    %1767 = vmatprep.subr.bf16.mxu0 0
    %1768 = vmatpush1.bf16.msra.mxu0 %v929
    %1769 = vmatprep.subr.bf16.mxu0 0
    %1770 = vmatpush1.bf16.msra.mxu0 %v930
    %1771 = vmatprep.subr.bf16.mxu0 0
    %1772 = vmatpush1.bf16.msra.mxu0 %v931
    %1773 = vmatprep.subr.bf16.mxu0 0
    %1774 = vmatpush1.bf16.msra.mxu0 %v932
    %1775 = vmatprep.subr.bf16.mxu0 0
    %1776 = vmatpush1.bf16.msra.mxu0 %v933
    %1777 = vmatprep.subr.bf16.mxu0 0
    %1778 = vmatpush1.bf16.msra.mxu0 %v934
    %1779 = vmatprep.subr.bf16.mxu0 0
    %1780 = vmatpush1.bf16.msra.mxu0 %v935
    %1781 = vmatprep.subr.bf16.mxu0 0
    %1782 = vmatpush1.bf16.msra.mxu0 %v936
    %1783 = vmatprep.subr.bf16.mxu0 0
    %1784 = vmatpush1.bf16.msra.mxu0 %v937
    %1785 = vmatprep.subr.bf16.mxu0 0
    %1786 = vmatpush1.bf16.msra.mxu0 %v938
    %1787 = vmatprep.subr.bf16.mxu0 0
    %1788 = vmatpush1.bf16.msra.mxu0 %v939
    %1789 = vmatprep.subr.bf16.mxu0 0
    %1790 = vmatpush1.bf16.msra.mxu0 %v940
    %1791 = vmatprep.subr.bf16.mxu0 0
    %1792 = vmatpush1.bf16.msra.mxu0 %v941
    %1793 = vmatprep.subr.bf16.mxu0 0
    %1794 = vmatpush1.bf16.msra.mxu0 %v942
    %1795 = vmatprep.mubr.bf16.mxu0 %v650
    %1796 = vmatmul.mubr.bf16.gmra.mrb[0].mxu0 %v603
    %v1797 = vpop.f32.mrb[0].mxu0
    %v1798 = vadd.f32 %v1758, %v1797
    %v1799 = vpop.f32.mrb[0].mxu0
    %v1800 = vpop.f32.mrb[0].mxu0
    %v1801 = vpop.f32.mrb[0].mxu0
    %1802 = vdwg.mxu0
    %1803 = vmatprep.subr.bf16.mxu0 0
    %1804 = vmatpush1.bf16.msra.mxu0 %v943
    %1805 = vmatprep.subr.bf16.mxu0 0
    %1806 = vmatpush1.bf16.msra.mxu0 %v944
    %1807 = vmatprep.subr.bf16.mxu0 0
    %1808 = vmatpush1.bf16.msra.mxu0 %v945
    %1809 = vmatprep.subr.bf16.mxu0 0
    %1810 = vmatpush1.bf16.msra.mxu0 %v946
    %1811 = vmatprep.subr.bf16.mxu0 0
    %1812 = vmatpush1.bf16.msra.mxu0 %v947
    %1813 = vmatprep.subr.bf16.mxu0 0
    %1814 = vmatpush1.bf16.msra.mxu0 %v948
    %1815 = vmatprep.subr.bf16.mxu0 0
    %1816 = vmatpush1.bf16.msra.mxu0 %v949
    %1817 = vmatprep.subr.bf16.mxu0 0
    %1818 = vmatpush1.bf16.msra.mxu0 %v950
    %1819 = vmatprep.subr.bf16.mxu0 0
    %1820 = vmatpush1.bf16.msra.mxu0 0
    %1821 = vmatprep.subr.bf16.mxu0 0
    %1822 = vmatpush1.bf16.msra.mxu0 0
    %1823 = vmatprep.subr.bf16.mxu0 0
    %1824 = vmatpush1.bf16.msra.mxu0 0
    %1825 = vmatprep.subr.bf16.mxu0 0
    %1826 = vmatpush1.bf16.msra.mxu0 0
    %1827 = vmatprep.subr.bf16.mxu0 0
    %1828 = vmatpush1.bf16.msra.mxu0 0
    %1829 = vmatprep.subr.bf16.mxu0 0
    %1830 = vmatpush1.bf16.msra.mxu0 0
    %1831 = vmatprep.subr.bf16.mxu0 0
    %1832 = vmatpush1.bf16.msra.mxu0 0
    %1833 = vmatprep.subr.bf16.mxu0 0
    %1834 = vmatpush1.bf16.msra.mxu0 0
    %1835 = vmatprep.mubr.bf16.mxu0 0
    %1836 = vmatmul.mubr.bf16.gmra.mrb[0].mxu0 %v697
    %v1837 = vpop.f32.mrb[0].mxu0
    %v1838 = vadd.f32 %v1798, %v1837
    %v1839 = vpop.f32.mrb[0].mxu0
    %v1840 = vpop.f32.mrb[0].mxu0
    %v1841 = vpop.f32.mrb[0].mxu0
    %1842 = vdwg.mxu0
    %v1843 = vmax.f32 %v1838, 0.0
    %v1844 = vpack.c.bf16 %v1843, %v1843
    %1845 = vmatprep.subr.bf16.mxu0 0
    %1846 = vmatpush1.bf16.msra.mxu0 %v911
    %1847 = vmatprep.subr.bf16.mxu0 0
    %1848 = vmatpush1.bf16.msra.mxu0 %v912
    %1849 = vmatprep.subr.bf16.mxu0 0
    %1850 = vmatpush1.bf16.msra.mxu0 %v913
    %1851 = vmatprep.subr.bf16.mxu0 0
    %1852 = vmatpush1.bf16.msra.mxu0 %v914
    %1853 = vmatprep.subr.bf16.mxu0 0
    %1854 = vmatpush1.bf16.msra.mxu0 %v915
    %1855 = vmatprep.subr.bf16.mxu0 0
    %1856 = vmatpush1.bf16.msra.mxu0 %v916
    %1857 = vmatprep.subr.bf16.mxu0 0
    %1858 = vmatpush1.bf16.msra.mxu0 %v917
    %1859 = vmatprep.subr.bf16.mxu0 0
    %1860 = vmatpush1.bf16.msra.mxu0 %v918
    %1861 = vmatprep.subr.bf16.mxu0 0
    %1862 = vmatpush1.bf16.msra.mxu0 %v919
    %1863 = vmatprep.subr.bf16.mxu0 0
    %1864 = vmatpush1.bf16.msra.mxu0 %v920
    %1865 = vmatprep.subr.bf16.mxu0 0
    %1866 = vmatpush1.bf16.msra.mxu0 %v921
    %1867 = vmatprep.subr.bf16.mxu0 0
    %1868 = vmatpush1.bf16.msra.mxu0 %v922
    %1869 = vmatprep.subr.bf16.mxu0 0
    %1870 = vmatpush1.bf16.msra.mxu0 %v923
    %1871 = vmatprep.subr.bf16.mxu0 0
    %1872 = vmatpush1.bf16.msra.mxu0 %v924
    %1873 = vmatprep.subr.bf16.mxu0 0
    %1874 = vmatpush1.bf16.msra.mxu0 %v925
    %1875 = vmatprep.subr.bf16.mxu0 0
    %1876 = vmatpush1.bf16.msra.mxu0 %v926
    %1877 = vmatprep.mubr.bf16.mxu0 %v603
    %1878 = vmatmul.mubr.bf16.gmra.mrb[0].mxu0 %v556
    %v1879 = vpop.f32.mrb[0].mxu0
    %v1880 = vadd.f32 %v749, %v1879
    %v1881 = vpop.f32.mrb[0].mxu0
    %v1882 = vpop.f32.mrb[0].mxu0
    %v1883 = vpop.f32.mrb[0].mxu0
    %1884 = vdwg.mxu0
    %1885 = vmatprep.subr.bf16.mxu0 0
    %1886 = vmatpush1.bf16.msra.mxu0 %v927
    %1887 = vmatprep.subr.bf16.mxu0 0
    %1888 = vmatpush1.bf16.msra.mxu0 %v928
    %1889 = vmatprep.subr.bf16.mxu0 0
    %1890 = vmatpush1.bf16.msra.mxu0 %v929
    %1891 = vmatprep.subr.bf16.mxu0 0
    %1892 = vmatpush1.bf16.msra.mxu0 %v930
    %1893 = vmatprep.subr.bf16.mxu0 0
    %1894 = vmatpush1.bf16.msra.mxu0 %v931
    %1895 = vmatprep.subr.bf16.mxu0 0
    %1896 = vmatpush1.bf16.msra.mxu0 %v932
    %1897 = vmatprep.subr.bf16.mxu0 0
    %1898 = vmatpush1.bf16.msra.mxu0 %v933
    %1899 = vmatprep.subr.bf16.mxu0 0
    %1900 = vmatpush1.bf16.msra.mxu0 %v934
    %1901 = vmatprep.subr.bf16.mxu0 0
    %1902 = vmatpush1.bf16.msra.mxu0 %v935
    %1903 = vmatprep.subr.bf16.mxu0 0
    %1904 = vmatpush1.bf16.msra.mxu0 %v936
    %1905 = vmatprep.subr.bf16.mxu0 0
    %1906 = vmatpush1.bf16.msra.mxu0 %v937
    %1907 = vmatprep.subr.bf16.mxu0 0
    %1908 = vmatpush1.bf16.msra.mxu0 %v938
    %1909 = vmatprep.subr.bf16.mxu0 0
    %1910 = vmatpush1.bf16.msra.mxu0 %v939
    %1911 = vmatprep.subr.bf16.mxu0 0
    %1912 = vmatpush1.bf16.msra.mxu0 %v940
    %1913 = vmatprep.subr.bf16.mxu0 0
    %1914 = vmatpush1.bf16.msra.mxu0 %v941
    %1915 = vmatprep.subr.bf16.mxu0 0
    %1916 = vmatpush1.bf16.msra.mxu0 %v942
    %1917 = vmatprep.mubr.bf16.mxu0 %v697
    %1918 = vmatmul.mubr.bf16.gmra.mrb[0].mxu0 %v650
    %v1919 = vpop.f32.mrb[0].mxu0
    %v1920 = vadd.f32 %v1880, %v1919
    %v1921 = vpop.f32.mrb[0].mxu0
    %v1922 = vpop.f32.mrb[0].mxu0
    %v1923 = vpop.f32.mrb[0].mxu0
    %1924 = vdwg.mxu0
    %1925 = vmatprep.subr.bf16.mxu0 0
    %1926 = vmatpush1.bf16.msra.mxu0 %v943
    %1927 = vmatprep.subr.bf16.mxu0 0
    %1928 = vmatpush1.bf16.msra.mxu0 %v944
    %1929 = vmatprep.subr.bf16.mxu0 0
    %1930 = vmatpush1.bf16.msra.mxu0 %v945
    %1931 = vmatprep.subr.bf16.mxu0 0
    %1932 = vmatpush1.bf16.msra.mxu0 %v946
    %1933 = vmatprep.subr.bf16.mxu0 0
    %1934 = vmatpush1.bf16.msra.mxu0 %v947
    %1935 = vmatprep.subr.bf16.mxu0 0
    %1936 = vmatpush1.bf16.msra.mxu0 %v948
    %1937 = vmatprep.subr.bf16.mxu0 0
    %1938 = vmatpush1.bf16.msra.mxu0 %v949
    %1939 = vmatprep.subr.bf16.mxu0 0
    %1940 = vmatpush1.bf16.msra.mxu0 %v950
    %1941 = vmatprep.subr.bf16.mxu0 0
    %1942 = vmatpush1.bf16.msra.mxu0 0
    %1943 = vmatprep.subr.bf16.mxu0 0
    %1944 = vmatpush1.bf16.msra.mxu0 0
    %1945 = vmatprep.subr.bf16.mxu0 0
    %1946 = vmatpush1.bf16.msra.mxu0 0
    %1947 = vmatprep.subr.bf16.mxu0 0
    %1948 = vmatpush1.bf16.msra.mxu0 0
    %1949 = vmatprep.subr.bf16.mxu0 0
    %1950 = vmatpush1.bf16.msra.mxu0 0
    %1951 = vmatprep.subr.bf16.mxu0 0
    %1952 = vmatpush1.bf16.msra.mxu0 0
    %1953 = vmatprep.subr.bf16.mxu0 0
    %1954 = vmatpush1.bf16.msra.mxu0 0
    %1955 = vmatprep.subr.bf16.mxu0 0
    %1956 = vmatpush1.bf16.msra.mxu0 0
    %1957 = vmatprep.mubr.bf16.mxu0 0
    %1958 = vmatmul.mubr.bf16.gmra.mrb[0].mxu0 %v744
    %v1959 = vpop.f32.mrb[0].mxu0
    %v1960 = vadd.f32 %v1920, %v1959
    %v1961 = vpop.f32.mrb[0].mxu0
    %v1962 = vpop.f32.mrb[0].mxu0
    %v1963 = vpop.f32.mrb[0].mxu0
    %1964 = vdwg.mxu0
    %v1965 = vmax.f32 %v1960, 0.0
    %v1966 = vpack.c.bf16 %v1965, %v1965
    %v1967 = vld [vmem:[#allocation4] sm:$0xff]
    %v1968 = vld [vmem:[#allocation4 + $0x8] sm:$0xff]
    %v1969 = vld [vmem:[#allocation4 + $0x10] sm:$0xff]
    %v1970 = vld [vmem:[#allocation4 + $0x18] sm:$0xff]
    %v1971 = vld [vmem:[#allocation4 + $0x20] sm:$0xff]
    %v1972 = vld [vmem:[#allocation4 + $0x28] sm:$0xff]
    %v1973 = vld [vmem:[#allocation4 + $0x30] sm:$0xff]
    %v1974 = vld [vmem:[#allocation4 + $0x38] sm:$0xff]
    %v1975 = vld [vmem:[#allocation4 + $0x40] sm:$0xff]
    %v1976 = vld [vmem:[#allocation4 + $0x48] sm:$0xff]
    %v1977 = vld [vmem:[#allocation4 + $0x50] sm:$0xff]
    %v1978 = vld [vmem:[#allocation4 + $0x58] sm:$0xff]
    %v1979 = vld [vmem:[#allocation4 + $0x60] sm:$0xff]
    %v1980 = vld [vmem:[#allocation4 + $0x68] sm:$0xff]
    %v1981 = vld [vmem:[#allocation4 + $0x70] sm:$0xff]
    %v1982 = vld [vmem:[#allocation4 + $0x78] sm:$0xff]
    %v1983 = vld [vmem:[#allocation4 + $0x80] sm:$0xff]
    %v1984 = vld [vmem:[#allocation4 + $0x88] sm:$0xff]
    %v1985 = vld [vmem:[#allocation4 + $0x90] sm:$0xff]
    %v1986 = vld [vmem:[#allocation4 + $0x98] sm:$0xff]
    %v1987 = vld [vmem:[#allocation4 + $0xa0] sm:$0xff]
    %v1988 = vld [vmem:[#allocation4 + $0xa8] sm:$0xff]
    %v1989 = vld [vmem:[#allocation4 + $0xb0] sm:$0xff]
    %v1990 = vld [vmem:[#allocation4 + $0xb8] sm:$0xff]
    %v1991 = vld [vmem:[#allocation4 + $0xc0] sm:$0xff]
    %v1992 = vld [vmem:[#allocation4 + $0xc8] sm:$0xff]
    %v1993 = vld [vmem:[#allocation4 + $0xd0] sm:$0xff]
    %v1994 = vld [vmem:[#allocation4 + $0xd8] sm:$0xff]
    %v1995 = vld [vmem:[#allocation4 + $0xe0] sm:$0xff]
    %v1996 = vld [vmem:[#allocation4 + $0xe8] sm:$0xff]
    %v1997 = vld [vmem:[#allocation4 + $0xf0] sm:$0xff]
    %v1998 = vld [vmem:[#allocation4 + $0xf8] sm:$0xff]
    %v1999 = vld [vmem:[#allocation4 + $0x100] sm:$0xff]
    %v2000 = vld [vmem:[#allocation4 + $0x108] sm:$0xff]
    %v2001 = vld [vmem:[#allocation4 + $0x110] sm:$0xff]
    %v2002 = vld [vmem:[#allocation4 + $0x118] sm:$0xff]
    %v2003 = vld [vmem:[#allocation4 + $0x120] sm:$0xff]
    %v2004 = vld [vmem:[#allocation4 + $0x128] sm:$0xff]
    %v2005 = vld [vmem:[#allocation4 + $0x130] sm:$0xff]
    %v2006 = vld [vmem:[#allocation4 + $0x138] sm:$0xff]
    %v2007 = vld [vmem:[#allocation4 + $0x140] sm:$0xff]
    %v2008 = vld [vmem:[#allocation4 + $0x148] sm:$0xff]
    %v2009 = vld [vmem:[#allocation4 + $0x150] sm:$0xff]
    %v2010 = vld [vmem:[#allocation4 + $0x158] sm:$0xff]
    %v2011 = vld [vmem:[#allocation4 + $0x160] sm:$0xff]
    %v2012 = vld [vmem:[#allocation4 + $0x168] sm:$0xff]
    %v2013 = vld [vmem:[#allocation4 + $0x170] sm:$0xff]
    %v2014 = vld [vmem:[#allocation4 + $0x178] sm:$0xff]
    %v2015 = vld [vmem:[#allocation4 + $0x180] sm:$0xff]
    %v2016 = vld [vmem:[#allocation4 + $0x188] sm:$0xff]
    %v2017 = vld [vmem:[#allocation4 + $0x190] sm:$0xff]
    %v2018 = vld [vmem:[#allocation4 + $0x198] sm:$0xff]
    %v2019 = vld [vmem:[#allocation4 + $0x1a0] sm:$0xff]
    %v2020 = vld [vmem:[#allocation4 + $0x1a8] sm:$0xff]
    %v2021 = vld [vmem:[#allocation4 + $0x1b0] sm:$0xff]
    %v2022 = vld [vmem:[#allocation4 + $0x1b8] sm:$0xff]
    %v2023 = vld [vmem:[#allocation4 + $0x1c0] sm:$0xff]
    %v2024 = vld [vmem:[#allocation4 + $0x1c8] sm:$0xff]
    %v2025 = vld [vmem:[#allocation4 + $0x1d0] sm:$0xff]
    %v2026 = vld [vmem:[#allocation4 + $0x1d8] sm:$0xff]
    %v2027 = vld [vmem:[#allocation4 + $0x1e0] sm:$0xff]
    %v2028 = vld [vmem:[#allocation4 + $0x1e8] sm:$0xff]
    %v2029 = vld [vmem:[#allocation4 + $0x1f0] sm:$0xff]
    %v2030 = vld [vmem:[#allocation4 + $0x1f8] sm:$0xff]
    %v2031 = vld [vmem:[#allocation4 + $0x200] sm:$0xff]
    %v2032 = vld [vmem:[#allocation4 + $0x208] sm:$0xff]
    %v2033 = vld [vmem:[#allocation4 + $0x210] sm:$0xff]
    %v2034 = vld [vmem:[#allocation4 + $0x218] sm:$0xff]
    %v2035 = vld [vmem:[#allocation4 + $0x220] sm:$0xff]
    %v2036 = vld [vmem:[#allocation4 + $0x228] sm:$0xff]
    %v2037 = vld [vmem:[#allocation4 + $0x230] sm:$0xff]
    %v2038 = vld [vmem:[#allocation4 + $0x238] sm:$0xff]
    %v2039 = vld [vmem:[#allocation4 + $0x240] sm:$0xff]
    %v2040 = vld [vmem:[#allocation4 + $0x248] sm:$0xff]
    %v2041 = vld [vmem:[#allocation4 + $0x250] sm:$0xff]
    %v2042 = vld [vmem:[#allocation4 + $0x258] sm:$0xff]
    %v2043 = vld [vmem:[#allocation4 + $0x260] sm:$0xff]
    %v2044 = vld [vmem:[#allocation4 + $0x268] sm:$0xff]
    %v2045 = vld [vmem:[#allocation4 + $0x270] sm:$0xff]
    %v2046 = vld [vmem:[#allocation4 + $0x278] sm:$0xff]
    %v2047 = vld [vmem:[#allocation4 + $0x280] sm:$0xff]
    %v2048 = vld [vmem:[#allocation4 + $0x288] sm:$0xff]
    %v2049 = vld [vmem:[#allocation4 + $0x290] sm:$0xff]
    %v2050 = vld [vmem:[#allocation4 + $0x298] sm:$0xff]
    %v2051 = vld [vmem:[#allocation4 + $0x2a0] sm:$0xff]
    %v2052 = vld [vmem:[#allocation4 + $0x2a8] sm:$0xff]
    %v2053 = vld [vmem:[#allocation4 + $0x2b0] sm:$0xff]
    %v2054 = vld [vmem:[#allocation4 + $0x2b8] sm:$0xff]
    %v2055 = vld [vmem:[#allocation4 + $0x2c0] sm:$0xff]
    %v2056 = vld [vmem:[#allocation4 + $0x2c8] sm:$0xff]
    %v2057 = vld [vmem:[#allocation4 + $0x2d0] sm:$0xff]
    %v2058 = vld [vmem:[#allocation4 + $0x2d8] sm:$0xff]
    %v2059 = vld [vmem:[#allocation4 + $0x2e0] sm:$0xff]
    %v2060 = vld [vmem:[#allocation4 + $0x2e8] sm:$0xff]
    %v2061 = vld [vmem:[#allocation4 + $0x2f0] sm:$0xff]
    %v2062 = vld [vmem:[#allocation4 + $0x2f8] sm:$0xff]
    %v2063 = vld [vmem:[#allocation4 + $0x300] sm:$0xff]
    %v2064 = vld [vmem:[#allocation4 + $0x308] sm:$0xff]
    %v2065 = vld [vmem:[#allocation4 + $0x310] sm:$0xff]
    %v2066 = vld [vmem:[#allocation4 + $0x318] sm:$0xff]
    %v2067 = vld [vmem:[#allocation4 + $0x320] sm:$0xff]
    %v2068 = vld [vmem:[#allocation4 + $0x328] sm:$0xff]
    %v2069 = vld [vmem:[#allocation4 + $0x330] sm:$0xff]
    %v2070 = vld [vmem:[#allocation4 + $0x338] sm:$0xff]
    %v2071 = vld [vmem:[#allocation4 + $0x340] sm:$0xff]
    %v2072 = vld [vmem:[#allocation4 + $0x348] sm:$0xff]
    %v2073 = vld [vmem:[#allocation4 + $0x350] sm:$0xff]
    %v2074 = vld [vmem:[#allocation4 + $0x358] sm:$0xff]
    %v2075 = vld [vmem:[#allocation4 + $0x360] sm:$0xff]
    %v2076 = vld [vmem:[#allocation4 + $0x368] sm:$0xff]
    %v2077 = vld [vmem:[#allocation4 + $0x370] sm:$0xff]
    %v2078 = vld [vmem:[#allocation4 + $0x378] sm:$0xff]
    %v2079 = vld [vmem:[#allocation4 + $0x380] sm:$0xff]
    %v2080 = vld [vmem:[#allocation4 + $0x388] sm:$0xff]
    %v2081 = vld [vmem:[#allocation4 + $0x390] sm:$0xff]
    %v2082 = vld [vmem:[#allocation4 + $0x398] sm:$0xff]
    %v2083 = vld [vmem:[#allocation4 + $0x3a0] sm:$0xff]
    %v2084 = vld [vmem:[#allocation4 + $0x3a8] sm:$0xff]
    %v2085 = vld [vmem:[#allocation4 + $0x3b0] sm:$0xff]
    %v2086 = vld [vmem:[#allocation4 + $0x3b8] sm:$0xff]
    %v2087 = vld [vmem:[#allocation4 + $0x3c0] sm:$0xff]
    %v2088 = vld [vmem:[#allocation4 + $0x3c8] sm:$0xff]
    %v2089 = vld [vmem:[#allocation4 + $0x3d0] sm:$0xff]
    %v2090 = vld [vmem:[#allocation4 + $0x3d8] sm:$0xff]
    %v2091 = vld [vmem:[#allocation4 + $0x3e0] sm:$0xff]
    %v2092 = vld [vmem:[#allocation4 + $0x3e8] sm:$0xff]
    %v2093 = vld [vmem:[#allocation4 + $0x3f0] sm:$0xff]
    %v2094 = vld [vmem:[#allocation4 + $0x3f8] sm:$0xff]
    %v2095 = vld [vmem:[#allocation4 + $0x400] sm:$0xff]
    %v2096 = vld [vmem:[#allocation4 + $0x408] sm:$0xff]
    %v2097 = vld [vmem:[#allocation4 + $0x410] sm:$0xff]
    %v2098 = vld [vmem:[#allocation4 + $0x418] sm:$0xff]
    %v2099 = vld [vmem:[#allocation4 + $0x420] sm:$0xff]
    %v2100 = vld [vmem:[#allocation4 + $0x428] sm:$0xff]
    %v2101 = vld [vmem:[#allocation4 + $0x430] sm:$0xff]
    %v2102 = vld [vmem:[#allocation4 + $0x438] sm:$0xff]
    %v2103 = vld [vmem:[#allocation4 + $0x440] sm:$0xff]
    %v2104 = vld [vmem:[#allocation4 + $0x448] sm:$0xff]
    %v2105 = vld [vmem:[#allocation4 + $0x450] sm:$0xff]
    %v2106 = vld [vmem:[#allocation4 + $0x458] sm:$0xff]
    %v2107 = vld [vmem:[#allocation4 + $0x460] sm:$0xff]
    %v2108 = vld [vmem:[#allocation4 + $0x468] sm:$0xff]
    %v2109 = vld [vmem:[#allocation4 + $0x470] sm:$0xff]
    %v2110 = vld [vmem:[#allocation4 + $0x478] sm:$0xff]
    %v2111 = vld [vmem:[#allocation4 + $0x480] sm:$0xff]
    %v2112 = vld [vmem:[#allocation4 + $0x488] sm:$0xff]
    %v2113 = vld [vmem:[#allocation4 + $0x490] sm:$0xff]
    %v2114 = vld [vmem:[#allocation4 + $0x498] sm:$0xff]
    %v2115 = vld [vmem:[#allocation4 + $0x4a0] sm:$0xff]
    %v2116 = vld [vmem:[#allocation4 + $0x4a8] sm:$0xff]
    %v2117 = vld [vmem:[#allocation4 + $0x4b0] sm:$0xff]
    %v2118 = vld [vmem:[#allocation4 + $0x4b8] sm:$0xff]
    %v2119 = vld [vmem:[#allocation4 + $0x4c0] sm:$0xff]
    %v2120 = vld [vmem:[#allocation4 + $0x4c8] sm:$0xff]
    %v2121 = vld [vmem:[#allocation4 + $0x4d0] sm:$0xff]
    %v2122 = vld [vmem:[#allocation4 + $0x4d8] sm:$0xff]
    %v2123 = vld [vmem:[#allocation4 + $0x4e0] sm:$0xff]
    %v2124 = vld [vmem:[#allocation4 + $0x4e8] sm:$0xff]
    %v2125 = vld [vmem:[#allocation4 + $0x4f0] sm:$0xff]
    %v2126 = vld [vmem:[#allocation4 + $0x4f8] sm:$0xff]
    %v2127 = vld [vmem:[#allocation4 + $0x500] sm:$0xff]
    %v2128 = vld [vmem:[#allocation4 + $0x508] sm:$0xff]
    %v2129 = vld [vmem:[#allocation4 + $0x510] sm:$0xff]
    %v2130 = vld [vmem:[#allocation4 + $0x518] sm:$0xff]
    %v2131 = vld [vmem:[#allocation4 + $0x520] sm:$0xff]
    %v2132 = vld [vmem:[#allocation4 + $0x528] sm:$0xff]
    %v2133 = vld [vmem:[#allocation4 + $0x530] sm:$0xff]
    %v2134 = vld [vmem:[#allocation4 + $0x538] sm:$0xff]
    %v2135 = vld [vmem:[#allocation4 + $0x540] sm:$0xff]
    %v2136 = vld [vmem:[#allocation4 + $0x548] sm:$0xff]
    %v2137 = vld [vmem:[#allocation4 + $0x550] sm:$0xff]
    %v2138 = vld [vmem:[#allocation4 + $0x558] sm:$0xff]
    %v2139 = vld [vmem:[#allocation4 + $0x560] sm:$0xff]
    %v2140 = vld [vmem:[#allocation4 + $0x568] sm:$0xff]
    %v2141 = vld [vmem:[#allocation4 + $0x570] sm:$0xff]
    %v2142 = vld [vmem:[#allocation4 + $0x578] sm:$0xff]
    %v2143 = vld [vmem:[#allocation4 + $0x580] sm:$0xff]
    %v2144 = vld [vmem:[#allocation4 + $0x588] sm:$0xff]
    %v2145 = vld [vmem:[#allocation4 + $0x590] sm:$0xff]
    %v2146 = vld [vmem:[#allocation4 + $0x598] sm:$0xff]
    %v2147 = vld [vmem:[#allocation4 + $0x5a0] sm:$0xff]
    %v2148 = vld [vmem:[#allocation4 + $0x5a8] sm:$0xff]
    %v2149 = vld [vmem:[#allocation4 + $0x5b0] sm:$0xff]
    %v2150 = vld [vmem:[#allocation4 + $0x5b8] sm:$0xff]
    %v2151 = vld [vmem:[#allocation4 + $0x5c0] sm:$0xff]
    %v2152 = vld [vmem:[#allocation4 + $0x5c8] sm:$0xff]
    %v2153 = vld [vmem:[#allocation4 + $0x5d0] sm:$0xff]
    %v2154 = vld [vmem:[#allocation4 + $0x5d8] sm:$0xff]
    %v2155 = vld [vmem:[#allocation4 + $0x5e0] sm:$0xff]
    %v2156 = vld [vmem:[#allocation4 + $0x5e8] sm:$0xff]
    %v2157 = vld [vmem:[#allocation4 + $0x5f0] sm:$0xff]
    %v2158 = vld [vmem:[#allocation4 + $0x5f8] sm:$0xff]
    %v2159 = vld [vmem:[#allocation4 + $0x600] sm:$0xff]
    %v2160 = vld [vmem:[#allocation4 + $0x608] sm:$0xff]
    %v2161 = vld [vmem:[#allocation4 + $0x610] sm:$0xff]
    %v2162 = vld [vmem:[#allocation4 + $0x618] sm:$0xff]
    %v2163 = vld [vmem:[#allocation4 + $0x620] sm:$0xff]
    %v2164 = vld [vmem:[#allocation4 + $0x628] sm:$0xff]
    %v2165 = vld [vmem:[#allocation4 + $0x630] sm:$0xff]
    %v2166 = vld [vmem:[#allocation4 + $0x638] sm:$0xff]
    %v2167 = vld [vmem:[#allocation4 + $0x640] sm:$0xff]
    %v2168 = vld [vmem:[#allocation4 + $0x648] sm:$0xff]
    %v2169 = vld [vmem:[#allocation4 + $0x650] sm:$0xff]
    %v2170 = vld [vmem:[#allocation4 + $0x658] sm:$0xff]
    %v2171 = vld [vmem:[#allocation4 + $0x660] sm:$0xff]
    %v2172 = vld [vmem:[#allocation4 + $0x668] sm:$0xff]
    %v2173 = vld [vmem:[#allocation4 + $0x670] sm:$0xff]
    %v2174 = vld [vmem:[#allocation4 + $0x678] sm:$0xff]
    %v2175 = vld [vmem:[#allocation4 + $0x680] sm:$0xff]
    %v2176 = vld [vmem:[#allocation4 + $0x688] sm:$0xff]
    %v2177 = vld [vmem:[#allocation4 + $0x690] sm:$0xff]
    %v2178 = vld [vmem:[#allocation4 + $0x698] sm:$0xff]
    %v2179 = vld [vmem:[#allocation4 + $0x6a0] sm:$0xff]
    %v2180 = vld [vmem:[#allocation4 + $0x6a8] sm:$0xff]
    %v2181 = vld [vmem:[#allocation4 + $0x6b0] sm:$0xff]
    %v2182 = vld [vmem:[#allocation4 + $0x6b8] sm:$0xff]
    %v2183 = vld [vmem:[#allocation4 + $0x6c0] sm:$0xff]
    %v2184 = vld [vmem:[#allocation4 + $0x6c8] sm:$0xff]
    %v2185 = vld [vmem:[#allocation4 + $0x6d0] sm:$0xff]
    %v2186 = vld [vmem:[#allocation4 + $0x6d8] sm:$0xff]
    %v2187 = vld [vmem:[#allocation4 + $0x6e0] sm:$0xff]
    %v2188 = vld [vmem:[#allocation4 + $0x6e8] sm:$0xff]
    %v2189 = vld [vmem:[#allocation4 + $0x6f0] sm:$0xff]
    %v2190 = vld [vmem:[#allocation4 + $0x6f8] sm:$0xff]
    %v2191 = vld [vmem:[#allocation4 + $0x700] sm:$0xff]
    %v2192 = vld [vmem:[#allocation4 + $0x708] sm:$0xff]
    %v2193 = vld [vmem:[#allocation4 + $0x710] sm:$0xff]
    %v2194 = vld [vmem:[#allocation4 + $0x718] sm:$0xff]
    %v2195 = vld [vmem:[#allocation4 + $0x720] sm:$0xff]
    %v2196 = vld [vmem:[#allocation4 + $0x728] sm:$0xff]
    %v2197 = vld [vmem:[#allocation4 + $0x730] sm:$0xff]
    %v2198 = vld [vmem:[#allocation4 + $0x738] sm:$0xff]
    %v2199 = vld [vmem:[#allocation4 + $0x740] sm:$0xff]
    %v2200 = vld [vmem:[#allocation4 + $0x748] sm:$0xff]
    %v2201 = vld [vmem:[#allocation4 + $0x750] sm:$0xff]
    %v2202 = vld [vmem:[#allocation4 + $0x758] sm:$0xff]
    %v2203 = vld [vmem:[#allocation4 + $0x760] sm:$0xff]
    %v2204 = vld [vmem:[#allocation4 + $0x768] sm:$0xff]
    %v2205 = vld [vmem:[#allocation4 + $0x770] sm:$0xff]
    %v2206 = vld [vmem:[#allocation4 + $0x778] sm:$0xff]
    %v2207 = vld [vmem:[#allocation4 + $0x780] sm:$0xff]
    %v2208 = vld [vmem:[#allocation4 + $0x788] sm:$0xff]
    %v2209 = vld [vmem:[#allocation4 + $0x790] sm:$0xff]
    %v2210 = vld [vmem:[#allocation4 + $0x798] sm:$0xff]
    %v2211 = vld [vmem:[#allocation4 + $0x7a0] sm:$0xff]
    %v2212 = vld [vmem:[#allocation4 + $0x7a8] sm:$0xff]
    %v2213 = vld [vmem:[#allocation4 + $0x7b0] sm:$0xff]
    %v2214 = vld [vmem:[#allocation4 + $0x7b8] sm:$0xff]
    %v2215 = vld [vmem:[#allocation4 + $0x7c0] sm:$0xff]
    %v2216 = vld [vmem:[#allocation4 + $0x7c8] sm:$0xff]
    %v2217 = vld [vmem:[#allocation4 + $0x7d0] sm:$0xff]
    %v2218 = vld [vmem:[#allocation4 + $0x7d8] sm:$0xff]
    %v2219 = vld [vmem:[#allocation4 + $0x7e0] sm:$0xff]
    %v2220 = vld [vmem:[#allocation4 + $0x7e8] sm:$0xff]
    %v2221 = vld [vmem:[#allocation4 + $0x7f0] sm:$0xff]
    %v2222 = vld [vmem:[#allocation4 + $0x7f8] sm:$0xff]
    %v2223 = vld [vmem:[%s6] sm:$0xf]
    %v2225 = vlaneseq
    %v2226 = vshrl.u32 %v2225, 7
    %v2227 = vsub.s32 0, %v2226
    %v2228 = vrot.slane %v2223, %v2227
    %v2229 = vlaneseq
    %v2230 = vshrl.u32 %v2229, 7
    %v2231 = vsub.s32 1, %v2230
    %v2232 = vrot.slane %v2223, %v2231
    %v2233 = vlaneseq
    %v2234 = vshrl.u32 %v2233, 7
    %v2235 = vsub.s32 2, %v2234
    %v2236 = vrot.slane %v2223, %v2235
    %v2237 = vlaneseq
    %v2238 = vshrl.u32 %v2237, 7
    %v2239 = vsub.s32 3, %v2238
    %v2240 = vrot.slane %v2223, %v2239
    %v2501 = vunpack.c.l.b16 %v1967
    %v2502 = vunpack.c.h.b16 %v1967
    %v2503 = vunpack.c.l.b16 %v1968
    %v2504 = vunpack.c.h.b16 %v1968
    %v2505 = vunpack.c.l.b16 %v1969
    %v2506 = vunpack.c.h.b16 %v1969
    %v2507 = vunpack.c.l.b16 %v1970
    %v2508 = vunpack.c.h.b16 %v1970
    %v2509 = vunpack.c.l.b16 %v1971
    %v2510 = vunpack.c.h.b16 %v1971
    %v2511 = vunpack.c.l.b16 %v1972
    %v2512 = vunpack.c.h.b16 %v1972
    %v2513 = vunpack.c.l.b16 %v1973
    %v2514 = vunpack.c.h.b16 %v1973
    %v2515 = vunpack.c.l.b16 %v1974
    %v2516 = vunpack.c.h.b16 %v1974
    %v2517 = vunpack.c.l.b16 %v1975
    %v2518 = vunpack.c.h.b16 %v1975
    %v2519 = vunpack.c.l.b16 %v1976
    %v2520 = vunpack.c.h.b16 %v1976
    %v2521 = vunpack.c.l.b16 %v1977
    %v2522 = vunpack.c.h.b16 %v1977
    %v2523 = vunpack.c.l.b16 %v1978
    %v2524 = vunpack.c.h.b16 %v1978
    %v2525 = vunpack.c.l.b16 %v1979
    %v2526 = vunpack.c.h.b16 %v1979
    %v2527 = vunpack.c.l.b16 %v1980
    %v2528 = vunpack.c.h.b16 %v1980
    %v2529 = vunpack.c.l.b16 %v1981
    %v2530 = vunpack.c.h.b16 %v1981
    %v2531 = vunpack.c.l.b16 %v1982
    %v2532 = vunpack.c.h.b16 %v1982
    %v2533 = vunpack.c.l.b16 %v1983
    %v2534 = vunpack.c.h.b16 %v1983
    %v2535 = vunpack.c.l.b16 %v1984
    %v2536 = vunpack.c.h.b16 %v1984
    %v2537 = vunpack.c.l.b16 %v1985
    %v2538 = vunpack.c.h.b16 %v1985
    %v2539 = vunpack.c.l.b16 %v1986
    %v2540 = vunpack.c.h.b16 %v1986
    %v2541 = vunpack.c.l.b16 %v1987
    %v2542 = vunpack.c.h.b16 %v1987
    %v2543 = vunpack.c.l.b16 %v1988
    %v2544 = vunpack.c.h.b16 %v1988
    %v2545 = vunpack.c.l.b16 %v1989
    %v2546 = vunpack.c.h.b16 %v1989
    %v2547 = vunpack.c.l.b16 %v1990
    %v2548 = vunpack.c.h.b16 %v1990
    %v2549 = vunpack.c.l.b16 %v1991
    %v2550 = vunpack.c.h.b16 %v1991
    %v2551 = vunpack.c.l.b16 %v1992
    %v2552 = vunpack.c.h.b16 %v1992
    %v2553 = vunpack.c.l.b16 %v1993
    %v2554 = vunpack.c.h.b16 %v1993
    %v2555 = vunpack.c.l.b16 %v1994
    %v2556 = vunpack.c.h.b16 %v1994
    %v2557 = vunpack.c.l.b16 %v1995
    %v2558 = vunpack.c.h.b16 %v1995
    %v2559 = vunpack.c.l.b16 %v1996
    %v2560 = vunpack.c.h.b16 %v1996
    %v2561 = vunpack.c.l.b16 %v1997
    %v2562 = vunpack.c.h.b16 %v1997
    %v2563 = vunpack.c.l.b16 %v1998
    %v2564 = vunpack.c.h.b16 %v1998
    %v2565 = vunpack.c.l.b16 %v1999
    %v2566 = vunpack.c.h.b16 %v1999
    %v2567 = vunpack.c.l.b16 %v2000
    %v2568 = vunpack.c.h.b16 %v2000
    %v2569 = vunpack.c.l.b16 %v2001
    %v2570 = vunpack.c.h.b16 %v2001
    %v2571 = vunpack.c.l.b16 %v2002
    %v2572 = vunpack.c.h.b16 %v2002
    %v2573 = vunpack.c.l.b16 %v2003
    %v2574 = vunpack.c.h.b16 %v2003
    %v2575 = vunpack.c.l.b16 %v2004
    %v2576 = vunpack.c.h.b16 %v2004
    %v2577 = vunpack.c.l.b16 %v2005
    %v2578 = vunpack.c.h.b16 %v2005
    %v2579 = vunpack.c.l.b16 %v2006
    %v2580 = vunpack.c.h.b16 %v2006
    %v2581 = vunpack.c.l.b16 %v2007
    %v2582 = vunpack.c.h.b16 %v2007
    %v2583 = vunpack.c.l.b16 %v2008
    %v2584 = vunpack.c.h.b16 %v2008
    %v2585 = vunpack.c.l.b16 %v2009
    %v2586 = vunpack.c.h.b16 %v2009
    %v2587 = vunpack.c.l.b16 %v2010
    %v2588 = vunpack.c.h.b16 %v2010
    %v2589 = vunpack.c.l.b16 %v2011
    %v2590 = vunpack.c.h.b16 %v2011
    %v2591 = vunpack.c.l.b16 %v2012
    %v2592 = vunpack.c.h.b16 %v2012
    %v2593 = vunpack.c.l.b16 %v2013
    %v2594 = vunpack.c.h.b16 %v2013
    %v2595 = vunpack.c.l.b16 %v2014
    %v2596 = vunpack.c.h.b16 %v2014
    %v2597 = vunpack.c.l.b16 %v2015
    %v2598 = vunpack.c.h.b16 %v2015
    %v2599 = vunpack.c.l.b16 %v2016
    %v2600 = vunpack.c.h.b16 %v2016
    %v2601 = vunpack.c.l.b16 %v2017
    %v2602 = vunpack.c.h.b16 %v2017
    %v2603 = vunpack.c.l.b16 %v2018
    %v2604 = vunpack.c.h.b16 %v2018
    %v2605 = vunpack.c.l.b16 %v2019
    %v2606 = vunpack.c.h.b16 %v2019
    %v2607 = vunpack.c.l.b16 %v2020
    %v2608 = vunpack.c.h.b16 %v2020
    %v2609 = vunpack.c.l.b16 %v2021
    %v2610 = vunpack.c.h.b16 %v2021
    %v2611 = vunpack.c.l.b16 %v2022
    %v2612 = vunpack.c.h.b16 %v2022
    %v2613 = vunpack.c.l.b16 %v2023
    %v2614 = vunpack.c.h.b16 %v2023
    %v2615 = vunpack.c.l.b16 %v2024
    %v2616 = vunpack.c.h.b16 %v2024
    %v2617 = vunpack.c.l.b16 %v2025
    %v2618 = vunpack.c.h.b16 %v2025
    %v2619 = vunpack.c.l.b16 %v2026
    %v2620 = vunpack.c.h.b16 %v2026
    %v2621 = vunpack.c.l.b16 %v2027
    %v2622 = vunpack.c.h.b16 %v2027
    %v2623 = vunpack.c.l.b16 %v2028
    %v2624 = vunpack.c.h.b16 %v2028
    %v2625 = vunpack.c.l.b16 %v2029
    %v2626 = vunpack.c.h.b16 %v2029
    %v2627 = vunpack.c.l.b16 %v2030
    %v2628 = vunpack.c.h.b16 %v2030
    %v2629 = vunpack.c.l.b16 %v2031
    %v2630 = vunpack.c.h.b16 %v2031
    %v2631 = vunpack.c.l.b16 %v2032
    %v2632 = vunpack.c.h.b16 %v2032
    %v2633 = vunpack.c.l.b16 %v2033
    %v2634 = vunpack.c.h.b16 %v2033
    %v2635 = vunpack.c.l.b16 %v2034
    %v2636 = vunpack.c.h.b16 %v2034
    %v2637 = vunpack.c.l.b16 %v2035
    %v2638 = vunpack.c.h.b16 %v2035
    %v2639 = vunpack.c.l.b16 %v2036
    %v2640 = vunpack.c.h.b16 %v2036
    %v2641 = vunpack.c.l.b16 %v2037
    %v2642 = vunpack.c.h.b16 %v2037
    %v2643 = vunpack.c.l.b16 %v2038
    %v2644 = vunpack.c.h.b16 %v2038
    %v2645 = vunpack.c.l.b16 %v2039
    %v2646 = vunpack.c.h.b16 %v2039
    %v2647 = vunpack.c.l.b16 %v2040
    %v2648 = vunpack.c.h.b16 %v2040
    %v2649 = vunpack.c.l.b16 %v2041
    %v2650 = vunpack.c.h.b16 %v2041
    %v2651 = vunpack.c.l.b16 %v2042
    %v2652 = vunpack.c.h.b16 %v2042
    %v2653 = vunpack.c.l.b16 %v2043
    %v2654 = vunpack.c.h.b16 %v2043
    %v2655 = vunpack.c.l.b16 %v2044
    %v2656 = vunpack.c.h.b16 %v2044
    %v2657 = vunpack.c.l.b16 %v2045
    %v2658 = vunpack.c.h.b16 %v2045
    %v2659 = vunpack.c.l.b16 %v2046
    %v2660 = vunpack.c.h.b16 %v2046
    %v2661 = vunpack.c.l.b16 %v2047
    %v2662 = vunpack.c.h.b16 %v2047
    %v2663 = vunpack.c.l.b16 %v2048
    %v2664 = vunpack.c.h.b16 %v2048
    %v2665 = vunpack.c.l.b16 %v2049
    %v2666 = vunpack.c.h.b16 %v2049
    %v2667 = vunpack.c.l.b16 %v2050
    %v2668 = vunpack.c.h.b16 %v2050
    %v2669 = vunpack.c.l.b16 %v2051
    %v2670 = vunpack.c.h.b16 %v2051
    %v2671 = vunpack.c.l.b16 %v2052
    %v2672 = vunpack.c.h.b16 %v2052
    %v2673 = vunpack.c.l.b16 %v2053
    %v2674 = vunpack.c.h.b16 %v2053
    %v2675 = vunpack.c.l.b16 %v2054
    %v2676 = vunpack.c.h.b16 %v2054
    %v2677 = vunpack.c.l.b16 %v2055
    %v2678 = vunpack.c.h.b16 %v2055
    %v2679 = vunpack.c.l.b16 %v2056
    %v2680 = vunpack.c.h.b16 %v2056
    %v2681 = vunpack.c.l.b16 %v2057
    %v2682 = vunpack.c.h.b16 %v2057
    %v2683 = vunpack.c.l.b16 %v2058
    %v2684 = vunpack.c.h.b16 %v2058
    %v2685 = vunpack.c.l.b16 %v2059
    %v2686 = vunpack.c.h.b16 %v2059
    %v2687 = vunpack.c.l.b16 %v2060
    %v2688 = vunpack.c.h.b16 %v2060
    %v2689 = vunpack.c.l.b16 %v2061
    %v2690 = vunpack.c.h.b16 %v2061
    %v2691 = vunpack.c.l.b16 %v2062
    %v2692 = vunpack.c.h.b16 %v2062
    %v2693 = vunpack.c.l.b16 %v2063
    %v2694 = vunpack.c.h.b16 %v2063
    %v2695 = vunpack.c.l.b16 %v2064
    %v2696 = vunpack.c.h.b16 %v2064
    %v2697 = vunpack.c.l.b16 %v2065
    %v2698 = vunpack.c.h.b16 %v2065
    %v2699 = vunpack.c.l.b16 %v2066
    %v2700 = vunpack.c.h.b16 %v2066
    %v2701 = vunpack.c.l.b16 %v2067
    %v2702 = vunpack.c.h.b16 %v2067
    %v2703 = vunpack.c.l.b16 %v2068
    %v2704 = vunpack.c.h.b16 %v2068
    %v2705 = vunpack.c.l.b16 %v2069
    %v2706 = vunpack.c.h.b16 %v2069
    %v2707 = vunpack.c.l.b16 %v2070
    %v2708 = vunpack.c.h.b16 %v2070
    %v2709 = vunpack.c.l.b16 %v2071
    %v2710 = vunpack.c.h.b16 %v2071
    %v2711 = vunpack.c.l.b16 %v2072
    %v2712 = vunpack.c.h.b16 %v2072
    %v2713 = vunpack.c.l.b16 %v2073
    %v2714 = vunpack.c.h.b16 %v2073
    %v2715 = vunpack.c.l.b16 %v2074
    %v2716 = vunpack.c.h.b16 %v2074
    %v2717 = vunpack.c.l.b16 %v2075
    %v2718 = vunpack.c.h.b16 %v2075
    %v2719 = vunpack.c.l.b16 %v2076
    %v2720 = vunpack.c.h.b16 %v2076
    %v2721 = vunpack.c.l.b16 %v2077
    %v2722 = vunpack.c.h.b16 %v2077
    %v2723 = vunpack.c.l.b16 %v2078
    %v2724 = vunpack.c.h.b16 %v2078
    %v2725 = vunpack.c.l.b16 %v2079
    %v2726 = vunpack.c.h.b16 %v2079
    %v2727 = vunpack.c.l.b16 %v2080
    %v2728 = vunpack.c.h.b16 %v2080
    %v2729 = vunpack.c.l.b16 %v2081
    %v2730 = vunpack.c.h.b16 %v2081
    %v2731 = vunpack.c.l.b16 %v2082
    %v2732 = vunpack.c.h.b16 %v2082
    %v2733 = vunpack.c.l.b16 %v2083
    %v2734 = vunpack.c.h.b16 %v2083
    %v2735 = vunpack.c.l.b16 %v2084
    %v2736 = vunpack.c.h.b16 %v2084
    %v2737 = vunpack.c.l.b16 %v2085
    %v2738 = vunpack.c.h.b16 %v2085
    %v2739 = vunpack.c.l.b16 %v2086
    %v2740 = vunpack.c.h.b16 %v2086
    %v2741 = vunpack.c.l.b16 %v2087
    %v2742 = vunpack.c.h.b16 %v2087
    %v2743 = vunpack.c.l.b16 %v2088
    %v2744 = vunpack.c.h.b16 %v2088
    %v2745 = vunpack.c.l.b16 %v2089
    %v2746 = vunpack.c.h.b16 %v2089
    %v2747 = vunpack.c.l.b16 %v2090
    %v2748 = vunpack.c.h.b16 %v2090
    %v2749 = vunpack.c.l.b16 %v2091
    %v2750 = vunpack.c.h.b16 %v2091
    %v2751 = vunpack.c.l.b16 %v2092
    %v2752 = vunpack.c.h.b16 %v2092
    %v2753 = vunpack.c.l.b16 %v2093
    %v2754 = vunpack.c.h.b16 %v2093
    %v2755 = vunpack.c.l.b16 %v2094
    %v2756 = vunpack.c.h.b16 %v2094
    %v2757 = vunpack.c.l.b16 %v2095
    %v2758 = vunpack.c.h.b16 %v2095
    %v2759 = vunpack.c.l.b16 %v2096
    %v2760 = vunpack.c.h.b16 %v2096
    %v2761 = vunpack.c.l.b16 %v2097
    %v2762 = vunpack.c.h.b16 %v2097
    %v2763 = vunpack.c.l.b16 %v2098
    %v2764 = vunpack.c.h.b16 %v2098
    %v2765 = vunpack.c.l.b16 %v2099
    %v2766 = vunpack.c.h.b16 %v2099
    %v2767 = vunpack.c.l.b16 %v2100
    %v2768 = vunpack.c.h.b16 %v2100
    %v2769 = vunpack.c.l.b16 %v2101
    %v2770 = vunpack.c.h.b16 %v2101
    %v2771 = vunpack.c.l.b16 %v2102
    %v2772 = vunpack.c.h.b16 %v2102
    %v2773 = vunpack.c.l.b16 %v2103
    %v2774 = vunpack.c.h.b16 %v2103
    %v2775 = vunpack.c.l.b16 %v2104
    %v2776 = vunpack.c.h.b16 %v2104
    %v2777 = vunpack.c.l.b16 %v2105
    %v2778 = vunpack.c.h.b16 %v2105
    %v2779 = vunpack.c.l.b16 %v2106
    %v2780 = vunpack.c.h.b16 %v2106
    %v2781 = vunpack.c.l.b16 %v2107
    %v2782 = vunpack.c.h.b16 %v2107
    %v2783 = vunpack.c.l.b16 %v2108
    %v2784 = vunpack.c.h.b16 %v2108
    %v2785 = vunpack.c.l.b16 %v2109
    %v2786 = vunpack.c.h.b16 %v2109
    %v2787 = vunpack.c.l.b16 %v2110
    %v2788 = vunpack.c.h.b16 %v2110
    %v2789 = vunpack.c.l.b16 %v2111
    %v2790 = vunpack.c.h.b16 %v2111
    %v2791 = vunpack.c.l.b16 %v2112
    %v2792 = vunpack.c.h.b16 %v2112
    %v2793 = vunpack.c.l.b16 %v2113
    %v2794 = vunpack.c.h.b16 %v2113
    %v2795 = vunpack.c.l.b16 %v2114
    %v2796 = vunpack.c.h.b16 %v2114
    %v2797 = vunpack.c.l.b16 %v2115
    %v2798 = vunpack.c.h.b16 %v2115
    %v2799 = vunpack.c.l.b16 %v2116
    %v2800 = vunpack.c.h.b16 %v2116
    %v2801 = vunpack.c.l.b16 %v2117
    %v2802 = vunpack.c.h.b16 %v2117
    %v2803 = vunpack.c.l.b16 %v2118
    %v2804 = vunpack.c.h.b16 %v2118
    %v2805 = vunpack.c.l.b16 %v2119
    %v2806 = vunpack.c.h.b16 %v2119
    %v2807 = vunpack.c.l.b16 %v2120
    %v2808 = vunpack.c.h.b16 %v2120
    %v2809 = vunpack.c.l.b16 %v2121
    %v2810 = vunpack.c.h.b16 %v2121
    %v2811 = vunpack.c.l.b16 %v2122
    %v2812 = vunpack.c.h.b16 %v2122
    %v2813 = vunpack.c.l.b16 %v2123
    %v2814 = vunpack.c.h.b16 %v2123
    %v2815 = vunpack.c.l.b16 %v2124
    %v2816 = vunpack.c.h.b16 %v2124
    %v2817 = vunpack.c.l.b16 %v2125
    %v2818 = vunpack.c.h.b16 %v2125
    %v2819 = vunpack.c.l.b16 %v2126
    %v2820 = vunpack.c.h.b16 %v2126
    %v2821 = vunpack.c.l.b16 %v2127
    %v2822 = vunpack.c.h.b16 %v2127
    %v2823 = vunpack.c.l.b16 %v2128
    %v2824 = vunpack.c.h.b16 %v2128
    %v2825 = vunpack.c.l.b16 %v2129
    %v2826 = vunpack.c.h.b16 %v2129
    %v2827 = vunpack.c.l.b16 %v2130
    %v2828 = vunpack.c.h.b16 %v2130
    %v2829 = vunpack.c.l.b16 %v2131
    %v2830 = vunpack.c.h.b16 %v2131
    %v2831 = vunpack.c.l.b16 %v2132
    %v2832 = vunpack.c.h.b16 %v2132
    %v2833 = vunpack.c.l.b16 %v2133
    %v2834 = vunpack.c.h.b16 %v2133
    %v2835 = vunpack.c.l.b16 %v2134
    %v2836 = vunpack.c.h.b16 %v2134
    %v2837 = vunpack.c.l.b16 %v2135
    %v2838 = vunpack.c.h.b16 %v2135
    %v2839 = vunpack.c.l.b16 %v2136
    %v2840 = vunpack.c.h.b16 %v2136
    %v2841 = vunpack.c.l.b16 %v2137
    %v2842 = vunpack.c.h.b16 %v2137
    %v2843 = vunpack.c.l.b16 %v2138
    %v2844 = vunpack.c.h.b16 %v2138
    %v2845 = vunpack.c.l.b16 %v2139
    %v2846 = vunpack.c.h.b16 %v2139
    %v2847 = vunpack.c.l.b16 %v2140
    %v2848 = vunpack.c.h.b16 %v2140
    %v2849 = vunpack.c.l.b16 %v2141
    %v2850 = vunpack.c.h.b16 %v2141
    %v2851 = vunpack.c.l.b16 %v2142
    %v2852 = vunpack.c.h.b16 %v2142
    %v2853 = vunpack.c.l.b16 %v2143
    %v2854 = vunpack.c.h.b16 %v2143
    %v2855 = vunpack.c.l.b16 %v2144
    %v2856 = vunpack.c.h.b16 %v2144
    %v2857 = vunpack.c.l.b16 %v2145
    %v2858 = vunpack.c.h.b16 %v2145
    %v2859 = vunpack.c.l.b16 %v2146
    %v2860 = vunpack.c.h.b16 %v2146
    %v2861 = vunpack.c.l.b16 %v2147
    %v2862 = vunpack.c.h.b16 %v2147
    %v2863 = vunpack.c.l.b16 %v2148
    %v2864 = vunpack.c.h.b16 %v2148
    %v2865 = vunpack.c.l.b16 %v2149
    %v2866 = vunpack.c.h.b16 %v2149
    %v2867 = vunpack.c.l.b16 %v2150
    %v2868 = vunpack.c.h.b16 %v2150
    %v2869 = vunpack.c.l.b16 %v2151
    %v2870 = vunpack.c.h.b16 %v2151
    %v2871 = vunpack.c.l.b16 %v2152
    %v2872 = vunpack.c.h.b16 %v2152
    %v2873 = vunpack.c.l.b16 %v2153
    %v2874 = vunpack.c.h.b16 %v2153
    %v2875 = vunpack.c.l.b16 %v2154
    %v2876 = vunpack.c.h.b16 %v2154
    %v2877 = vunpack.c.l.b16 %v2155
    %v2878 = vunpack.c.h.b16 %v2155
    %v2879 = vunpack.c.l.b16 %v2156
    %v2880 = vunpack.c.h.b16 %v2156
    %v2881 = vunpack.c.l.b16 %v2157
    %v2882 = vunpack.c.h.b16 %v2157
    %v2883 = vunpack.c.l.b16 %v2158
    %v2884 = vunpack.c.h.b16 %v2158
    %v2885 = vunpack.c.l.b16 %v2159
    %v2886 = vunpack.c.h.b16 %v2159
    %v2887 = vunpack.c.l.b16 %v2160
    %v2888 = vunpack.c.h.b16 %v2160
    %v2889 = vunpack.c.l.b16 %v2161
    %v2890 = vunpack.c.h.b16 %v2161
    %v2891 = vunpack.c.l.b16 %v2162
    %v2892 = vunpack.c.h.b16 %v2162
    %v2893 = vunpack.c.l.b16 %v2163
    %v2894 = vunpack.c.h.b16 %v2163
    %v2895 = vunpack.c.l.b16 %v2164
    %v2896 = vunpack.c.h.b16 %v2164
    %v2897 = vunpack.c.l.b16 %v2165
    %v2898 = vunpack.c.h.b16 %v2165
    %v2899 = vunpack.c.l.b16 %v2166
    %v2900 = vunpack.c.h.b16 %v2166
    %v2901 = vunpack.c.l.b16 %v2167
    %v2902 = vunpack.c.h.b16 %v2167
    %v2903 = vunpack.c.l.b16 %v2168
    %v2904 = vunpack.c.h.b16 %v2168
    %v2905 = vunpack.c.l.b16 %v2169
    %v2906 = vunpack.c.h.b16 %v2169
    %v2907 = vunpack.c.l.b16 %v2170
    %v2908 = vunpack.c.h.b16 %v2170
    %v2909 = vunpack.c.l.b16 %v2171
    %v2910 = vunpack.c.h.b16 %v2171
    %v2911 = vunpack.c.l.b16 %v2172
    %v2912 = vunpack.c.h.b16 %v2172
    %v2913 = vunpack.c.l.b16 %v2173
    %v2914 = vunpack.c.h.b16 %v2173
    %v2915 = vunpack.c.l.b16 %v2174
    %v2916 = vunpack.c.h.b16 %v2174
    %v2917 = vunpack.c.l.b16 %v2175
    %v2918 = vunpack.c.h.b16 %v2175
    %v2919 = vunpack.c.l.b16 %v2176
    %v2920 = vunpack.c.h.b16 %v2176
    %v2921 = vunpack.c.l.b16 %v2177
    %v2922 = vunpack.c.h.b16 %v2177
    %v2923 = vunpack.c.l.b16 %v2178
    %v2924 = vunpack.c.h.b16 %v2178
    %v2925 = vunpack.c.l.b16 %v2179
    %v2926 = vunpack.c.h.b16 %v2179
    %v2927 = vunpack.c.l.b16 %v2180
    %v2928 = vunpack.c.h.b16 %v2180
    %v2929 = vunpack.c.l.b16 %v2181
    %v2930 = vunpack.c.h.b16 %v2181
    %v2931 = vunpack.c.l.b16 %v2182
    %v2932 = vunpack.c.h.b16 %v2182
    %v2933 = vunpack.c.l.b16 %v2183
    %v2934 = vunpack.c.h.b16 %v2183
    %v2935 = vunpack.c.l.b16 %v2184
    %v2936 = vunpack.c.h.b16 %v2184
    %v2937 = vunpack.c.l.b16 %v2185
    %v2938 = vunpack.c.h.b16 %v2185
    %v2939 = vunpack.c.l.b16 %v2186
    %v2940 = vunpack.c.h.b16 %v2186
    %v2941 = vunpack.c.l.b16 %v2187
    %v2942 = vunpack.c.h.b16 %v2187
    %v2943 = vunpack.c.l.b16 %v2188
    %v2944 = vunpack.c.h.b16 %v2188
    %v2945 = vunpack.c.l.b16 %v2189
    %v2946 = vunpack.c.h.b16 %v2189
    %v2947 = vunpack.c.l.b16 %v2190
    %v2948 = vunpack.c.h.b16 %v2190
    %v2949 = vunpack.c.l.b16 %v2191
    %v2950 = vunpack.c.h.b16 %v2191
    %v2951 = vunpack.c.l.b16 %v2192
    %v2952 = vunpack.c.h.b16 %v2192
    %v2953 = vunpack.c.l.b16 %v2193
    %v2954 = vunpack.c.h.b16 %v2193
    %v2955 = vunpack.c.l.b16 %v2194
    %v2956 = vunpack.c.h.b16 %v2194
    %v2957 = vunpack.c.l.b16 %v2195
    %v2958 = vunpack.c.h.b16 %v2195
    %v2959 = vunpack.c.l.b16 %v2196
    %v2960 = vunpack.c.h.b16 %v2196
    %v2961 = vunpack.c.l.b16 %v2197
    %v2962 = vunpack.c.h.b16 %v2197
    %v2963 = vunpack.c.l.b16 %v2198
    %v2964 = vunpack.c.h.b16 %v2198
    %v2965 = vunpack.c.l.b16 %v2199
    %v2966 = vunpack.c.h.b16 %v2199
    %v2967 = vunpack.c.l.b16 %v2200
    %v2968 = vunpack.c.h.b16 %v2200
    %v2969 = vunpack.c.l.b16 %v2201
    %v2970 = vunpack.c.h.b16 %v2201
    %v2971 = vunpack.c.l.b16 %v2202
    %v2972 = vunpack.c.h.b16 %v2202
    %v2973 = vunpack.c.l.b16 %v2203
    %v2974 = vunpack.c.h.b16 %v2203
    %v2975 = vunpack.c.l.b16 %v2204
    %v2976 = vunpack.c.h.b16 %v2204
    %v2977 = vunpack.c.l.b16 %v2205
    %v2978 = vunpack.c.h.b16 %v2205
    %v2979 = vunpack.c.l.b16 %v2206
    %v2980 = vunpack.c.h.b16 %v2206
    %v2981 = vunpack.c.l.b16 %v2207
    %v2982 = vunpack.c.h.b16 %v2207
    %v2983 = vunpack.c.l.b16 %v2208
    %v2984 = vunpack.c.h.b16 %v2208
    %v2985 = vunpack.c.l.b16 %v2209
    %v2986 = vunpack.c.h.b16 %v2209
    %v2987 = vunpack.c.l.b16 %v2210
    %v2988 = vunpack.c.h.b16 %v2210
    %v2989 = vunpack.c.l.b16 %v2211
    %v2990 = vunpack.c.h.b16 %v2211
    %v2991 = vunpack.c.l.b16 %v2212
    %v2992 = vunpack.c.h.b16 %v2212
    %v2993 = vunpack.c.l.b16 %v2213
    %v2994 = vunpack.c.h.b16 %v2213
    %v2995 = vunpack.c.l.b16 %v2214
    %v2996 = vunpack.c.h.b16 %v2214
    %v2997 = vunpack.c.l.b16 %v2215
    %v2998 = vunpack.c.h.b16 %v2215
    %v2999 = vunpack.c.l.b16 %v2216
    %v3000 = vunpack.c.h.b16 %v2216
    %v3001 = vunpack.c.l.b16 %v2217
    %v3002 = vunpack.c.h.b16 %v2217
    %v3003 = vunpack.c.l.b16 %v2218
    %v3004 = vunpack.c.h.b16 %v2218
    %v3005 = vunpack.c.l.b16 %v2219
    %v3006 = vunpack.c.h.b16 %v2219
    %v3007 = vunpack.c.l.b16 %v2220
    %v3008 = vunpack.c.h.b16 %v2220
    %v3009 = vunpack.c.l.b16 %v2221
    %v3010 = vunpack.c.h.b16 %v2221
    %v3011 = vunpack.c.l.b16 %v2222
    %v3012 = vunpack.c.h.b16 %v2222
    %v3013 = vpack.c.b16 %v2505, %v2501
    %v3014 = vpack.c.b16 %v2506, %v2502
    %v3015 = vpack.c.b16 %v2507, %v2503
    %v3016 = vpack.c.b16 %v2508, %v2504
    %v3017 = vpack.c.b16 %v2513, %v2509
    %v3018 = vpack.c.b16 %v2514, %v2510
    %v3019 = vpack.c.b16 %v2515, %v2511
    %v3020 = vpack.c.b16 %v2516, %v2512
    %v3021 = vpack.c.b16 %v2521, %v2517
    %v3022 = vpack.c.b16 %v2522, %v2518
    %v3023 = vpack.c.b16 %v2523, %v2519
    %v3024 = vpack.c.b16 %v2524, %v2520
    %v3025 = vpack.c.b16 %v2529, %v2525
    %v3026 = vpack.c.b16 %v2530, %v2526
    %v3027 = vpack.c.b16 %v2531, %v2527
    %v3028 = vpack.c.b16 %v2532, %v2528
    %v3029 = vpack.c.b16 %v2537, %v2533
    %v3030 = vpack.c.b16 %v2538, %v2534
    %v3031 = vpack.c.b16 %v2539, %v2535
    %v3032 = vpack.c.b16 %v2540, %v2536
    %v3033 = vpack.c.b16 %v2545, %v2541
    %v3034 = vpack.c.b16 %v2546, %v2542
    %v3035 = vpack.c.b16 %v2547, %v2543
    %v3036 = vpack.c.b16 %v2548, %v2544
    %v3037 = vpack.c.b16 %v2553, %v2549
    %v3038 = vpack.c.b16 %v2554, %v2550
    %v3039 = vpack.c.b16 %v2555, %v2551
    %v3040 = vpack.c.b16 %v2556, %v2552
    %v3041 = vpack.c.b16 %v2561, %v2557
    %v3042 = vpack.c.b16 %v2562, %v2558
    %v3043 = vpack.c.b16 %v2563, %v2559
    %v3044 = vpack.c.b16 %v2564, %v2560
    %v3045 = vpack.c.b16 %v2569, %v2565
    %v3046 = vpack.c.b16 %v2570, %v2566
    %v3047 = vpack.c.b16 %v2571, %v2567
    %v3048 = vpack.c.b16 %v2572, %v2568
    %v3049 = vpack.c.b16 %v2577, %v2573
    %v3050 = vpack.c.b16 %v2578, %v2574
    %v3051 = vpack.c.b16 %v2579, %v2575
    %v3052 = vpack.c.b16 %v2580, %v2576
    %v3053 = vpack.c.b16 %v2585, %v2581
    %v3054 = vpack.c.b16 %v2586, %v2582
    %v3055 = vpack.c.b16 %v2587, %v2583
    %v3056 = vpack.c.b16 %v2588, %v2584
    %v3057 = vpack.c.b16 %v2593, %v2589
    %v3058 = vpack.c.b16 %v2594, %v2590
    %v3059 = vpack.c.b16 %v2595, %v2591
    %v3060 = vpack.c.b16 %v2596, %v2592
    %v3061 = vpack.c.b16 %v2601, %v2597
    %v3062 = vpack.c.b16 %v2602, %v2598
    %v3063 = vpack.c.b16 %v2603, %v2599
    %v3064 = vpack.c.b16 %v2604, %v2600
    %v3065 = vpack.c.b16 %v2609, %v2605
    %v3066 = vpack.c.b16 %v2610, %v2606
    %v3067 = vpack.c.b16 %v2611, %v2607
    %v3068 = vpack.c.b16 %v2612, %v2608
    %v3069 = vpack.c.b16 %v2617, %v2613
    %v3070 = vpack.c.b16 %v2618, %v2614
    %v3071 = vpack.c.b16 %v2619, %v2615
    %v3072 = vpack.c.b16 %v2620, %v2616
    %v3073 = vpack.c.b16 %v2625, %v2621
    %v3074 = vpack.c.b16 %v2626, %v2622
    %v3075 = vpack.c.b16 %v2627, %v2623
    %v3076 = vpack.c.b16 %v2628, %v2624
    %v3077 = vpack.c.b16 %v2633, %v2629
    %v3078 = vpack.c.b16 %v2634, %v2630
    %v3079 = vpack.c.b16 %v2635, %v2631
    %v3080 = vpack.c.b16 %v2636, %v2632
    %v3081 = vpack.c.b16 %v2641, %v2637
    %v3082 = vpack.c.b16 %v2642, %v2638
    %v3083 = vpack.c.b16 %v2643, %v2639
    %v3084 = vpack.c.b16 %v2644, %v2640
    %v3085 = vpack.c.b16 %v2649, %v2645
    %v3086 = vpack.c.b16 %v2650, %v2646
    %v3087 = vpack.c.b16 %v2651, %v2647
    %v3088 = vpack.c.b16 %v2652, %v2648
    %v3089 = vpack.c.b16 %v2657, %v2653
    %v3090 = vpack.c.b16 %v2658, %v2654
    %v3091 = vpack.c.b16 %v2659, %v2655
    %v3092 = vpack.c.b16 %v2660, %v2656
    %v3093 = vpack.c.b16 %v2665, %v2661
    %v3094 = vpack.c.b16 %v2666, %v2662
    %v3095 = vpack.c.b16 %v2667, %v2663
    %v3096 = vpack.c.b16 %v2668, %v2664
    %v3097 = vpack.c.b16 %v2673, %v2669
    %v3098 = vpack.c.b16 %v2674, %v2670
    %v3099 = vpack.c.b16 %v2675, %v2671
    %v3100 = vpack.c.b16 %v2676, %v2672
    %v3101 = vpack.c.b16 %v2681, %v2677
    %v3102 = vpack.c.b16 %v2682, %v2678
    %v3103 = vpack.c.b16 %v2683, %v2679
    %v3104 = vpack.c.b16 %v2684, %v2680
    %v3105 = vpack.c.b16 %v2689, %v2685
    %v3106 = vpack.c.b16 %v2690, %v2686
    %v3107 = vpack.c.b16 %v2691, %v2687
    %v3108 = vpack.c.b16 %v2692, %v2688
    %v3109 = vpack.c.b16 %v2697, %v2693
    %v3110 = vpack.c.b16 %v2698, %v2694
    %v3111 = vpack.c.b16 %v2699, %v2695
    %v3112 = vpack.c.b16 %v2700, %v2696
    %v3113 = vpack.c.b16 %v2705, %v2701
    %v3114 = vpack.c.b16 %v2706, %v2702
    %v3115 = vpack.c.b16 %v2707, %v2703
    %v3116 = vpack.c.b16 %v2708, %v2704
    %v3117 = vpack.c.b16 %v2713, %v2709
    %v3118 = vpack.c.b16 %v2714, %v2710
    %v3119 = vpack.c.b16 %v2715, %v2711
    %v3120 = vpack.c.b16 %v2716, %v2712
    %v3121 = vpack.c.b16 %v2721, %v2717
    %v3122 = vpack.c.b16 %v2722, %v2718
    %v3123 = vpack.c.b16 %v2723, %v2719
    %v3124 = vpack.c.b16 %v2724, %v2720
    %v3125 = vpack.c.b16 %v2729, %v2725
    %v3126 = vpack.c.b16 %v2730, %v2726
    %v3127 = vpack.c.b16 %v2731, %v2727
    %v3128 = vpack.c.b16 %v2732, %v2728
    %v3129 = vpack.c.b16 %v2737, %v2733
    %v3130 = vpack.c.b16 %v2738, %v2734
    %v3131 = vpack.c.b16 %v2739, %v2735
    %v3132 = vpack.c.b16 %v2740, %v2736
    %v3133 = vpack.c.b16 %v2745, %v2741
    %v3134 = vpack.c.b16 %v2746, %v2742
    %v3135 = vpack.c.b16 %v2747, %v2743
    %v3136 = vpack.c.b16 %v2748, %v2744
    %v3137 = vpack.c.b16 %v2753, %v2749
    %v3138 = vpack.c.b16 %v2754, %v2750
    %v3139 = vpack.c.b16 %v2755, %v2751
    %v3140 = vpack.c.b16 %v2756, %v2752
    %v3141 = vpack.c.b16 %v2761, %v2757
    %v3142 = vpack.c.b16 %v2762, %v2758
    %v3143 = vpack.c.b16 %v2763, %v2759
    %v3144 = vpack.c.b16 %v2764, %v2760
    %v3145 = vpack.c.b16 %v2769, %v2765
    %v3146 = vpack.c.b16 %v2770, %v2766
    %v3147 = vpack.c.b16 %v2771, %v2767
    %v3148 = vpack.c.b16 %v2772, %v2768
    %v3149 = vpack.c.b16 %v2777, %v2773
    %v3150 = vpack.c.b16 %v2778, %v2774
    %v3151 = vpack.c.b16 %v2779, %v2775
    %v3152 = vpack.c.b16 %v2780, %v2776
    %v3153 = vpack.c.b16 %v2785, %v2781
    %v3154 = vpack.c.b16 %v2786, %v2782
    %v3155 = vpack.c.b16 %v2787, %v2783
    %v3156 = vpack.c.b16 %v2788, %v2784
    %v3157 = vpack.c.b16 %v2793, %v2789
    %v3158 = vpack.c.b16 %v2794, %v2790
    %v3159 = vpack.c.b16 %v2795, %v2791
    %v3160 = vpack.c.b16 %v2796, %v2792
    %v3161 = vpack.c.b16 %v2801, %v2797
    %v3162 = vpack.c.b16 %v2802, %v2798
    %v3163 = vpack.c.b16 %v2803, %v2799
    %v3164 = vpack.c.b16 %v2804, %v2800
    %v3165 = vpack.c.b16 %v2809, %v2805
    %v3166 = vpack.c.b16 %v2810, %v2806
    %v3167 = vpack.c.b16 %v2811, %v2807
    %v3168 = vpack.c.b16 %v2812, %v2808
    %v3169 = vpack.c.b16 %v2817, %v2813
    %v3170 = vpack.c.b16 %v2818, %v2814
    %v3171 = vpack.c.b16 %v2819, %v2815
    %v3172 = vpack.c.b16 %v2820, %v2816
    %v3173 = vpack.c.b16 %v2825, %v2821
    %v3174 = vpack.c.b16 %v2826, %v2822
    %v3175 = vpack.c.b16 %v2827, %v2823
    %v3176 = vpack.c.b16 %v2828, %v2824
    %v3177 = vpack.c.b16 %v2833, %v2829
    %v3178 = vpack.c.b16 %v2834, %v2830
    %v3179 = vpack.c.b16 %v2835, %v2831
    %v3180 = vpack.c.b16 %v2836, %v2832
    %v3181 = vpack.c.b16 %v2841, %v2837
    %v3182 = vpack.c.b16 %v2842, %v2838
    %v3183 = vpack.c.b16 %v2843, %v2839
    %v3184 = vpack.c.b16 %v2844, %v2840
    %v3185 = vpack.c.b16 %v2849, %v2845
    %v3186 = vpack.c.b16 %v2850, %v2846
    %v3187 = vpack.c.b16 %v2851, %v2847
    %v3188 = vpack.c.b16 %v2852, %v2848
    %v3189 = vpack.c.b16 %v2857, %v2853
    %v3190 = vpack.c.b16 %v2858, %v2854
    %v3191 = vpack.c.b16 %v2859, %v2855
    %v3192 = vpack.c.b16 %v2860, %v2856
    %v3193 = vpack.c.b16 %v2865, %v2861
    %v3194 = vpack.c.b16 %v2866, %v2862
    %v3195 = vpack.c.b16 %v2867, %v2863
    %v3196 = vpack.c.b16 %v2868, %v2864
    %v3197 = vpack.c.b16 %v2873, %v2869
    %v3198 = vpack.c.b16 %v2874, %v2870
    %v3199 = vpack.c.b16 %v2875, %v2871
    %v3200 = vpack.c.b16 %v2876, %v2872
    %v3201 = vpack.c.b16 %v2881, %v2877
    %v3202 = vpack.c.b16 %v2882, %v2878
    %v3203 = vpack.c.b16 %v2883, %v2879
    %v3204 = vpack.c.b16 %v2884, %v2880
    %v3205 = vpack.c.b16 %v2889, %v2885
    %v3206 = vpack.c.b16 %v2890, %v2886
    %v3207 = vpack.c.b16 %v2891, %v2887
    %v3208 = vpack.c.b16 %v2892, %v2888
    %v3209 = vpack.c.b16 %v2897, %v2893
    %v3210 = vpack.c.b16 %v2898, %v2894
    %v3211 = vpack.c.b16 %v2899, %v2895
    %v3212 = vpack.c.b16 %v2900, %v2896
    %v3213 = vpack.c.b16 %v2905, %v2901
    %v3214 = vpack.c.b16 %v2906, %v2902
    %v3215 = vpack.c.b16 %v2907, %v2903
    %v3216 = vpack.c.b16 %v2908, %v2904
    %v3217 = vpack.c.b16 %v2913, %v2909
    %v3218 = vpack.c.b16 %v2914, %v2910
    %v3219 = vpack.c.b16 %v2915, %v2911
    %v3220 = vpack.c.b16 %v2916, %v2912
    %v3221 = vpack.c.b16 %v2921, %v2917
    %v3222 = vpack.c.b16 %v2922, %v2918
    %v3223 = vpack.c.b16 %v2923, %v2919
    %v3224 = vpack.c.b16 %v2924, %v2920
    %v3225 = vpack.c.b16 %v2929, %v2925
    %v3226 = vpack.c.b16 %v2930, %v2926
    %v3227 = vpack.c.b16 %v2931, %v2927
    %v3228 = vpack.c.b16 %v2932, %v2928
    %v3229 = vpack.c.b16 %v2937, %v2933
    %v3230 = vpack.c.b16 %v2938, %v2934
    %v3231 = vpack.c.b16 %v2939, %v2935
    %v3232 = vpack.c.b16 %v2940, %v2936
    %v3233 = vpack.c.b16 %v2945, %v2941
    %v3234 = vpack.c.b16 %v2946, %v2942
    %v3235 = vpack.c.b16 %v2947, %v2943
    %v3236 = vpack.c.b16 %v2948, %v2944
    %v3237 = vpack.c.b16 %v2953, %v2949
    %v3238 = vpack.c.b16 %v2954, %v2950
    %v3239 = vpack.c.b16 %v2955, %v2951
    %v3240 = vpack.c.b16 %v2956, %v2952
    %v3241 = vpack.c.b16 %v2961, %v2957
    %v3242 = vpack.c.b16 %v2962, %v2958
    %v3243 = vpack.c.b16 %v2963, %v2959
    %v3244 = vpack.c.b16 %v2964, %v2960
    %v3245 = vpack.c.b16 %v2969, %v2965
    %v3246 = vpack.c.b16 %v2970, %v2966
    %v3247 = vpack.c.b16 %v2971, %v2967
    %v3248 = vpack.c.b16 %v2972, %v2968
    %v3249 = vpack.c.b16 %v2977, %v2973
    %v3250 = vpack.c.b16 %v2978, %v2974
    %v3251 = vpack.c.b16 %v2979, %v2975
    %v3252 = vpack.c.b16 %v2980, %v2976
    %v3253 = vpack.c.b16 %v2985, %v2981
    %v3254 = vpack.c.b16 %v2986, %v2982
    %v3255 = vpack.c.b16 %v2987, %v2983
    %v3256 = vpack.c.b16 %v2988, %v2984
    %v3257 = vpack.c.b16 %v2993, %v2989
    %v3258 = vpack.c.b16 %v2994, %v2990
    %v3259 = vpack.c.b16 %v2995, %v2991
    %v3260 = vpack.c.b16 %v2996, %v2992
    %v3261 = vpack.c.b16 %v3001, %v2997
    %v3262 = vpack.c.b16 %v3002, %v2998
    %v3263 = vpack.c.b16 %v3003, %v2999
    %v3264 = vpack.c.b16 %v3004, %v3000
    %v3265 = vpack.c.b16 %v3009, %v3005
    %v3266 = vpack.c.b16 %v3010, %v3006
    %v3267 = vpack.c.b16 %v3011, %v3007
    %v3268 = vpack.c.b16 %v3012, %v3008
    %3525 = vmatprep.subr.bf16.mxu0 %v3014
    %3526 = vmatpush1.bf16.msra.mxu0 %v3013
    %3527 = vmatprep.subr.bf16.mxu0 %v3018
    %3528 = vmatpush1.bf16.msra.mxu0 %v3017
    %3529 = vmatprep.subr.bf16.mxu0 %v3022
    %3530 = vmatpush1.bf16.msra.mxu0 %v3021
    %3531 = vmatprep.subr.bf16.mxu0 %v3026
    %3532 = vmatpush1.bf16.msra.mxu0 %v3025
    %3533 = vmatprep.subr.bf16.mxu0 %v3030
    %3534 = vmatpush1.bf16.msra.mxu0 %v3029
    %3535 = vmatprep.subr.bf16.mxu0 %v3034
    %3536 = vmatpush1.bf16.msra.mxu0 %v3033
    %3537 = vmatprep.subr.bf16.mxu0 %v3038
    %3538 = vmatpush1.bf16.msra.mxu0 %v3037
    %3539 = vmatprep.subr.bf16.mxu0 %v3042
    %3540 = vmatpush1.bf16.msra.mxu0 %v3041
    %3541 = vmatprep.subr.bf16.mxu0 %v3046
    %3542 = vmatpush1.bf16.msra.mxu0 %v3045
    %3543 = vmatprep.subr.bf16.mxu0 %v3050
    %3544 = vmatpush1.bf16.msra.mxu0 %v3049
    %3545 = vmatprep.subr.bf16.mxu0 %v3054
    %3546 = vmatpush1.bf16.msra.mxu0 %v3053
    %3547 = vmatprep.subr.bf16.mxu0 %v3058
    %3548 = vmatpush1.bf16.msra.mxu0 %v3057
    %3549 = vmatprep.subr.bf16.mxu0 %v3062
    %3550 = vmatpush1.bf16.msra.mxu0 %v3061
    %3551 = vmatprep.subr.bf16.mxu0 %v3066
    %3552 = vmatpush1.bf16.msra.mxu0 %v3065
    %3553 = vmatprep.subr.bf16.mxu0 %v3070
    %3554 = vmatpush1.bf16.msra.mxu0 %v3069
    %3555 = vmatprep.subr.bf16.mxu0 %v3074
    %3556 = vmatpush1.bf16.msra.mxu0 %v3073
    %3557 = vmatprep.mubr.bf16.mxu0 %v1234
    %3558 = vmatmul.mubr.bf16.gmra.mrb[0].mxu0 %v1112
    %v3559 = vpop.f32.mrb[0].mxu0
    %v3560 = vadd.f32 %v2228, %v3559
    %v3561 = vpop.f32.mrb[0].mxu0
    %v3562 = vadd.f32 %v2232, %v3561
    %v3563 = vpop.f32.mrb[0].mxu0
    %v3564 = vpop.f32.mrb[0].mxu0
    %3565 = vdwg.mxu0
    %3566 = vmatprep.subr.bf16.mxu0 %v3078
    %3567 = vmatpush1.bf16.msra.mxu0 %v3077
    %3568 = vmatprep.subr.bf16.mxu0 %v3082
    %3569 = vmatpush1.bf16.msra.mxu0 %v3081
    %3570 = vmatprep.subr.bf16.mxu0 %v3086
    %3571 = vmatpush1.bf16.msra.mxu0 %v3085
    %3572 = vmatprep.subr.bf16.mxu0 %v3090
    %3573 = vmatpush1.bf16.msra.mxu0 %v3089
    %3574 = vmatprep.subr.bf16.mxu0 %v3094
    %3575 = vmatpush1.bf16.msra.mxu0 %v3093
    %3576 = vmatprep.subr.bf16.mxu0 %v3098
    %3577 = vmatpush1.bf16.msra.mxu0 %v3097
    %3578 = vmatprep.subr.bf16.mxu0 %v3102
    %3579 = vmatpush1.bf16.msra.mxu0 %v3101
    %3580 = vmatprep.subr.bf16.mxu0 %v3106
    %3581 = vmatpush1.bf16.msra.mxu0 %v3105
    %3582 = vmatprep.subr.bf16.mxu0 %v3110
    %3583 = vmatpush1.bf16.msra.mxu0 %v3109
    %3584 = vmatprep.subr.bf16.mxu0 %v3114
    %3585 = vmatpush1.bf16.msra.mxu0 %v3113
    %3586 = vmatprep.subr.bf16.mxu0 %v3118
    %3587 = vmatpush1.bf16.msra.mxu0 %v3117
    %3588 = vmatprep.subr.bf16.mxu0 %v3122
    %3589 = vmatpush1.bf16.msra.mxu0 %v3121
    %3590 = vmatprep.subr.bf16.mxu0 %v3126
    %3591 = vmatpush1.bf16.msra.mxu0 %v3125
    %3592 = vmatprep.subr.bf16.mxu0 %v3130
    %3593 = vmatpush1.bf16.msra.mxu0 %v3129
    %3594 = vmatprep.subr.bf16.mxu0 %v3134
    %3595 = vmatpush1.bf16.msra.mxu0 %v3133
    %3596 = vmatprep.subr.bf16.mxu0 %v3138
    %3597 = vmatpush1.bf16.msra.mxu0 %v3137
    %3598 = vmatprep.mubr.bf16.mxu0 %v1478
    %3599 = vmatmul.mubr.bf16.gmra.mrb[0].mxu0 %v1356
    %v3600 = vpop.f32.mrb[0].mxu0
    %v3601 = vadd.f32 %v3560, %v3600
    %v3602 = vpop.f32.mrb[0].mxu0
    %v3603 = vadd.f32 %v3562, %v3602
    %v3604 = vpop.f32.mrb[0].mxu0
    %v3605 = vpop.f32.mrb[0].mxu0
    %3606 = vdwg.mxu0
    %3607 = vmatprep.subr.bf16.mxu0 %v3142
    %3608 = vmatpush1.bf16.msra.mxu0 %v3141
    %3609 = vmatprep.subr.bf16.mxu0 %v3146
    %3610 = vmatpush1.bf16.msra.mxu0 %v3145
    %3611 = vmatprep.subr.bf16.mxu0 %v3150
    %3612 = vmatpush1.bf16.msra.mxu0 %v3149
    %3613 = vmatprep.subr.bf16.mxu0 %v3154
    %3614 = vmatpush1.bf16.msra.mxu0 %v3153
    %3615 = vmatprep.subr.bf16.mxu0 %v3158
    %3616 = vmatpush1.bf16.msra.mxu0 %v3157
    %3617 = vmatprep.subr.bf16.mxu0 %v3162
    %3618 = vmatpush1.bf16.msra.mxu0 %v3161
    %3619 = vmatprep.subr.bf16.mxu0 %v3166
    %3620 = vmatpush1.bf16.msra.mxu0 %v3165
    %3621 = vmatprep.subr.bf16.mxu0 %v3170
    %3622 = vmatpush1.bf16.msra.mxu0 %v3169
    %3623 = vmatprep.subr.bf16.mxu0 %v3174
    %3624 = vmatpush1.bf16.msra.mxu0 %v3173
    %3625 = vmatprep.subr.bf16.mxu0 %v3178
    %3626 = vmatpush1.bf16.msra.mxu0 %v3177
    %3627 = vmatprep.subr.bf16.mxu0 %v3182
    %3628 = vmatpush1.bf16.msra.mxu0 %v3181
    %3629 = vmatprep.subr.bf16.mxu0 %v3186
    %3630 = vmatpush1.bf16.msra.mxu0 %v3185
    %3631 = vmatprep.subr.bf16.mxu0 %v3190
    %3632 = vmatpush1.bf16.msra.mxu0 %v3189
    %3633 = vmatprep.subr.bf16.mxu0 %v3194
    %3634 = vmatpush1.bf16.msra.mxu0 %v3193
    %3635 = vmatprep.subr.bf16.mxu0 %v3198
    %3636 = vmatpush1.bf16.msra.mxu0 %v3197
    %3637 = vmatprep.subr.bf16.mxu0 %v3202
    %3638 = vmatpush1.bf16.msra.mxu0 %v3201
    %3639 = vmatprep.mubr.bf16.mxu0 %v1722
    %3640 = vmatmul.mubr.bf16.gmra.mrb[0].mxu0 %v1600
    %v3641 = vpop.f32.mrb[0].mxu0
    %v3642 = vadd.f32 %v3601, %v3641
    %v3643 = vpop.f32.mrb[0].mxu0
    %v3644 = vadd.f32 %v3603, %v3643
    %v3645 = vpop.f32.mrb[0].mxu0
    %v3646 = vpop.f32.mrb[0].mxu0
    %3647 = vdwg.mxu0
    %3648 = vmatprep.subr.bf16.mxu0 %v3206
    %3649 = vmatpush1.bf16.msra.mxu0 %v3205
    %3650 = vmatprep.subr.bf16.mxu0 %v3210
    %3651 = vmatpush1.bf16.msra.mxu0 %v3209
    %3652 = vmatprep.subr.bf16.mxu0 %v3214
    %3653 = vmatpush1.bf16.msra.mxu0 %v3213
    %3654 = vmatprep.subr.bf16.mxu0 %v3218
    %3655 = vmatpush1.bf16.msra.mxu0 %v3217
    %3656 = vmatprep.subr.bf16.mxu0 %v3222
    %3657 = vmatpush1.bf16.msra.mxu0 %v3221
    %3658 = vmatprep.subr.bf16.mxu0 %v3226
    %3659 = vmatpush1.bf16.msra.mxu0 %v3225
    %3660 = vmatprep.subr.bf16.mxu0 %v3230
    %3661 = vmatpush1.bf16.msra.mxu0 %v3229
    %3662 = vmatprep.subr.bf16.mxu0 %v3234
    %3663 = vmatpush1.bf16.msra.mxu0 %v3233
    %3664 = vmatprep.subr.bf16.mxu0 %v3238
    %3665 = vmatpush1.bf16.msra.mxu0 %v3237
    %3666 = vmatprep.subr.bf16.mxu0 %v3242
    %3667 = vmatpush1.bf16.msra.mxu0 %v3241
    %3668 = vmatprep.subr.bf16.mxu0 %v3246
    %3669 = vmatpush1.bf16.msra.mxu0 %v3245
    %3670 = vmatprep.subr.bf16.mxu0 %v3250
    %3671 = vmatpush1.bf16.msra.mxu0 %v3249
    %3672 = vmatprep.subr.bf16.mxu0 %v3254
    %3673 = vmatpush1.bf16.msra.mxu0 %v3253
    %3674 = vmatprep.subr.bf16.mxu0 %v3258
    %3675 = vmatpush1.bf16.msra.mxu0 %v3257
    %3676 = vmatprep.subr.bf16.mxu0 %v3262
    %3677 = vmatpush1.bf16.msra.mxu0 %v3261
    %3678 = vmatprep.subr.bf16.mxu0 %v3266
    %3679 = vmatpush1.bf16.msra.mxu0 %v3265
    %3680 = vmatprep.mubr.bf16.mxu0 %v1966
    %3681 = vmatmul.mubr.bf16.gmra.mrb[0].mxu0 %v1844
    %v3682 = vpop.f32.mrb[0].mxu0
    %v3683 = vadd.f32 %v3642, %v3682
    %v3684 = vpop.f32.mrb[0].mxu0
    %v3685 = vadd.f32 %v3644, %v3684
    %v3686 = vpop.f32.mrb[0].mxu0
    %v3687 = vpop.f32.mrb[0].mxu0
    %3688 = vdwg.mxu0
    %3689 = vmatprep.subr.bf16.mxu0 %v3016
    %3690 = vmatpush1.bf16.msra.mxu0 %v3015
    %3691 = vmatprep.subr.bf16.mxu0 %v3020
    %3692 = vmatpush1.bf16.msra.mxu0 %v3019
    %3693 = vmatprep.subr.bf16.mxu0 %v3024
    %3694 = vmatpush1.bf16.msra.mxu0 %v3023
    %3695 = vmatprep.subr.bf16.mxu0 %v3028
    %3696 = vmatpush1.bf16.msra.mxu0 %v3027
    %3697 = vmatprep.subr.bf16.mxu0 %v3032
    %3698 = vmatpush1.bf16.msra.mxu0 %v3031
    %3699 = vmatprep.subr.bf16.mxu0 %v3036
    %3700 = vmatpush1.bf16.msra.mxu0 %v3035
    %3701 = vmatprep.subr.bf16.mxu0 %v3040
    %3702 = vmatpush1.bf16.msra.mxu0 %v3039
    %3703 = vmatprep.subr.bf16.mxu0 %v3044
    %3704 = vmatpush1.bf16.msra.mxu0 %v3043
    %3705 = vmatprep.subr.bf16.mxu0 %v3048
    %3706 = vmatpush1.bf16.msra.mxu0 %v3047
    %3707 = vmatprep.subr.bf16.mxu0 %v3052
    %3708 = vmatpush1.bf16.msra.mxu0 %v3051
    %3709 = vmatprep.subr.bf16.mxu0 %v3056
    %3710 = vmatpush1.bf16.msra.mxu0 %v3055
    %3711 = vmatprep.subr.bf16.mxu0 %v3060
    %3712 = vmatpush1.bf16.msra.mxu0 %v3059
    %3713 = vmatprep.subr.bf16.mxu0 %v3064
    %3714 = vmatpush1.bf16.msra.mxu0 %v3063
    %3715 = vmatprep.subr.bf16.mxu0 %v3068
    %3716 = vmatpush1.bf16.msra.mxu0 %v3067
    %3717 = vmatprep.subr.bf16.mxu0 %v3072
    %3718 = vmatpush1.bf16.msra.mxu0 %v3071
    %3719 = vmatprep.subr.bf16.mxu0 %v3076
    %3720 = vmatpush1.bf16.msra.mxu0 %v3075
    %3721 = vmatprep.mubr.bf16.mxu0 %v1234
    %3722 = vmatmul.mubr.bf16.gmra.mrb[0].mxu0 %v1112
    %v3723 = vpop.f32.mrb[0].mxu0
    %v3724 = vadd.f32 %v2236, %v3723
    %v3725 = vpop.f32.mrb[0].mxu0
    %v3726 = vadd.f32 %v2240, %v3725
    %v3727 = vpop.f32.mrb[0].mxu0
    %v3728 = vpop.f32.mrb[0].mxu0
    %3729 = vdwg.mxu0
    %3730 = vmatprep.subr.bf16.mxu0 %v3080
    %3731 = vmatpush1.bf16.msra.mxu0 %v3079
    %3732 = vmatprep.subr.bf16.mxu0 %v3084
    %3733 = vmatpush1.bf16.msra.mxu0 %v3083
    %3734 = vmatprep.subr.bf16.mxu0 %v3088
    %3735 = vmatpush1.bf16.msra.mxu0 %v3087
    %3736 = vmatprep.subr.bf16.mxu0 %v3092
    %3737 = vmatpush1.bf16.msra.mxu0 %v3091
    %3738 = vmatprep.subr.bf16.mxu0 %v3096
    %3739 = vmatpush1.bf16.msra.mxu0 %v3095
    %3740 = vmatprep.subr.bf16.mxu0 %v3100
    %3741 = vmatpush1.bf16.msra.mxu0 %v3099
    %3742 = vmatprep.subr.bf16.mxu0 %v3104
    %3743 = vmatpush1.bf16.msra.mxu0 %v3103
    %3744 = vmatprep.subr.bf16.mxu0 %v3108
    %3745 = vmatpush1.bf16.msra.mxu0 %v3107
    %3746 = vmatprep.subr.bf16.mxu0 %v3112
    %3747 = vmatpush1.bf16.msra.mxu0 %v3111
    %3748 = vmatprep.subr.bf16.mxu0 %v3116
    %3749 = vmatpush1.bf16.msra.mxu0 %v3115
    %3750 = vmatprep.subr.bf16.mxu0 %v3120
    %3751 = vmatpush1.bf16.msra.mxu0 %v3119
    %3752 = vmatprep.subr.bf16.mxu0 %v3124
    %3753 = vmatpush1.bf16.msra.mxu0 %v3123
    %3754 = vmatprep.subr.bf16.mxu0 %v3128
    %3755 = vmatpush1.bf16.msra.mxu0 %v3127
    %3756 = vmatprep.subr.bf16.mxu0 %v3132
    %3757 = vmatpush1.bf16.msra.mxu0 %v3131
    %3758 = vmatprep.subr.bf16.mxu0 %v3136
    %3759 = vmatpush1.bf16.msra.mxu0 %v3135
    %3760 = vmatprep.subr.bf16.mxu0 %v3140
    %3761 = vmatpush1.bf16.msra.mxu0 %v3139
    %3762 = vmatprep.mubr.bf16.mxu0 %v1478
    %3763 = vmatmul.mubr.bf16.gmra.mrb[0].mxu0 %v1356
    %v3764 = vpop.f32.mrb[0].mxu0
    %v3765 = vadd.f32 %v3724, %v3764
    %v3766 = vpop.f32.mrb[0].mxu0
    %v3767 = vadd.f32 %v3726, %v3766
    %v3768 = vpop.f32.mrb[0].mxu0
    %v3769 = vpop.f32.mrb[0].mxu0
    %3770 = vdwg.mxu0
    %3771 = vmatprep.subr.bf16.mxu0 %v3144
    %3772 = vmatpush1.bf16.msra.mxu0 %v3143
    %3773 = vmatprep.subr.bf16.mxu0 %v3148
    %3774 = vmatpush1.bf16.msra.mxu0 %v3147
    %3775 = vmatprep.subr.bf16.mxu0 %v3152
    %3776 = vmatpush1.bf16.msra.mxu0 %v3151
    %3777 = vmatprep.subr.bf16.mxu0 %v3156
    %3778 = vmatpush1.bf16.msra.mxu0 %v3155
    %3779 = vmatprep.subr.bf16.mxu0 %v3160
    %3780 = vmatpush1.bf16.msra.mxu0 %v3159
    %3781 = vmatprep.subr.bf16.mxu0 %v3164
    %3782 = vmatpush1.bf16.msra.mxu0 %v3163
    %3783 = vmatprep.subr.bf16.mxu0 %v3168
    %3784 = vmatpush1.bf16.msra.mxu0 %v3167
    %3785 = vmatprep.subr.bf16.mxu0 %v3172
    %3786 = vmatpush1.bf16.msra.mxu0 %v3171
    %3787 = vmatprep.subr.bf16.mxu0 %v3176
    %3788 = vmatpush1.bf16.msra.mxu0 %v3175
    %3789 = vmatprep.subr.bf16.mxu0 %v3180
    %3790 = vmatpush1.bf16.msra.mxu0 %v3179
    %3791 = vmatprep.subr.bf16.mxu0 %v3184
    %3792 = vmatpush1.bf16.msra.mxu0 %v3183
    %3793 = vmatprep.subr.bf16.mxu0 %v3188
    %3794 = vmatpush1.bf16.msra.mxu0 %v3187
    %3795 = vmatprep.subr.bf16.mxu0 %v3192
    %3796 = vmatpush1.bf16.msra.mxu0 %v3191
    %3797 = vmatprep.subr.bf16.mxu0 %v3196
    %3798 = vmatpush1.bf16.msra.mxu0 %v3195
    %3799 = vmatprep.subr.bf16.mxu0 %v3200
    %3800 = vmatpush1.bf16.msra.mxu0 %v3199
    %3801 = vmatprep.subr.bf16.mxu0 %v3204
    %3802 = vmatpush1.bf16.msra.mxu0 %v3203
    %3803 = vmatprep.mubr.bf16.mxu0 %v1722
    %3804 = vmatmul.mubr.bf16.gmra.mrb[0].mxu0 %v1600
    %v3805 = vpop.f32.mrb[0].mxu0
    %v3806 = vadd.f32 %v3765, %v3805
    %v3807 = vpop.f32.mrb[0].mxu0
    %v3808 = vadd.f32 %v3767, %v3807
    %v3809 = vpop.f32.mrb[0].mxu0
    %v3810 = vpop.f32.mrb[0].mxu0
    %3811 = vdwg.mxu0
    %3812 = vmatprep.subr.bf16.mxu0 %v3208
    %3813 = vmatpush1.bf16.msra.mxu0 %v3207
    %3814 = vmatprep.subr.bf16.mxu0 %v3212
    %3815 = vmatpush1.bf16.msra.mxu0 %v3211
    %3816 = vmatprep.subr.bf16.mxu0 %v3216
    %3817 = vmatpush1.bf16.msra.mxu0 %v3215
    %3818 = vmatprep.subr.bf16.mxu0 %v3220
    %3819 = vmatpush1.bf16.msra.mxu0 %v3219
    %3820 = vmatprep.subr.bf16.mxu0 %v3224
    %3821 = vmatpush1.bf16.msra.mxu0 %v3223
    %3822 = vmatprep.subr.bf16.mxu0 %v3228
    %3823 = vmatpush1.bf16.msra.mxu0 %v3227
    %3824 = vmatprep.subr.bf16.mxu0 %v3232
    %3825 = vmatpush1.bf16.msra.mxu0 %v3231
    %3826 = vmatprep.subr.bf16.mxu0 %v3236
    %3827 = vmatpush1.bf16.msra.mxu0 %v3235
    %3828 = vmatprep.subr.bf16.mxu0 %v3240
    %3829 = vmatpush1.bf16.msra.mxu0 %v3239
    %3830 = vmatprep.subr.bf16.mxu0 %v3244
    %3831 = vmatpush1.bf16.msra.mxu0 %v3243
    %3832 = vmatprep.subr.bf16.mxu0 %v3248
    %3833 = vmatpush1.bf16.msra.mxu0 %v3247
    %3834 = vmatprep.subr.bf16.mxu0 %v3252
    %3835 = vmatpush1.bf16.msra.mxu0 %v3251
    %3836 = vmatprep.subr.bf16.mxu0 %v3256
    %3837 = vmatpush1.bf16.msra.mxu0 %v3255
    %3838 = vmatprep.subr.bf16.mxu0 %v3260
    %3839 = vmatpush1.bf16.msra.mxu0 %v3259
    %3840 = vmatprep.subr.bf16.mxu0 %v3264
    %3841 = vmatpush1.bf16.msra.mxu0 %v3263
    %3842 = vmatprep.subr.bf16.mxu0 %v3268
    %3843 = vmatpush1.bf16.msra.mxu0 %v3267
    %3844 = vmatprep.mubr.bf16.mxu0 %v1966
    %3845 = vmatmul.mubr.bf16.gmra.mrb[0].mxu0 %v1844
    %v3846 = vpop.f32.mrb[0].mxu0
    %v3847 = vadd.f32 %v3806, %v3846
    %v3848 = vpop.f32.mrb[0].mxu0
    %v3849 = vadd.f32 %v3808, %v3848
    %v3850 = vpop.f32.mrb[0].mxu0
    %v3851 = vpop.f32.mrb[0].mxu0
    %3852 = vdwg.mxu0
    %v3853 = vmax.f32 %v3683, 0.0
    %v3854 = vmax.f32 %v3685, 0.0
    %v3855 = vmax.f32 %v3847, 0.0
    %v3856 = vmax.f32 %v3849, 0.0
    %v3857 = vpack.c.bf16 %v3853, %v3853
    %v3858 = vpack.c.bf16 %v3854, %v3854
    %v3859 = vpack.c.bf16 %v3855, %v3855
    %v3860 = vpack.c.bf16 %v3856, %v3856
    %v3861 = vld [vmem:[#allocation6] sm:$0xf]
    %v3862 = vld [vmem:[#allocation6 + $0x4] sm:$0xf]
    %v3863 = vld [vmem:[#allocation6 + $0x8] sm:$0xf]
    %v3864 = vld [vmem:[#allocation6 + $0xc] sm:$0xf]
    %v3865 = vld [vmem:[#allocation6 + $0x10] sm:$0xf]
    %v3866 = vld [vmem:[#allocation6 + $0x14] sm:$0xf]
    %v3867 = vld [vmem:[#allocation6 + $0x18] sm:$0xf]
    %v3868 = vld [vmem:[#allocation6 + $0x1c] sm:$0xf]
    %v3869 = vld [vmem:[#allocation6 + $0x20] sm:$0xf]
    %v3870 = vld [vmem:[#allocation6 + $0x24] sm:$0xf]
    %v3871 = vld [vmem:[#allocation6 + $0x28] sm:$0xf]
    %v3872 = vld [vmem:[#allocation6 + $0x2c] sm:$0xf]
    %v3873 = vld [vmem:[#allocation6 + $0x30] sm:$0xf]
    %v3874 = vld [vmem:[#allocation6 + $0x34] sm:$0xf]
    %v3875 = vld [vmem:[#allocation6 + $0x38] sm:$0xf]
    %v3876 = vld [vmem:[#allocation6 + $0x3c] sm:$0xf]
    %v3877 = vld [vmem:[#allocation6 + $0x40] sm:$0xf]
    %v3878 = vld [vmem:[#allocation6 + $0x44] sm:$0xf]
    %v3879 = vld [vmem:[#allocation6 + $0x48] sm:$0xf]
    %v3880 = vld [vmem:[#allocation6 + $0x4c] sm:$0xf]
    %v3881 = vld [vmem:[#allocation6 + $0x50] sm:$0xf]
    %v3882 = vld [vmem:[#allocation6 + $0x54] sm:$0xf]
    %v3883 = vld [vmem:[#allocation6 + $0x58] sm:$0xf]
    %v3884 = vld [vmem:[#allocation6 + $0x5c] sm:$0xf]
    %v3885 = vld [vmem:[#allocation6 + $0x60] sm:$0xf]
    %v3886 = vld [vmem:[#allocation6 + $0x64] sm:$0xf]
    %v3887 = vld [vmem:[#allocation6 + $0x68] sm:$0xf]
    %v3888 = vld [vmem:[#allocation6 + $0x6c] sm:$0xf]
    %v3889 = vld [vmem:[#allocation6 + $0x70] sm:$0xf]
    %v3890 = vld [vmem:[#allocation6 + $0x74] sm:$0xf]
    %v3891 = vld [vmem:[#allocation6 + $0x78] sm:$0xf]
    %v3892 = vld [vmem:[#allocation6 + $0x7c] sm:$0xf]
    %v3893 = vld [vmem:[#allocation6 + $0x80] sm:$0xf]
    %v3894 = vld [vmem:[#allocation6 + $0x84] sm:$0xf]
    %v3895 = vld [vmem:[#allocation6 + $0x88] sm:$0xf]
    %v3896 = vld [vmem:[#allocation6 + $0x8c] sm:$0xf]
    %v3897 = vld [vmem:[#allocation6 + $0x90] sm:$0xf]
    %v3898 = vld [vmem:[#allocation6 + $0x94] sm:$0xf]
    %v3899 = vld [vmem:[#allocation6 + $0x98] sm:$0xf]
    %v3900 = vld [vmem:[#allocation6 + $0x9c] sm:$0xf]
    %v3901 = vld [vmem:[#allocation6 + $0xa0] sm:$0xf]
    %v3902 = vld [vmem:[#allocation6 + $0xa4] sm:$0xf]
    %v3903 = vld [vmem:[#allocation6 + $0xa8] sm:$0xf]
    %v3904 = vld [vmem:[#allocation6 + $0xac] sm:$0xf]
    %v3905 = vld [vmem:[#allocation6 + $0xb0] sm:$0xf]
    %v3906 = vld [vmem:[#allocation6 + $0xb4] sm:$0xf]
    %v3907 = vld [vmem:[#allocation6 + $0xb8] sm:$0xf]
    %v3908 = vld [vmem:[#allocation6 + $0xbc] sm:$0xf]
    %v3909 = vld [vmem:[#allocation6 + $0xc0] sm:$0xf]
    %v3910 = vld [vmem:[#allocation6 + $0xc4] sm:$0xf]
    %v3911 = vld [vmem:[#allocation6 + $0xc8] sm:$0xf]
    %v3912 = vld [vmem:[#allocation6 + $0xcc] sm:$0xf]
    %v3913 = vld [vmem:[#allocation6 + $0xd0] sm:$0xf]
    %v3914 = vld [vmem:[#allocation6 + $0xd4] sm:$0xf]
    %v3915 = vld [vmem:[#allocation6 + $0xd8] sm:$0xf]
    %v3916 = vld [vmem:[#allocation6 + $0xdc] sm:$0xf]
    %v3917 = vld [vmem:[#allocation6 + $0xe0] sm:$0xf]
    %v3918 = vld [vmem:[#allocation6 + $0xe4] sm:$0xf]
    %v3919 = vld [vmem:[#allocation6 + $0xe8] sm:$0xf]
    %v3920 = vld [vmem:[#allocation6 + $0xec] sm:$0xf]
    %v3921 = vld [vmem:[#allocation6 + $0xf0] sm:$0xf]
    %v3922 = vld [vmem:[#allocation6 + $0xf4] sm:$0xf]
    %v3923 = vld [vmem:[#allocation6 + $0xf8] sm:$0xf]
    %v3924 = vld [vmem:[#allocation6 + $0xfc] sm:$0xf]
    %v3925 = vld [vmem:[%s8] sm:$0x1]
    %v3927 = vlaneseq
    %v3928 = vshrl.u32 %v3927, 7
    %v3929 = vsub.s32 0, %v3928
    %v3930 = vrot.slane %v3925, %v3929
    %v3996 = vunpack.c.l.b16 %v3861
    %v3997 = vunpack.c.l.b16 %v3862
    %v3998 = vunpack.c.l.b16 %v3863
    %v3999 = vunpack.c.l.b16 %v3864
    %v4000 = vunpack.c.l.b16 %v3865
    %v4001 = vunpack.c.l.b16 %v3866
    %v4002 = vunpack.c.l.b16 %v3867
    %v4003 = vunpack.c.l.b16 %v3868
    %v4004 = vunpack.c.l.b16 %v3869
    %v4005 = vunpack.c.l.b16 %v3870
    %v4006 = vunpack.c.l.b16 %v3871
    %v4007 = vunpack.c.l.b16 %v3872
    %v4008 = vunpack.c.l.b16 %v3873
    %v4009 = vunpack.c.l.b16 %v3874
    %v4010 = vunpack.c.l.b16 %v3875
    %v4011 = vunpack.c.l.b16 %v3876
    %v4012 = vunpack.c.l.b16 %v3877
    %v4013 = vunpack.c.l.b16 %v3878
    %v4014 = vunpack.c.l.b16 %v3879
    %v4015 = vunpack.c.l.b16 %v3880
    %v4016 = vunpack.c.l.b16 %v3881
    %v4017 = vunpack.c.l.b16 %v3882
    %v4018 = vunpack.c.l.b16 %v3883
    %v4019 = vunpack.c.l.b16 %v3884
    %v4020 = vunpack.c.l.b16 %v3885
    %v4021 = vunpack.c.l.b16 %v3886
    %v4022 = vunpack.c.l.b16 %v3887
    %v4023 = vunpack.c.l.b16 %v3888
    %v4024 = vunpack.c.l.b16 %v3889
    %v4025 = vunpack.c.l.b16 %v3890
    %v4026 = vunpack.c.l.b16 %v3891
    %v4027 = vunpack.c.l.b16 %v3892
    %v4028 = vunpack.c.l.b16 %v3893
    %v4029 = vunpack.c.l.b16 %v3894
    %v4030 = vunpack.c.l.b16 %v3895
    %v4031 = vunpack.c.l.b16 %v3896
    %v4032 = vunpack.c.l.b16 %v3897
    %v4033 = vunpack.c.l.b16 %v3898
    %v4034 = vunpack.c.l.b16 %v3899
    %v4035 = vunpack.c.l.b16 %v3900
    %v4036 = vunpack.c.l.b16 %v3901
    %v4037 = vunpack.c.l.b16 %v3902
    %v4038 = vunpack.c.l.b16 %v3903
    %v4039 = vunpack.c.l.b16 %v3904
    %v4040 = vunpack.c.l.b16 %v3905
    %v4041 = vunpack.c.l.b16 %v3906
    %v4042 = vunpack.c.l.b16 %v3907
    %v4043 = vunpack.c.l.b16 %v3908
    %v4044 = vunpack.c.l.b16 %v3909
    %v4045 = vunpack.c.l.b16 %v3910
    %v4046 = vunpack.c.l.b16 %v3911
    %v4047 = vunpack.c.l.b16 %v3912
    %v4048 = vunpack.c.l.b16 %v3913
    %v4049 = vunpack.c.l.b16 %v3914
    %v4050 = vunpack.c.l.b16 %v3915
    %v4051 = vunpack.c.l.b16 %v3916
    %v4052 = vunpack.c.l.b16 %v3917
    %v4053 = vunpack.c.l.b16 %v3918
    %v4054 = vunpack.c.l.b16 %v3919
    %v4055 = vunpack.c.l.b16 %v3920
    %v4056 = vunpack.c.l.b16 %v3921
    %v4057 = vunpack.c.l.b16 %v3922
    %v4058 = vunpack.c.l.b16 %v3923
    %v4059 = vunpack.c.l.b16 %v3924
    %v4060 = vpack.c.b16 %v3997, %v3996
    %v4061 = vpack.c.b16 %v3999, %v3998
    %v4062 = vpack.c.b16 %v4001, %v4000
    %v4063 = vpack.c.b16 %v4003, %v4002
    %v4064 = vpack.c.b16 %v4005, %v4004
    %v4065 = vpack.c.b16 %v4007, %v4006
    %v4066 = vpack.c.b16 %v4009, %v4008
    %v4067 = vpack.c.b16 %v4011, %v4010
    %v4068 = vpack.c.b16 %v4013, %v4012
    %v4069 = vpack.c.b16 %v4015, %v4014
    %v4070 = vpack.c.b16 %v4017, %v4016
    %v4071 = vpack.c.b16 %v4019, %v4018
    %v4072 = vpack.c.b16 %v4021, %v4020
    %v4073 = vpack.c.b16 %v4023, %v4022
    %v4074 = vpack.c.b16 %v4025, %v4024
    %v4075 = vpack.c.b16 %v4027, %v4026
    %v4076 = vpack.c.b16 %v4029, %v4028
    %v4077 = vpack.c.b16 %v4031, %v4030
    %v4078 = vpack.c.b16 %v4033, %v4032
    %v4079 = vpack.c.b16 %v4035, %v4034
    %v4080 = vpack.c.b16 %v4037, %v4036
    %v4081 = vpack.c.b16 %v4039, %v4038
    %v4082 = vpack.c.b16 %v4041, %v4040
    %v4083 = vpack.c.b16 %v4043, %v4042
    %v4084 = vpack.c.b16 %v4045, %v4044
    %v4085 = vpack.c.b16 %v4047, %v4046
    %v4086 = vpack.c.b16 %v4049, %v4048
    %v4087 = vpack.c.b16 %v4051, %v4050
    %v4088 = vpack.c.b16 %v4053, %v4052
    %v4089 = vpack.c.b16 %v4055, %v4054
    %v4090 = vpack.c.b16 %v4057, %v4056
    %v4091 = vpack.c.b16 %v4059, %v4058
    %4124 = vmatprep.subr.bf16.mxu0 0
    %4125 = vmatpush1.bf16.msra.mxu0 %v4060
    %4126 = vmatprep.subr.bf16.mxu0 0
    %4127 = vmatpush1.bf16.msra.mxu0 %v4061
    %4128 = vmatprep.subr.bf16.mxu0 0
    %4129 = vmatpush1.bf16.msra.mxu0 %v4062
    %4130 = vmatprep.subr.bf16.mxu0 0
    %4131 = vmatpush1.bf16.msra.mxu0 %v4063
    %4132 = vmatprep.subr.bf16.mxu0 0
    %4133 = vmatpush1.bf16.msra.mxu0 %v4064
    %4134 = vmatprep.subr.bf16.mxu0 0
    %4135 = vmatpush1.bf16.msra.mxu0 %v4065
    %4136 = vmatprep.subr.bf16.mxu0 0
    %4137 = vmatpush1.bf16.msra.mxu0 %v4066
    %4138 = vmatprep.subr.bf16.mxu0 0
    %4139 = vmatpush1.bf16.msra.mxu0 %v4067
    %4140 = vmatprep.subr.bf16.mxu0 0
    %4141 = vmatpush1.bf16.msra.mxu0 %v4068
    %4142 = vmatprep.subr.bf16.mxu0 0
    %4143 = vmatpush1.bf16.msra.mxu0 %v4069
    %4144 = vmatprep.subr.bf16.mxu0 0
    %4145 = vmatpush1.bf16.msra.mxu0 %v4070
    %4146 = vmatprep.subr.bf16.mxu0 0
    %4147 = vmatpush1.bf16.msra.mxu0 %v4071
    %4148 = vmatprep.subr.bf16.mxu0 0
    %4149 = vmatpush1.bf16.msra.mxu0 %v4072
    %4150 = vmatprep.subr.bf16.mxu0 0
    %4151 = vmatpush1.bf16.msra.mxu0 %v4073
    %4152 = vmatprep.subr.bf16.mxu0 0
    %4153 = vmatpush1.bf16.msra.mxu0 %v4074
    %4154 = vmatprep.subr.bf16.mxu0 0
    %4155 = vmatpush1.bf16.msra.mxu0 %v4075
    %4156 = vmatprep.mubr.bf16.mxu0 %v3858
    %4157 = vmatmul.mubr.bf16.gmra.mrb[0].mxu0 %v3857
    %v4158 = vpop.f32.mrb[0].mxu0
    %v4159 = vadd.f32 %v3930, %v4158
    %v4160 = vpop.f32.mrb[0].mxu0
    %v4161 = vpop.f32.mrb[0].mxu0
    %v4162 = vpop.f32.mrb[0].mxu0
    %4163 = vdwg.mxu0
    %4164 = vmatprep.subr.bf16.mxu0 0
    %4165 = vmatpush1.bf16.msra.mxu0 %v4076
    %4166 = vmatprep.subr.bf16.mxu0 0
    %4167 = vmatpush1.bf16.msra.mxu0 %v4077
    %4168 = vmatprep.subr.bf16.mxu0 0
    %4169 = vmatpush1.bf16.msra.mxu0 %v4078
    %4170 = vmatprep.subr.bf16.mxu0 0
    %4171 = vmatpush1.bf16.msra.mxu0 %v4079
    %4172 = vmatprep.subr.bf16.mxu0 0
    %4173 = vmatpush1.bf16.msra.mxu0 %v4080
    %4174 = vmatprep.subr.bf16.mxu0 0
    %4175 = vmatpush1.bf16.msra.mxu0 %v4081
    %4176 = vmatprep.subr.bf16.mxu0 0
    %4177 = vmatpush1.bf16.msra.mxu0 %v4082
    %4178 = vmatprep.subr.bf16.mxu0 0
    %4179 = vmatpush1.bf16.msra.mxu0 %v4083
    %4180 = vmatprep.subr.bf16.mxu0 0
    %4181 = vmatpush1.bf16.msra.mxu0 %v4084
    %4182 = vmatprep.subr.bf16.mxu0 0
    %4183 = vmatpush1.bf16.msra.mxu0 %v4085
    %4184 = vmatprep.subr.bf16.mxu0 0
    %4185 = vmatpush1.bf16.msra.mxu0 %v4086
    %4186 = vmatprep.subr.bf16.mxu0 0
    %4187 = vmatpush1.bf16.msra.mxu0 %v4087
    %4188 = vmatprep.subr.bf16.mxu0 0
    %4189 = vmatpush1.bf16.msra.mxu0 %v4088
    %4190 = vmatprep.subr.bf16.mxu0 0
    %4191 = vmatpush1.bf16.msra.mxu0 %v4089
    %4192 = vmatprep.subr.bf16.mxu0 0
    %4193 = vmatpush1.bf16.msra.mxu0 %v4090
    %4194 = vmatprep.subr.bf16.mxu0 0
    %4195 = vmatpush1.bf16.msra.mxu0 %v4091
    %4196 = vmatprep.mubr.bf16.mxu0 %v3860
    %4197 = vmatmul.mubr.bf16.gmra.mrb[0].mxu0 %v3859
    %v4198 = vpop.f32.mrb[0].mxu0
    %v4199 = vadd.f32 %v4159, %v4198
    %v4200 = vpop.f32.mrb[0].mxu0
    %v4201 = vpop.f32.mrb[0].mxu0
    %v4202 = vpop.f32.mrb[0].mxu0
    %4203 = vdwg.mxu0
    %4204 = vst [vmem:[%s9] sm:$0xff] %v4199
    // Predicated region
    $region50: #{conv_1d_forward.1} parent=1 // pred_check
      _
    $region51: #{conv_1d_forward.1} parent=1 // pred_check_branch
      %4206 = sbr.rel (0) target = $region53
    $region52: #{conv_1d_forward.1} parent=1 // pred_region
      _
    $region53: #{conv_1d_forward.1} parent=1 // pred_fallthru
      _
    // Predicated region
    $region54: #{conv_1d_forward.1} parent=1 // pred_check
      _
    $region55: #{conv_1d_forward.1} parent=1 // pred_check_branch
      %4208 = sbr.rel (0) target = $region57
    $region56: #{conv_1d_forward.1} parent=1 // pred_region
      _
    $region57: #{conv_1d_forward.1} parent=1 // pred_fallthru
      _
    %4209 = vsyncpa [#allocation3], 1
    %4210 = vsyncpa [#allocation5], 1

</llo_original>
